<compile_context>
chip_gen: v7x
topology: tpu7x:2x2x1
jax: 0.10.0
libtpu: 0.0.40
codegen_flags: <defaults>
</compile_context>

<pallas_src>
import jax
import jax.numpy as jnp
from jax import lax
from jax.experimental import pallas as pl
from jax.experimental.pallas import tpu as pltpu


def basic_block_kernel(xc_ref, xt_ref, xb_ref, w1_ref, w2_ref, p_ref,
                       out_ref, xpad, mpad):
    # xc_ref: (1, TH, W, C) f32   centre rows of x (also the residual branch)
    # xt_ref: (1, 2,  W, C) f32   two x rows above the tile (clamped at r==0)
    # xb_ref: (1, 2,  W, C) f32   two x rows below the tile (clamped at last r)
    # w1_ref/w2_ref: (9C, C) bf16 conv weights, row order (dy, dx, cin)
    # p_ref:  (4, C) f32          [bn1 scale, bn1 shift, bn2 scale, bn2 shift]
    # out_ref:(1, TH, W, C) f32
    # xpad:   (TH+4, W+2, C) bf16 padded x rows   [tile_row-2 .. tile_row+TH+1]
    # mpad:   (TH+2, W+2, C) bf16 padded mid rows [tile_row-1 .. tile_row+TH]
    TH, W, C = out_ref.shape[1], out_ref.shape[2], out_ref.shape[3]
    r = pl.program_id(1)
    R = pl.num_programs(1)

    # --- zero the 1-pixel W halo columns (every step: scratch is per-core
    # persistent and fully rewritten each step -> megacore-safe) ------------
    xpad[:, 0:1, :] = jnp.zeros((TH + 4, 1, C), jnp.bfloat16)
    xpad[:, W + 1:W + 2, :] = jnp.zeros((TH + 4, 1, C), jnp.bfloat16)
    mpad[:, 0:1, :] = jnp.zeros((TH + 2, 1, C), jnp.bfloat16)
    mpad[:, W + 1:W + 2, :] = jnp.zeros((TH + 2, 1, C), jnp.bfloat16)

    # --- build padded input tile (x rows r*TH-2 .. r*TH+TH+1) --------------
    xpad[0:2, 1:W + 1, :] = xt_ref[0].astype(jnp.bfloat16)
    xpad[2:TH + 2, 1:W + 1, :] = xc_ref[0].astype(jnp.bfloat16)
    xpad[TH + 2:TH + 4, 1:W + 1, :] = xb_ref[0].astype(jnp.bfloat16)

    @pl.when(r == 0)            # rows above the image are conv zero padding
    def _():
        xpad[0:2, :, :] = jnp.zeros((2, W + 2, C), jnp.bfloat16)

    @pl.when(r == R - 1)        # rows below the image are conv zero padding
    def _():
        xpad[TH + 2:TH + 4, :, :] = jnp.zeros((2, W + 2, C), jnp.bfloat16)

    def conv3x3(pad_ref, w_ref, h_out):
        # pad_ref: (h_out+2, W+2, C) bf16, zero-padded.  One lane concat of
        # the 3 dx shifts, then 3 accumulated matmuls (K=3C) re-using free
        # leading-dim dy slices of it (per-dy form keeps the im2col
        # intermediate at ~3x the activation tile instead of 9x).
        cols = jnp.concatenate([pad_ref[:, dx:dx + W, :] for dx in range(3)],
                               axis=-1)                       # (h_out+2, W, 3C)
        acc = jnp.zeros((h_out * W, C), jnp.float32)
        for dy in range(3):
            lhs = cols[dy:dy + h_out].reshape(h_out * W, 3 * C)
            acc = acc + jnp.dot(lhs, w_ref[dy * 3 * C:(dy + 1) * 3 * C, :],
                                preferred_element_type=jnp.float32)
        return acc                                            # (h_out*W, C) f32

    # conv1 -> bn1 -> relu1 over TH+2 rows (includes the 1-row halo conv2 needs)
    z1 = conv3x3(xpad, w1_ref, TH + 2) * p_ref[0][None, :] + p_ref[1][None, :]
    out1 = jnp.maximum(z1, 0.0)
    mpad[:, 1:W + 1, :] = out1.reshape(TH + 2, W, C).astype(jnp.bfloat16)

    @pl.when(r == 0)            # mid row -1 does not exist -> zero padding
    def _():
        mpad[0:1, :, :] = jnp.zeros((1, W + 2, C), jnp.bfloat16)

    @pl.when(r == R - 1)        # mid row H does not exist -> zero padding
    def _():
        mpad[TH + 1:TH + 2, :, :] = jnp.zeros((1, W + 2, C), jnp.bfloat16)

    # conv2 -> bn2 -> residual add -> relu2 (elementwise path kept in f32)
    z2 = conv3x3(mpad, w2_ref, TH) * p_ref[2][None, :] + p_ref[3][None, :]
    out = jnp.maximum(z2.reshape(TH, W, C) + xc_ref[0], 0.0)
    # TODO(synk): for C < 128 a lane-dense (TH, W*C) output slab would avoid
    # masked stores; kept channel-minor here to avoid an in-kernel relayout.
    out_ref[0] = out.astype(out_ref.dtype)


def basic_block(x_nhwc, w1_hwio, w2_hwio, scale1, shift1, scale2, shift2,
                *, row_tile=None):
    """x: (N,H,W,C) f32; w*: (3,3,Cin,Cout) HWIO f32; scale/shift: folded BN."""
    N, H, W, C = x_nhwc.shape
    if row_tile is None:
        cands = [t for t in range(2, min(H, 64) + 1, 2) if H % t == 0]
        row_tile = max(cands) if cands else H
    TH = row_tile
    assert TH >= 2 and TH % 2 == 0 and H % TH == 0, "need even row tile dividing H"
    R = H // TH

    # (3,3,Cin,Cout) -> (9C,C) with row order (dy, dx, cin); bf16 for the MXU.
    # BN scale/shift stay f32 and are applied to the f32 matmul output.
    w1f = w1_hwio.reshape(9 * C, C).astype(jnp.bfloat16)
    w2f = w2_hwio.reshape(9 * C, C).astype(jnp.bfloat16)
    params = jnp.stack([scale1, shift1, scale2, shift2], 0).astype(jnp.float32)

    # Clamped halo-row index maps (block size 2 along H -> block = 2 rows).
    halo_top = lambda n, r: (n, jnp.maximum(r * (TH // 2) - 1, 0), 0, 0)
    halo_bot = lambda n, r: (n, jnp.minimum((r + 1) * (TH // 2), H // 2 - 1), 0, 0)

    # TODO(synk): single-buffer the grid-invariant w1f/w2f/params blocks and
    # move activations to bf16 at the HBM boundary for large-C configurations.
    return pl.pallas_call(
        basic_block_kernel,
        out_shape=jax.ShapeDtypeStruct((N, H, W, C), jnp.float32),
        grid_spec=pltpu.PrefetchScalarGridSpec(
            num_scalar_prefetch=0,
            grid=(N, R),
            in_specs=[
                pl.BlockSpec((1, TH, W, C), lambda n, r: (n, r, 0, 0)),
                pl.BlockSpec((1, 2, W, C), halo_top),
                pl.BlockSpec((1, 2, W, C), halo_bot),
                pl.BlockSpec((9 * C, C), lambda n, r: (0, 0)),
                pl.BlockSpec((9 * C, C), lambda n, r: (0, 0)),
                pl.BlockSpec((4, C), lambda n, r: (0, 0)),
            ],
            out_specs=pl.BlockSpec((1, TH, W, C), lambda n, r: (n, r, 0, 0)),
            scratch_shapes=[
                pltpu.VMEM((TH + 4, W + 2, C), jnp.bfloat16),
                pltpu.VMEM((TH + 2, W + 2, C), jnp.bfloat16),
            ],
        ),
        compiler_params=pltpu.CompilerParams(
            dimension_semantics=("parallel", "parallel"),
            vmem_limit_bytes=32 * 1024 * 1024,
        ),
    )(x_nhwc, x_nhwc, x_nhwc, w1f, w2f, params)


def reference_basic_block(x_nhwc, w1, w2, g1, b1, m1, v1, g2, b2, m2, v2, eps):
    dn = ('NHWC', 'HWIO', 'NHWC')
    out = lax.conv_general_dilated(x_nhwc, w1, (1, 1), 'SAME',
                                   dimension_numbers=dn)
    out = (out - m1) / jnp.sqrt(v1 + eps) * g1 + b1
    out = jnp.maximum(out, 0.0)
    out = lax.conv_general_dilated(out, w2, (1, 1), 'SAME',
                                   dimension_numbers=dn)
    out = (out - m2) / jnp.sqrt(v2 + eps) * g2 + b2
    out = out + x_nhwc
    return jnp.maximum(out, 0.0)


if __name__ == "__main__":
    # Small shapes: inplanes = planes = 4, stride=1, downsample=None.
    N, C, H, W = 2, 4, 16, 16
    eps = 1e-5

    key = jax.random.PRNGKey(0)
    kx, kw1, kw2 = jax.random.split(key, 3)

    # PyTorch x is NCHW; build it then transpose to NHWC for the kernel.
    x_nchw = jax.random.normal(kx, (N, C, H, W), jnp.float32)
    x_nhwc = jnp.transpose(x_nchw, (0, 2, 3, 1))

    # Conv weights: PyTorch layout (Cout, Cin, 3, 3) -> HWIO (3, 3, Cin, Cout).
    w1_oihw = 0.1 * jax.random.normal(kw1, (C, C, 3, 3), jnp.float32)
    w2_oihw = 0.1 * jax.random.normal(kw2, (C, C, 3, 3), jnp.float32)
    w1 = jnp.transpose(w1_oihw, (2, 3, 1, 0))
    w2 = jnp.transpose(w2_oihw, (2, 3, 1, 0))

    # Deterministic BatchNorm parameters (inference / running stats).
    gamma1 = jnp.linspace(0.8, 1.2, C, dtype=jnp.float32)
    beta1 = jnp.linspace(-0.1, 0.1, C, dtype=jnp.float32)
    mean1 = jnp.linspace(-0.05, 0.05, C, dtype=jnp.float32)
    var1 = jnp.linspace(0.9, 1.1, C, dtype=jnp.float32)
    gamma2 = jnp.linspace(1.1, 0.9, C, dtype=jnp.float32)
    beta2 = jnp.linspace(0.05, -0.05, C, dtype=jnp.float32)
    mean2 = jnp.linspace(0.02, -0.02, C, dtype=jnp.float32)
    var2 = jnp.linspace(1.05, 0.95, C, dtype=jnp.float32)

    # Fold BN into per-channel scale/shift; applied in-kernel on f32 results.
    scale1 = gamma1 / jnp.sqrt(var1 + eps)
    shift1 = beta1 - mean1 * scale1
    scale2 = gamma2 / jnp.sqrt(var2 + eps)
    shift2 = beta2 - mean2 * scale2

    # row_tile=8 -> grid (N=2, R=2): exercises the halo stitching path.
    out = basic_block(x_nhwc, w1, w2, scale1, shift1, scale2, shift2,
                      row_tile=8)
    out = jax.block_until_ready(out)

    ref = reference_basic_block(x_nhwc, w1, w2, gamma1, beta1, mean1, var1,
                                gamma2, beta2, mean2, var2, eps)
    assert out.shape == (N, H, W, C)
    # bf16 matmul operands (f32 accumulation) -> loosened tolerance vs f32 ref.
    assert jnp.allclose(out, ref, atol=5e-2, rtol=5e-2), "mismatch vs reference"

    print("KERNEL_OK")
</pallas_src>

<mosaic_0001>
module attributes {stable_mosaic.version = 11 : i64} {
  func.func @basic_block_kernel(%arg0: i32, %arg1: i32, %arg2: memref<1x8x16x4xf32, #tpu.memory_space<vmem>>, %arg3: memref<1x2x16x4xf32, #tpu.memory_space<vmem>>, %arg4: memref<1x2x16x4xf32, #tpu.memory_space<vmem>>, %arg5: memref<36x4xbf16, #tpu.memory_space<vmem>>, %arg6: memref<36x4xbf16, #tpu.memory_space<vmem>>, %arg7: memref<4x4xf32, #tpu.memory_space<vmem>>, %arg8: memref<1x8x16x4xf32, #tpu.memory_space<vmem>>, %arg9: memref<12x18x4xbf16, #tpu.memory_space<vmem>>, %arg10: memref<10x18x4xbf16, #tpu.memory_space<vmem>>) attributes {dimension_semantics = [#tpu.dimension_semantics<parallel>, #tpu.dimension_semantics<parallel>], iteration_bounds = array<i64: 2, 2>, scalar_prefetch = 0 : i64, scratch_operands = 2 : i64, tpu.core_type = #tpu.core_type<tc>, window_params = [{transform_indices = @transform_0, window_bounds = array<i64: 1, 8, 16, 4>}, {transform_indices = @transform_1, window_bounds = array<i64: 1, 2, 16, 4>}, {transform_indices = @transform_2, window_bounds = array<i64: 1, 2, 16, 4>}, {pipeline_mode = #tpu.pipeline_mode<synchronous>, transform_indices = @transform_3, window_bounds = array<i64: 36, 4>}, {pipeline_mode = #tpu.pipeline_mode<synchronous>, transform_indices = @transform_4, window_bounds = array<i64: 36, 4>}, {pipeline_mode = #tpu.pipeline_mode<synchronous>, transform_indices = @transform_5, window_bounds = array<i64: 4, 4>}, {transform_indices = @transform_6, window_bounds = array<i64: 1, 8, 16, 4>}]} {
    %cst = arith.constant 0.000000e+00 : bf16
    %0 = vector.broadcast %cst : bf16 to vector<12x1x4xbf16>
    %c0 = arith.constant 0 : index
    %c0_0 = arith.constant 0 : index
    %c0_1 = arith.constant 0 : index
    %1 = vector.load %arg9[%c0, %c0_0, %c0_1] : memref<12x18x4xbf16, #tpu.memory_space<vmem>>, vector<12x1x4xbf16>
    tpu.vector_store %arg9[%c0, %c0_0, %c0_1], %0 {strides = array<i32>} : memref<12x18x4xbf16, #tpu.memory_space<vmem>>, vector<12x1x4xbf16>,
    %cst_2 = arith.constant 0.000000e+00 : bf16
    %2 = vector.broadcast %cst_2 : bf16 to vector<12x1x4xbf16>
    %c0_3 = arith.constant 0 : index
    %c17 = arith.constant 17 : index
    %c0_4 = arith.constant 0 : index
    %3 = vector.load %arg9[%c0_3, %c17, %c0_4] : memref<12x18x4xbf16, #tpu.memory_space<vmem>>, vector<12x1x4xbf16>
    tpu.vector_store %arg9[%c0_3, %c17, %c0_4], %2 {strides = array<i32>} : memref<12x18x4xbf16, #tpu.memory_space<vmem>>, vector<12x1x4xbf16>,
    %cst_5 = arith.constant 0.000000e+00 : bf16
    %4 = vector.broadcast %cst_5 : bf16 to vector<10x1x4xbf16>
    %c0_6 = arith.constant 0 : index
    %c0_7 = arith.constant 0 : index
    %c0_8 = arith.constant 0 : index
    %5 = vector.load %arg10[%c0_6, %c0_7, %c0_8] : memref<10x18x4xbf16, #tpu.memory_space<vmem>>, vector<10x1x4xbf16>
    tpu.vector_store %arg10[%c0_6, %c0_7, %c0_8], %4 {strides = array<i32>} : memref<10x18x4xbf16, #tpu.memory_space<vmem>>, vector<10x1x4xbf16>,
    %cst_9 = arith.constant 0.000000e+00 : bf16
    %6 = vector.broadcast %cst_9 : bf16 to vector<10x1x4xbf16>
    %c0_10 = arith.constant 0 : index
    %c17_11 = arith.constant 17 : index
    %c0_12 = arith.constant 0 : index
    %7 = vector.load %arg10[%c0_10, %c17_11, %c0_12] : memref<10x18x4xbf16, #tpu.memory_space<vmem>>, vector<10x1x4xbf16>
    tpu.vector_store %arg10[%c0_10, %c17_11, %c0_12], %6 {strides = array<i32>} : memref<10x18x4xbf16, #tpu.memory_space<vmem>>, vector<10x1x4xbf16>,
    %c0_13 = arith.constant 0 : index
    %c0_14 = arith.constant 0 : index
    %c0_15 = arith.constant 0 : index
    %c0_16 = arith.constant 0 : index
    %8 = vector.load %arg3[%c0_13, %c0_14, %c0_15, %c0_16] : memref<1x2x16x4xf32, #tpu.memory_space<vmem>>, vector<1x2x16x4xf32>
    %9 = vector.shape_cast %8 : vector<1x2x16x4xf32> to vector<2x16x4xf32>
    %10 = arith.truncf %9 : vector<2x16x4xf32> to vector<2x16x4xbf16>
    %c0_17 = arith.constant 0 : index
    %c1 = arith.constant 1 : index
    %c0_18 = arith.constant 0 : index
    %11 = vector.load %arg9[%c0_17, %c1, %c0_18] : memref<12x18x4xbf16, #tpu.memory_space<vmem>>, vector<2x16x4xbf16>
    tpu.vector_store %arg9[%c0_17, %c1, %c0_18], %10 {strides = array<i32>} : memref<12x18x4xbf16, #tpu.memory_space<vmem>>, vector<2x16x4xbf16>,
    %c0_19 = arith.constant 0 : index
    %c0_20 = arith.constant 0 : index
    %c0_21 = arith.constant 0 : index
    %c0_22 = arith.constant 0 : index
    %12 = vector.load %arg2[%c0_19, %c0_20, %c0_21, %c0_22] : memref<1x8x16x4xf32, #tpu.memory_space<vmem>>, vector<1x8x16x4xf32>
    %13 = vector.shape_cast %12 : vector<1x8x16x4xf32> to vector<8x16x4xf32>
    %14 = arith.truncf %13 : vector<8x16x4xf32> to vector<8x16x4xbf16>
    %c2 = arith.constant 2 : index
    %c1_23 = arith.constant 1 : index
    %c0_24 = arith.constant 0 : index
    %15 = vector.load %arg9[%c2, %c1_23, %c0_24] : memref<12x18x4xbf16, #tpu.memory_space<vmem>>, vector<8x16x4xbf16>
    tpu.vector_store %arg9[%c2, %c1_23, %c0_24], %14 {strides = array<i32>} : memref<12x18x4xbf16, #tpu.memory_space<vmem>>, vector<8x16x4xbf16>,
    %c0_25 = arith.constant 0 : index
    %c0_26 = arith.constant 0 : index
    %c0_27 = arith.constant 0 : index
    %c0_28 = arith.constant 0 : index
    %16 = vector.load %arg4[%c0_25, %c0_26, %c0_27, %c0_28] : memref<1x2x16x4xf32, #tpu.memory_space<vmem>>, vector<1x2x16x4xf32>
    %17 = vector.shape_cast %16 : vector<1x2x16x4xf32> to vector<2x16x4xf32>
    %18 = arith.truncf %17 : vector<2x16x4xf32> to vector<2x16x4xbf16>
    %c10 = arith.constant 10 : index
    %c1_29 = arith.constant 1 : index
    %c0_30 = arith.constant 0 : index
    %19 = vector.load %arg9[%c10, %c1_29, %c0_30] : memref<12x18x4xbf16, #tpu.memory_space<vmem>>, vector<2x16x4xbf16>
    tpu.vector_store %arg9[%c10, %c1_29, %c0_30], %18 {strides = array<i32>} : memref<12x18x4xbf16, #tpu.memory_space<vmem>>, vector<2x16x4xbf16>,
    %c0_i32 = arith.constant 0 : i32
    %20 = arith.cmpi eq, %arg1, %c0_i32 : i32
    %21 = arith.extui %20 : i1 to i32
    %c0_i32_31 = arith.constant 0 : i32
    %22 = arith.cmpi ne, %21, %c0_i32_31 : i32
    scf.if %22 {
      %cst_93 = arith.constant 0.000000e+00 : bf16
      %106 = vector.broadcast %cst_93 : bf16 to vector<2x18x4xbf16>
      %c0_94 = arith.constant 0 : index
      %c0_95 = arith.constant 0 : index
      %c0_96 = arith.constant 0 : index
      %107 = vector.load %arg9[%c0_94, %c0_95, %c0_96] : memref<12x18x4xbf16, #tpu.memory_space<vmem>>, vector<2x18x4xbf16>
      tpu.vector_store %arg9[%c0_94, %c0_95, %c0_96], %106 {strides = array<i32>} : memref<12x18x4xbf16, #tpu.memory_space<vmem>>, vector<2x18x4xbf16>,
    } else {
    }
    %c1_i32 = arith.constant 1 : i32
    %23 = arith.cmpi eq, %arg1, %c1_i32 : i32
    %24 = arith.extui %23 : i1 to i32
    %c0_i32_32 = arith.constant 0 : i32
    %25 = arith.cmpi ne, %24, %c0_i32_32 : i32
    scf.if %25 {
      %cst_93 = arith.constant 0.000000e+00 : bf16
      %106 = vector.broadcast %cst_93 : bf16 to vector<2x18x4xbf16>
      %c10_94 = arith.constant 10 : index
      %c0_95 = arith.constant 0 : index
      %c0_96 = arith.constant 0 : index
      %107 = vector.load %arg9[%c10_94, %c0_95, %c0_96] : memref<12x18x4xbf16, #tpu.memory_space<vmem>>, vector<2x18x4xbf16>
      tpu.vector_store %arg9[%c10_94, %c0_95, %c0_96], %106 {strides = array<i32>} : memref<12x18x4xbf16, #tpu.memory_space<vmem>>, vector<2x18x4xbf16>,
    } else {
    }
    %c0_33 = arith.constant 0 : index
    %c0_34 = arith.constant 0 : index
    %c0_35 = arith.constant 0 : index
    %26 = vector.load %arg9[%c0_33, %c0_34, %c0_35] : memref<12x18x4xbf16, #tpu.memory_space<vmem>>, vector<12x16x4xbf16>
    %c0_36 = arith.constant 0 : index
    %c1_37 = arith.constant 1 : index
    %c0_38 = arith.constant 0 : index
    %27 = vector.load %arg9[%c0_36, %c1_37, %c0_38] : memref<12x18x4xbf16, #tpu.memory_space<vmem>>, vector<12x16x4xbf16>
    %c0_39 = arith.constant 0 : index
    %c2_40 = arith.constant 2 : index
    %c0_41 = arith.constant 0 : index
    %28 = vector.load %arg9[%c0_39, %c2_40, %c0_41] : memref<12x18x4xbf16, #tpu.memory_space<vmem>>, vector<12x16x4xbf16>
    %29 = tpu.concatenate %26, %27, %28 in 2 : vector<12x16x4xbf16>, vector<12x16x4xbf16>, vector<12x16x4xbf16> -> vector<12x16x12xbf16>
    %cst_42 = arith.constant 0.000000e+00 : f32
    %30 = vector.broadcast %cst_42 : f32 to vector<160x4xf32>
    %31 = vector.extract_strided_slice %29 {offsets = [0, 0, 0], sizes = [10, 16, 12], strides = [1, 1, 1]} : vector<12x16x12xbf16> to vector<10x16x12xbf16>
    %32 = vector.shape_cast %31 : vector<10x16x12xbf16> to vector<160x12xbf16>
    %c0_43 = arith.constant 0 : index
    %c0_44 = arith.constant 0 : index
    %33 = vector.load %arg5[%c0_43, %c0_44] : memref<36x4xbf16, #tpu.memory_space<vmem>>, vector<12x4xbf16>
    %cst_45 = arith.constant dense<0.000000e+00> : vector<160x4xf32>
    %34 = tpu.matmul %32, %33, %cst_45 {dimension_numbers = #tpu.dot_dimension_numbers<[1], [0], [0], [1], [0, 0, 1, 1], [], []>} : vector<160x12xbf16>, vector<12x4xbf16>, vector<160x4xf32> -> vector<160x4xf32>
    %35 = arith.addf %30, %34 : vector<160x4xf32>
    %36 = vector.extract_strided_slice %29 {offsets = [1, 0, 0], sizes = [10, 16, 12], strides = [1, 1, 1]} : vector<12x16x12xbf16> to vector<10x16x12xbf16>
    %37 = vector.shape_cast %36 : vector<10x16x12xbf16> to vector<160x12xbf16>
    %c12 = arith.constant 12 : index
    %c0_46 = arith.constant 0 : index
    %38 = vector.load %arg5[%c12, %c0_46] : memref<36x4xbf16, #tpu.memory_space<vmem>>, vector<12x4xbf16>
    %cst_47 = arith.constant dense<0.000000e+00> : vector<160x4xf32>
    %39 = tpu.matmul %37, %38, %cst_47 {dimension_numbers = #tpu.dot_dimension_numbers<[1], [0], [0], [1], [0, 0, 1, 1], [], []>} : vector<160x12xbf16>, vector<12x4xbf16>, vector<160x4xf32> -> vector<160x4xf32>
    %40 = arith.addf %35, %39 : vector<160x4xf32>
    %41 = vector.extract_strided_slice %29 {offsets = [2, 0, 0], sizes = [10, 16, 12], strides = [1, 1, 1]} : vector<12x16x12xbf16> to vector<10x16x12xbf16>
    %42 = vector.shape_cast %41 : vector<10x16x12xbf16> to vector<160x12xbf16>
    %c24 = arith.constant 24 : index
    %c0_48 = arith.constant 0 : index
    %43 = vector.load %arg5[%c24, %c0_48] : memref<36x4xbf16, #tpu.memory_space<vmem>>, vector<12x4xbf16>
    %cst_49 = arith.constant dense<0.000000e+00> : vector<160x4xf32>
    %44 = tpu.matmul %42, %43, %cst_49 {dimension_numbers = #tpu.dot_dimension_numbers<[1], [0], [0], [1], [0, 0, 1, 1], [], []>} : vector<160x12xbf16>, vector<12x4xbf16>, vector<160x4xf32> -> vector<160x4xf32>
    %45 = arith.addf %40, %44 : vector<160x4xf32>
    %c0_50 = arith.constant 0 : index
    %c0_51 = arith.constant 0 : index
    %46 = vector.load %arg7[%c0_50, %c0_51] : memref<4x4xf32, #tpu.memory_space<vmem>>, vector<1x4xf32>
    %47 = vector.shape_cast %46 : vector<1x4xf32> to vector<4xf32>
    %48 = vector.shape_cast %47 : vector<4xf32> to vector<1x4xf32>
    %49 = vector.broadcast %48 : vector<1x4xf32> to vector<160x4xf32>
    %50 = arith.mulf %45, %49 : vector<160x4xf32>
    %c1_52 = arith.constant 1 : index
    %c0_53 = arith.constant 0 : index
    %51 = vector.load %arg7[%c1_52, %c0_53] : memref<4x4xf32, #tpu.memory_space<vmem>>, vector<1x4xf32>
    %52 = vector.shape_cast %51 : vector<1x4xf32> to vector<4xf32>
    %53 = vector.shape_cast %52 : vector<4xf32> to vector<1x4xf32>
    %54 = vector.broadcast %53 : vector<1x4xf32> to vector<160x4xf32>
    %55 = arith.addf %50, %54 : vector<160x4xf32>
    %cst_54 = arith.constant 0.000000e+00 : f32
    %56 = vector.broadcast %cst_54 : f32 to vector<160x4xf32>
    %57 = arith.maximumf %55, %56 : vector<160x4xf32>
    %58 = vector.shape_cast %57 : vector<160x4xf32> to vector<10x16x4xf32>
    %59 = arith.truncf %58 : vector<10x16x4xf32> to vector<10x16x4xbf16>
    %c0_55 = arith.constant 0 : index
    %c1_56 = arith.constant 1 : index
    %c0_57 = arith.constant 0 : index
    %60 = vector.load %arg10[%c0_55, %c1_56, %c0_57] : memref<10x18x4xbf16, #tpu.memory_space<vmem>>, vector<10x16x4xbf16>
    tpu.vector_store %arg10[%c0_55, %c1_56, %c0_57], %59 {strides = array<i32>} : memref<10x18x4xbf16, #tpu.memory_space<vmem>>, vector<10x16x4xbf16>,
    %c0_i32_58 = arith.constant 0 : i32
    %61 = arith.cmpi eq, %arg1, %c0_i32_58 : i32
    %62 = arith.extui %61 : i1 to i32
    %c0_i32_59 = arith.constant 0 : i32
    %63 = arith.cmpi ne, %62, %c0_i32_59 : i32
    scf.if %63 {
      %cst_93 = arith.constant 0.000000e+00 : bf16
      %106 = vector.broadcast %cst_93 : bf16 to vector<1x18x4xbf16>
      %c0_94 = arith.constant 0 : index
      %c0_95 = arith.constant 0 : index
      %c0_96 = arith.constant 0 : index
      %107 = vector.load %arg10[%c0_94, %c0_95, %c0_96] : memref<10x18x4xbf16, #tpu.memory_space<vmem>>, vector<1x18x4xbf16>
      tpu.vector_store %arg10[%c0_94, %c0_95, %c0_96], %106 {strides = array<i32>} : memref<10x18x4xbf16, #tpu.memory_space<vmem>>, vector<1x18x4xbf16>,
    } else {
    }
    %c1_i32_60 = arith.constant 1 : i32
    %64 = arith.cmpi eq, %arg1, %c1_i32_60 : i32
    %65 = arith.extui %64 : i1 to i32
    %c0_i32_61 = arith.constant 0 : i32
    %66 = arith.cmpi ne, %65, %c0_i32_61 : i32
    scf.if %66 {
      %cst_93 = arith.constant 0.000000e+00 : bf16
      %106 = vector.broadcast %cst_93 : bf16 to vector<1x18x4xbf16>
      %c9 = arith.constant 9 : index
      %c0_94 = arith.constant 0 : index
      %c0_95 = arith.constant 0 : index
      %107 = vector.load %arg10[%c9, %c0_94, %c0_95] : memref<10x18x4xbf16, #tpu.memory_space<vmem>>, vector<1x18x4xbf16>
      tpu.vector_store %arg10[%c9, %c0_94, %c0_95], %106 {strides = array<i32>} : memref<10x18x4xbf16, #tpu.memory_space<vmem>>, vector<1x18x4xbf16>,
    } else {
    }
    %c0_62 = arith.constant 0 : index
    %c0_63 = arith.constant 0 : index
    %c0_64 = arith.constant 0 : index
    %67 = vector.load %arg10[%c0_62, %c0_63, %c0_64] : memref<10x18x4xbf16, #tpu.memory_space<vmem>>, vector<10x16x4xbf16>
    %c0_65 = arith.constant 0 : index
    %c1_66 = arith.constant 1 : index
    %c0_67 = arith.constant 0 : index
    %68 = vector.load %arg10[%c0_65, %c1_66, %c0_67] : memref<10x18x4xbf16, #tpu.memory_space<vmem>>, vector<10x16x4xbf16>
    %c0_68 = arith.constant 0 : index
    %c2_69 = arith.constant 2 : index
    %c0_70 = arith.constant 0 : index
    %69 = vector.load %arg10[%c0_68, %c2_69, %c0_70] : memref<10x18x4xbf16, #tpu.memory_space<vmem>>, vector<10x16x4xbf16>
    %70 = tpu.concatenate %67, %68, %69 in 2 : vector<10x16x4xbf16>, vector<10x16x4xbf16>, vector<10x16x4xbf16> -> vector<10x16x12xbf16>
    %cst_71 = arith.constant 0.000000e+00 : f32
    %71 = vector.broadcast %cst_71 : f32 to vector<128x4xf32>
    %72 = vector.extract_strided_slice %70 {offsets = [0, 0, 0], sizes = [8, 16, 12], strides = [1, 1, 1]} : vector<10x16x12xbf16> to vector<8x16x12xbf16>
    %73 = vector.shape_cast %72 : vector<8x16x12xbf16> to vector<128x12xbf16>
    %c0_72 = arith.constant 0 : index
    %c0_73 = arith.constant 0 : index
    %74 = vector.load %arg6[%c0_72, %c0_73] : memref<36x4xbf16, #tpu.memory_space<vmem>>, vector<12x4xbf16>
    %cst_74 = arith.constant dense<0.000000e+00> : vector<128x4xf32>
    %75 = tpu.matmul %73, %74, %cst_74 {dimension_numbers = #tpu.dot_dimension_numbers<[1], [0], [0], [1], [0, 0, 1, 1], [], []>} : vector<128x12xbf16>, vector<12x4xbf16>, vector<128x4xf32> -> vector<128x4xf32>
    %76 = arith.addf %71, %75 : vector<128x4xf32>
    %77 = vector.extract_strided_slice %70 {offsets = [1, 0, 0], sizes = [8, 16, 12], strides = [1, 1, 1]} : vector<10x16x12xbf16> to vector<8x16x12xbf16>
    %78 = vector.shape_cast %77 : vector<8x16x12xbf16> to vector<128x12xbf16>
    %c12_75 = arith.constant 12 : index
    %c0_76 = arith.constant 0 : index
    %79 = vector.load %arg6[%c12_75, %c0_76] : memref<36x4xbf16, #tpu.memory_space<vmem>>, vector<12x4xbf16>
    %cst_77 = arith.constant dense<0.000000e+00> : vector<128x4xf32>
    %80 = tpu.matmul %78, %79, %cst_77 {dimension_numbers = #tpu.dot_dimension_numbers<[1], [0], [0], [1], [0, 0, 1, 1], [], []>} : vector<128x12xbf16>, vector<12x4xbf16>, vector<128x4xf32> -> vector<128x4xf32>
    %81 = arith.addf %76, %80 : vector<128x4xf32>
    %82 = vector.extract_strided_slice %70 {offsets = [2, 0, 0], sizes = [8, 16, 12], strides = [1, 1, 1]} : vector<10x16x12xbf16> to vector<8x16x12xbf16>
    %83 = vector.shape_cast %82 : vector<8x16x12xbf16> to vector<128x12xbf16>
    %c24_78 = arith.constant 24 : index
    %c0_79 = arith.constant 0 : index
    %84 = vector.load %arg6[%c24_78, %c0_79] : memref<36x4xbf16, #tpu.memory_space<vmem>>, vector<12x4xbf16>
    %cst_80 = arith.constant dense<0.000000e+00> : vector<128x4xf32>
    %85 = tpu.matmul %83, %84, %cst_80 {dimension_numbers = #tpu.dot_dimension_numbers<[1], [0], [0], [1], [0, 0, 1, 1], [], []>} : vector<128x12xbf16>, vector<12x4xbf16>, vector<128x4xf32> -> vector<128x4xf32>
    %86 = arith.addf %81, %85 : vector<128x4xf32>
    %c2_81 = arith.constant 2 : index
    %c0_82 = arith.constant 0 : index
    %87 = vector.load %arg7[%c2_81, %c0_82] : memref<4x4xf32, #tpu.memory_space<vmem>>, vector<1x4xf32>
    %88 = vector.shape_cast %87 : vector<1x4xf32> to vector<4xf32>
    %89 = vector.shape_cast %88 : vector<4xf32> to vector<1x4xf32>
    %90 = vector.broadcast %89 : vector<1x4xf32> to vector<128x4xf32>
    %91 = arith.mulf %86, %90 : vector<128x4xf32>
    %c3 = arith.constant 3 : index
    %c0_83 = arith.constant 0 : index
    %92 = vector.load %arg7[%c3, %c0_83] : memref<4x4xf32, #tpu.memory_space<vmem>>, vector<1x4xf32>
    %93 = vector.shape_cast %92 : vector<1x4xf32> to vector<4xf32>
    %94 = vector.shape_cast %93 : vector<4xf32> to vector<1x4xf32>
    %95 = vector.broadcast %94 : vector<1x4xf32> to vector<128x4xf32>
    %96 = arith.addf %91, %95 : vector<128x4xf32>
    %97 = vector.shape_cast %96 : vector<128x4xf32> to vector<8x16x4xf32>
    %c0_84 = arith.constant 0 : index
    %c0_85 = arith.constant 0 : index
    %c0_86 = arith.constant 0 : index
    %c0_87 = arith.constant 0 : index
    %98 = vector.load %arg2[%c0_84, %c0_85, %c0_86, %c0_87] : memref<1x8x16x4xf32, #tpu.memory_space<vmem>>, vector<1x8x16x4xf32>
    %99 = vector.shape_cast %98 : vector<1x8x16x4xf32> to vector<8x16x4xf32>
    %100 = arith.addf %97, %99 : vector<8x16x4xf32>
    %cst_88 = arith.constant 0.000000e+00 : f32
    %101 = vector.broadcast %cst_88 : f32 to vector<8x16x4xf32>
    %102 = arith.maximumf %100, %101 : vector<8x16x4xf32>
    %c0_89 = arith.constant 0 : index
    %c0_90 = arith.constant 0 : index
    %c0_91 = arith.constant 0 : index
    %c0_92 = arith.constant 0 : index
    %103 = vector.load %arg8[%c0_89, %c0_90, %c0_91, %c0_92] : memref<1x8x16x4xf32, #tpu.memory_space<vmem>>, vector<1x8x16x4xf32>
    %104 = vector.shape_cast %103 : vector<1x8x16x4xf32> to vector<8x16x4xf32>
    %105 = vector.shape_cast %102 : vector<8x16x4xf32> to vector<1x8x16x4xf32>
    tpu.vector_store %arg8[%c0_89, %c0_90, %c0_91, %c0_92], %105 {strides = array<i32>} : memref<1x8x16x4xf32, #tpu.memory_space<vmem>>, vector<1x8x16x4xf32>,
    return
  }
  func.func @transform_0(%arg0: i32, %arg1: i32) -> (i32, i32, i32, i32) {
    %c0_i32 = arith.constant 0 : i32
    %c0_i32_0 = arith.constant 0 : i32
    %c0_i32_1 = arith.constant 0 : i32
    return %arg0, %arg1, %c0_i32, %c0_i32_0 : i32, i32, i32, i32
  }
  func.func @transform_1(%arg0: i32, %arg1: i32) -> (i32, i32, i32, i32) {
    %c4_i32 = arith.constant 4 : i32
    %0 = arith.muli %arg1, %c4_i32 : i32
    %c1_i32 = arith.constant 1 : i32
    %1 = arith.subi %0, %c1_i32 : i32
    %c0_i32 = arith.constant 0 : i32
    %2 = arith.maxsi %1, %c0_i32 : i32
    %c0_i32_0 = arith.constant 0 : i32
    %c0_i32_1 = arith.constant 0 : i32
    %c0_i32_2 = arith.constant 0 : i32
    return %arg0, %2, %c0_i32_0, %c0_i32_1 : i32, i32, i32, i32
  }
  func.func @transform_2(%arg0: i32, %arg1: i32) -> (i32, i32, i32, i32) {
    %c1_i32 = arith.constant 1 : i32
    %0 = arith.addi %arg1, %c1_i32 : i32
    %c4_i32 = arith.constant 4 : i32
    %1 = arith.muli %0, %c4_i32 : i32
    %c7_i32 = arith.constant 7 : i32
    %2 = arith.minsi %1, %c7_i32 : i32
    %c0_i32 = arith.constant 0 : i32
    %c0_i32_0 = arith.constant 0 : i32
    %c0_i32_1 = arith.constant 0 : i32
    return %arg0, %2, %c0_i32, %c0_i32_0 : i32, i32, i32, i32
  }
  func.func @transform_3(%arg0: i32, %arg1: i32) -> (i32, i32) {
    %c0_i32 = arith.constant 0 : i32
    %c0_i32_0 = arith.constant 0 : i32
    %c0_i32_1 = arith.constant 0 : i32
    return %c0_i32, %c0_i32_0 : i32, i32
  }
  func.func @transform_4(%arg0: i32, %arg1: i32) -> (i32, i32) {
    %c0_i32 = arith.constant 0 : i32
    %c0_i32_0 = arith.constant 0 : i32
    %c0_i32_1 = arith.constant 0 : i32
    return %c0_i32, %c0_i32_0 : i32, i32
  }
  func.func @transform_5(%arg0: i32, %arg1: i32) -> (i32, i32) {
    %c0_i32 = arith.constant 0 : i32
    %c0_i32_0 = arith.constant 0 : i32
    %c0_i32_1 = arith.constant 0 : i32
    return %c0_i32, %c0_i32_0 : i32, i32
  }
  func.func @transform_6(%arg0: i32, %arg1: i32) -> (i32, i32, i32, i32) {
    %c0_i32 = arith.constant 0 : i32
    %c0_i32_0 = arith.constant 0 : i32
    %c0_i32_1 = arith.constant 0 : i32
    return %arg0, %arg1, %c0_i32, %c0_i32_0 : i32, i32, i32, i32
  }
}

</mosaic_0001>

<llo_original>
// kernel: tpu_custom_call.1
$region0: #{tpu_custom_call.1}
  #allocation0 [shape = 'u32[]', space=smem, size = 0x4, offset = 0x4, fixed_abs, tag = 'smem constant byte address 0x4 - core index']
  #allocation1 [shape = 'u32[144,128]{1,0:T(1,128)}', space=vmem, size = 0x12000, scoped, tag = 'internal scratch']
  #allocation2 [shape = 'bf16[12,18,4]{2,1,0:T(8,128)(2,1)}', space=vmem, size = 0x12000, scoped, tag = 'scratch operand']
  #allocation3 [shape = 'bf16[10,18,4]{2,1,0:T(8,128)(2,1)}', space=vmem, size = 0xf000, scoped, tag = 'scratch operand']
  %s0 = inlined_call_operand.vmem [shape: f32[2,16,16,4], index: 0, kind: input, shape index: {}]
  %s1 = inlined_call_operand.vmem [shape: f32[2,16,16,4], index: 1, kind: input, shape index: {}]
  %s2 = inlined_call_operand.vmem [shape: f32[2,16,16,4], index: 2, kind: input, shape index: {}]
  %s3 = inlined_call_operand.vmem [shape: bf16[36,4], index: 3, kind: input, shape index: {}]
  %s4 = inlined_call_operand.vmem [shape: bf16[36,4], index: 4, kind: input, shape index: {}]
  %s5 = inlined_call_operand.vmem [shape: f32[4,4], index: 5, kind: input, shape index: {}]
  %s6 = inlined_call_operand.vmem [shape: f32[2,16,16,4], index: 6, kind: output, shape index: {}]
  %s7 = sld [smem:[#allocation0]]
  $region73: #{tpu_custom_call.1} parent=0
    _
  %s9 = ssub.s32 1, %s7
  %s10 = scalar_select 0, %s9, %s7
  loop: start=0, step=1, limit=6
  $region2: #{tpu_custom_call.1} parent=0 // loop_pre_header
    _
  $region3: #{tpu_custom_call.1} parent=0 // loop_header
    %s12 = sphi 0, %s16
    %p13 = scmp.ge.s32.totalorder %s12, 6
    %s19 = sphi 0, %s31
    %s20 = sphi 0, %s27
    %s21 = sphi 0, %s19
    %s22 = sphi 0, %s20
    %s23 = sphi 0, %s21
    %s24 = sphi 0, %s22
    %s36 = sphi 0, %s38
    %s39 = sphi 0, %s36
    %s40 = sphi 0, %s39
    %s56 = sphi 0, %s40
    %s72 = sphi 0, %s74
    %s75 = sphi 0, %s72
    %s76 = sphi 0, %s75
    %s92 = sphi 0, %s76
    %s108 = sphi 0, %s110
    %s111 = sphi 0, %s108
    %s112 = sphi 0, %s111
    %s128 = sphi 0, %s112
    %s132 = sphi 0, %s132
    %s134 = sphi 0, %s132
    %s135 = sphi 0, %s134
    %s149 = sphi 0, %s135
    %s153 = sphi 0, %s153
    %s155 = sphi 0, %s153
    %s156 = sphi 0, %s155
    %s170 = sphi 0, %s156
    %s174 = sphi 0, %s174
    %s176 = sphi 0, %s174
    %s177 = sphi 0, %s176
    %s191 = sphi 0, %s177
    %s199 = sphi 0, %s201
    %s202 = sphi 0, %s199
    %s203 = sphi 0, %s202
    %s219 = sphi 0, %s203
  $region4: #{tpu_custom_call.1} parent=0 // loop_header_branch
    %15 = sbr.rel (%p13) target = $region8
  $region5: #{tpu_custom_call.1} parent=0 // loop_body
    %s17 = ssub.s32 %s12, 1
    %s18 = ssub.s32 %s12, 2
    %s25 = sadd.s32 1, %s20
    %p26 = scmp.ge.s32.totalorder %s25, 2
    %s27 = scalar_select %p26, 0, %s25
    %s28 = sadd.s32 1, %s19
    %s29 = scalar_select %p26, %s28, %s19
    %p30 = scmp.ge.s32.totalorder %s29, 2
    %s31 = scalar_select %p30, 0, %s29
    %s32 = ssub.s32 %s19, %s31
    %s33 = ssub.s32 %s20, %s27
    %s34 = sor.u32 %s32, %s33
    %p35 = scmp.eq.s32.totalorder %s34, 0
    %s37 = sadd.s32 %s36, 1
    %s38 = scalar_select %p35, %s36, %s37
    %p41 = pneg %p35
    %p42 = scmp.eq.s32.totalorder %s12, 3
    %p43 = por %p41, %p42
    %p44 = scmp.ne.s32.totalorder %s36, %s39
    %p45 = scmp.eq.s32.totalorder %s12, 0
    %p46 = por %p44, %p45
    %p47 = scmp.ne.s32.totalorder %s36, %s39
    %p48 = scmp.eq.s32.totalorder %s17, 3
    %p49 = por %p47, %p48
    %p50 = scmp.ne.s32.totalorder %s39, %s40
    %p51 = scmp.eq.s32.totalorder %s17, 0
    %p52 = por %p50, %p51
    %p53 = scmp.ne.s32.totalorder %s39, %s40
    %p54 = scmp.eq.s32.totalorder %s18, 3
    %p55 = por %p53, %p54
    %p57 = scmp.ne.s32.totalorder %s40, %s56
    %p58 = scmp.eq.s32.totalorder %s18, 0
    %p59 = por %p57, %p58
    %s60 = smul.u32 %s20, 4
    %s61 = ssub.s32 %s60, 1
    %p62 = scmp.gt.s32.totalorder %s61, 0
    %s63 = scalar_select %p62, %s61, 0
    %s64 = smul.u32 %s27, 4
    %s65 = ssub.s32 %s64, 1
    %p66 = scmp.gt.s32.totalorder %s65, 0
    %s67 = scalar_select %p66, %s65, 0
    %s68 = ssub.s32 %s19, %s31
    %s69 = ssub.s32 %s63, %s67
    %s70 = sor.u32 %s68, %s69
    %p71 = scmp.eq.s32.totalorder %s70, 0
    %s73 = sadd.s32 %s72, 1
    %s74 = scalar_select %p71, %s72, %s73
    %p77 = pneg %p71
    %p78 = scmp.eq.s32.totalorder %s12, 3
    %p79 = por %p77, %p78
    %p80 = scmp.ne.s32.totalorder %s72, %s75
    %p81 = scmp.eq.s32.totalorder %s12, 0
    %p82 = por %p80, %p81
    %p83 = scmp.ne.s32.totalorder %s72, %s75
    %p84 = scmp.eq.s32.totalorder %s17, 3
    %p85 = por %p83, %p84
    %p86 = scmp.ne.s32.totalorder %s75, %s76
    %p87 = scmp.eq.s32.totalorder %s17, 0
    %p88 = por %p86, %p87
    %p89 = scmp.ne.s32.totalorder %s75, %s76
    %p90 = scmp.eq.s32.totalorder %s18, 3
    %p91 = por %p89, %p90
    %p93 = scmp.ne.s32.totalorder %s76, %s92
    %p94 = scmp.eq.s32.totalorder %s18, 0
    %p95 = por %p93, %p94
    %s96 = sadd.s32 %s20, 1
    %s97 = smul.u32 %s96, 4
    %p98 = scmp.lt.s32.totalorder %s97, 7
    %s99 = scalar_select %p98, %s97, 7
    %s100 = sadd.s32 %s27, 1
    %s101 = smul.u32 %s100, 4
    %p102 = scmp.lt.s32.totalorder %s101, 7
    %s103 = scalar_select %p102, %s101, 7
    %s104 = ssub.s32 %s19, %s31
    %s105 = ssub.s32 %s99, %s103
    %s106 = sor.u32 %s104, %s105
    %p107 = scmp.eq.s32.totalorder %s106, 0
    %s109 = sadd.s32 %s108, 1
    %s110 = scalar_select %p107, %s108, %s109
    %p113 = pneg %p107
    %p114 = scmp.eq.s32.totalorder %s12, 3
    %p115 = por %p113, %p114
    %p116 = scmp.ne.s32.totalorder %s108, %s111
    %p117 = scmp.eq.s32.totalorder %s12, 0
    %p118 = por %p116, %p117
    %p119 = scmp.ne.s32.totalorder %s108, %s111
    %p120 = scmp.eq.s32.totalorder %s17, 3
    %p121 = por %p119, %p120
    %p122 = scmp.ne.s32.totalorder %s111, %s112
    %p123 = scmp.eq.s32.totalorder %s17, 0
    %p124 = por %p122, %p123
    %p125 = scmp.ne.s32.totalorder %s111, %s112
    %p126 = scmp.eq.s32.totalorder %s18, 3
    %p127 = por %p125, %p126
    %p129 = scmp.ne.s32.totalorder %s112, %s128
    %p130 = scmp.eq.s32.totalorder %s18, 0
    %p131 = por %p129, %p130
    %s133 = sadd.s32 %s132, 1
    %p136 = scmp.eq.s32.totalorder %s12, 3
    %p137 = scmp.ne.s32.totalorder %s132, %s134
    %p138 = scmp.eq.s32.totalorder %s12, 0
    %p139 = por %p137, %p138
    %p140 = scmp.ne.s32.totalorder %s132, %s134
    %p141 = scmp.eq.s32.totalorder %s17, 3
    %p142 = por %p140, %p141
    %p143 = scmp.ne.s32.totalorder %s134, %s135
    %p144 = scmp.eq.s32.totalorder %s17, 0
    %p145 = por %p143, %p144
    %p146 = scmp.ne.s32.totalorder %s134, %s135
    %p147 = scmp.eq.s32.totalorder %s18, 3
    %p148 = por %p146, %p147
    %p150 = scmp.ne.s32.totalorder %s135, %s149
    %p151 = scmp.eq.s32.totalorder %s18, 0
    %p152 = por %p150, %p151
    %s154 = sadd.s32 %s153, 1
    %p157 = scmp.eq.s32.totalorder %s12, 3
    %p158 = scmp.ne.s32.totalorder %s153, %s155
    %p159 = scmp.eq.s32.totalorder %s12, 0
    %p160 = por %p158, %p159
    %p161 = scmp.ne.s32.totalorder %s153, %s155
    %p162 = scmp.eq.s32.totalorder %s17, 3
    %p163 = por %p161, %p162
    %p164 = scmp.ne.s32.totalorder %s155, %s156
    %p165 = scmp.eq.s32.totalorder %s17, 0
    %p166 = por %p164, %p165
    %p167 = scmp.ne.s32.totalorder %s155, %s156
    %p168 = scmp.eq.s32.totalorder %s18, 3
    %p169 = por %p167, %p168
    %p171 = scmp.ne.s32.totalorder %s156, %s170
    %p172 = scmp.eq.s32.totalorder %s18, 0
    %p173 = por %p171, %p172
    %s175 = sadd.s32 %s174, 1
    %p178 = scmp.eq.s32.totalorder %s12, 3
    %p179 = scmp.ne.s32.totalorder %s174, %s176
    %p180 = scmp.eq.s32.totalorder %s12, 0
    %p181 = por %p179, %p180
    %p182 = scmp.ne.s32.totalorder %s174, %s176
    %p183 = scmp.eq.s32.totalorder %s17, 3
    %p184 = por %p182, %p183
    %p185 = scmp.ne.s32.totalorder %s176, %s177
    %p186 = scmp.eq.s32.totalorder %s17, 0
    %p187 = por %p185, %p186
    %p188 = scmp.ne.s32.totalorder %s176, %s177
    %p189 = scmp.eq.s32.totalorder %s18, 3
    %p190 = por %p188, %p189
    %p192 = scmp.ne.s32.totalorder %s177, %s191
    %p193 = scmp.eq.s32.totalorder %s18, 0
    %p194 = por %p192, %p193
    %s195 = ssub.s32 %s19, %s31
    %s196 = ssub.s32 %s20, %s27
    %s197 = sor.u32 %s195, %s196
    %p198 = scmp.eq.s32.totalorder %s197, 0
    %s200 = sadd.s32 %s199, 1
    %s201 = scalar_select %p198, %s199, %s200
    %p204 = pneg %p198
    %p205 = scmp.eq.s32.totalorder %s12, 3
    %p206 = por %p204, %p205
    %p207 = scmp.ne.s32.totalorder %s199, %s202
    %p208 = scmp.eq.s32.totalorder %s12, 0
    %p209 = por %p207, %p208
    %p210 = scmp.ne.s32.totalorder %s199, %s202
    %p211 = scmp.eq.s32.totalorder %s17, 3
    %p212 = por %p210, %p211
    %p213 = scmp.ne.s32.totalorder %s202, %s203
    %p214 = scmp.eq.s32.totalorder %s17, 0
    %p215 = por %p213, %p214
    %p216 = scmp.ne.s32.totalorder %s202, %s203
    %p217 = scmp.eq.s32.totalorder %s18, 3
    %p218 = por %p216, %p217
    %p220 = scmp.ne.s32.totalorder %s203, %s219
    %p221 = scmp.eq.s32.totalorder %s18, 0
    %p222 = por %p220, %p221
    %p223 = scmp.le.s32.totalorder 1, %s12
    %p224 = scmp.lt.s32.totalorder %s12, 5
    %p225 = pnand %p223, %p224
    %p226 = pneg %p225
    // Predicated region
    $region9: #{tpu_custom_call.1} parent=5 // pred_check
      _
    $region10: #{tpu_custom_call.1} parent=5 // pred_check_branch
      %228 = sbr.rel (%p225) target = $region12
    $region11: #{tpu_custom_call.1} parent=5 // pred_region
      %s229 = ssub.s32 %s12, 1
      // Predicated region
      $region13: #{tpu_custom_call.1} parent=11 // pred_check
        %p230 = pneg %p145
      $region14: #{tpu_custom_call.1} parent=11 // pred_check_branch
        %232 = sbr.rel (%p230) target = $region16
      $region15: #{tpu_custom_call.1} parent=11 // pred_region
        _
      $region16: #{tpu_custom_call.1} parent=11 // pred_fallthru
        _
      // Predicated region
      $region17: #{tpu_custom_call.1} parent=11 // pred_check
        %p233 = pneg %p166
      $region18: #{tpu_custom_call.1} parent=11 // pred_check_branch
        %235 = sbr.rel (%p233) target = $region20
      $region19: #{tpu_custom_call.1} parent=11 // pred_region
        _
      $region20: #{tpu_custom_call.1} parent=11 // pred_fallthru
        _
      // Predicated region
      $region21: #{tpu_custom_call.1} parent=11 // pred_check
        %p236 = pneg %p187
      $region22: #{tpu_custom_call.1} parent=11 // pred_check_branch
        %238 = sbr.rel (%p236) target = $region24
      $region23: #{tpu_custom_call.1} parent=11 // pred_region
        _
      $region24: #{tpu_custom_call.1} parent=11 // pred_fallthru
        _
    $region12: #{tpu_custom_call.1} parent=5 // pred_fallthru
      _
    %p239 = scmp.lt.s32.totalorder %s12, 4
    // Predicated region
    $region25: #{tpu_custom_call.1} parent=5 // pred_check
      %p240 = pneg %p239
    $region26: #{tpu_custom_call.1} parent=5 // pred_check_branch
      %242 = sbr.rel (%p240) target = $region28
    $region27: #{tpu_custom_call.1} parent=5 // pred_region
      // Predicated region
      $region29: #{tpu_custom_call.1} parent=27 // pred_check
        %p243 = pneg %p46
      $region30: #{tpu_custom_call.1} parent=27 // pred_check_branch
        %245 = sbr.rel (%p243) target = $region32
      $region31: #{tpu_custom_call.1} parent=27 // pred_region
        %s246 = smul.u32 8, %s20
        %p247 = scmp.lt.s32.totalorder %s19, 1
        %s248 = scalar_select %p247, %s19, 1
        %p249 = scmp.lt.s32.totalorder %s246, 15
        %s250 = scalar_select %p249, %s246, 15
        %s251 = smul.addr %s250, 2
        %s252 = smul.addr %s248, 32
        %s253 = sadd.s32 %s251, %s252
        %s254 = smul.addr %s253, 8
        %s255 = scalar_lea.vmem %s0, %s254
        %s256 = smul.u32 8, %s20
      $region32: #{tpu_custom_call.1} parent=27 // pred_fallthru
        _
      // Predicated region
      $region33: #{tpu_custom_call.1} parent=27 // pred_check
        %p257 = pneg %p82
      $region34: #{tpu_custom_call.1} parent=27 // pred_check_branch
        %259 = sbr.rel (%p257) target = $region36
      $region35: #{tpu_custom_call.1} parent=27 // pred_region
        %s260 = smul.u32 %s20, 4
        %s261 = ssub.s32 %s260, 1
        %p262 = scmp.gt.s32.totalorder %s261, 0
        %s263 = scalar_select %p262, %s261, 0
        %s264 = smul.u32 2, %s263
        %p265 = scmp.lt.s32.totalorder %s19, 1
        %s266 = scalar_select %p265, %s19, 1
        %p267 = scmp.lt.s32.totalorder %s264, 15
        %s268 = scalar_select %p267, %s264, 15
        %s269 = smul.addr %s268, 2
        %s270 = smul.addr %s266, 32
        %s271 = sadd.s32 %s269, %s270
        %s272 = smul.addr %s271, 8
        %s273 = scalar_lea.vmem %s1, %s272
        %s274 = smul.u32 %s20, 4
        %s275 = ssub.s32 %s274, 1
        %p276 = scmp.gt.s32.totalorder %s275, 0
        %s277 = scalar_select %p276, %s275, 0
        %s278 = smul.u32 2, %s277
      $region36: #{tpu_custom_call.1} parent=27 // pred_fallthru
        _
      // Predicated region
      $region37: #{tpu_custom_call.1} parent=27 // pred_check
        %p279 = pneg %p118
      $region38: #{tpu_custom_call.1} parent=27 // pred_check_branch
        %281 = sbr.rel (%p279) target = $region40
      $region39: #{tpu_custom_call.1} parent=27 // pred_region
        %s282 = sadd.s32 %s20, 1
        %s283 = smul.u32 %s282, 4
        %p284 = scmp.lt.s32.totalorder %s283, 7
        %s285 = scalar_select %p284, %s283, 7
        %s286 = smul.u32 2, %s285
        %p287 = scmp.lt.s32.totalorder %s19, 1
        %s288 = scalar_select %p287, %s19, 1
        %p289 = scmp.lt.s32.totalorder %s286, 15
        %s290 = scalar_select %p289, %s286, 15
        %s291 = smul.addr %s290, 2
        %s292 = smul.addr %s288, 32
        %s293 = sadd.s32 %s291, %s292
        %s294 = smul.addr %s293, 8
        %s295 = scalar_lea.vmem %s2, %s294
        %s296 = sadd.s32 %s20, 1
        %s297 = smul.u32 %s296, 4
        %p298 = scmp.lt.s32.totalorder %s297, 7
        %s299 = scalar_select %p298, %s297, 7
        %s300 = smul.u32 2, %s299
      $region40: #{tpu_custom_call.1} parent=27 // pred_fallthru
        _
    $region28: #{tpu_custom_call.1} parent=5 // pred_fallthru
      _
    %p301 = scmp.le.s32.totalorder 1, %s12
    %p302 = scmp.lt.s32.totalorder %s12, 5
    %p303 = pnand %p301, %p302
    %p304 = pneg %p303
    // Predicated region
    $region41: #{tpu_custom_call.1} parent=5 // pred_check
      _
    $region42: #{tpu_custom_call.1} parent=5 // pred_check_branch
      %306 = sbr.rel (%p303) target = $region44
    $region43: #{tpu_custom_call.1} parent=5 // pred_region
      %s307 = ssub.s32 %s12, 1
      %s308 = smul.u32 8, %s22
      %p309 = scmp.lt.s32.totalorder %s21, 1
      %s310 = scalar_select %p309, %s21, 1
      %p311 = scmp.lt.s32.totalorder %s308, 15
      %s312 = scalar_select %p311, %s308, 15
      %s313 = smul.addr %s312, 2
      %s314 = smul.addr %s310, 32
      %s315 = sadd.s32 %s313, %s314
      %s316 = smul.addr %s315, 8
      %s317 = scalar_lea.vmem %s0, %s316
      %p318 = pneg %p52
      %p319 = pneg %p49
      %s320 = smul.u32 %s22, 4
      %s321 = ssub.s32 %s320, 1
      %p322 = scmp.gt.s32.totalorder %s321, 0
      %s323 = scalar_select %p322, %s321, 0
      %s324 = smul.u32 2, %s323
      %p325 = scmp.lt.s32.totalorder %s21, 1
      %s326 = scalar_select %p325, %s21, 1
      %p327 = scmp.lt.s32.totalorder %s324, 15
      %s328 = scalar_select %p327, %s324, 15
      %s329 = smul.addr %s328, 2
      %s330 = smul.addr %s326, 32
      %s331 = sadd.s32 %s329, %s330
      %s332 = smul.addr %s331, 8
      %s333 = scalar_lea.vmem %s1, %s332
      %p334 = pneg %p88
      %p335 = pneg %p85
      %s336 = sadd.s32 %s22, 1
      %s337 = smul.u32 %s336, 4
      %p338 = scmp.lt.s32.totalorder %s337, 7
      %s339 = scalar_select %p338, %s337, 7
      %s340 = smul.u32 2, %s339
      %p341 = scmp.lt.s32.totalorder %s21, 1
      %s342 = scalar_select %p341, %s21, 1
      %p343 = scmp.lt.s32.totalorder %s340, 15
      %s344 = scalar_select %p343, %s340, 15
      %s345 = smul.addr %s344, 2
      %s346 = smul.addr %s342, 32
      %s347 = sadd.s32 %s345, %s346
      %s348 = smul.addr %s347, 8
      %s349 = scalar_lea.vmem %s2, %s348
      %p350 = pneg %p124
      %p351 = pneg %p121
      %p352 = pneg %p145
      %p353 = pneg %p142
      %p354 = pneg %p166
      %p355 = pneg %p163
      %p356 = pneg %p187
      %p357 = pneg %p184
      %p358 = pneg %p215
      %p359 = pneg %p212
      %s360 = smul.u32 8, %s22
      %p361 = scmp.lt.s32.totalorder %s21, 1
      %s362 = scalar_select %p361, %s21, 1
      %p363 = scmp.lt.s32.totalorder %s360, 15
      %s364 = scalar_select %p363, %s360, 15
      %s365 = smul.addr %s364, 2
      %s366 = smul.addr %s362, 32
      %s367 = sadd.s32 %s365, %s366
      %s368 = smul.addr %s367, 8
      %s369 = scalar_lea.vmem %s6, %s368
      %s370 = smul.u32 8, %s22
      %p371 = scmp.lt.s32.totalorder %s21, 1
      %s372 = scalar_select %p371, %s21, 1
      %p373 = scmp.lt.s32.totalorder %s370, 15
      %s374 = scalar_select %p373, %s370, 15
      %s375 = smul.addr %s374, 2
      %s376 = smul.addr %s372, 32
      %s377 = sadd.s32 %s375, %s376
      %s378 = smul.addr %s377, 8
      %s379 = scalar_lea.vmem %s0, %s378
      %s380 = smul.u32 8, %s22
      %s381 = smul.u32 %s22, 4
      %s382 = ssub.s32 %s381, 1
      %p383 = scmp.gt.s32.totalorder %s382, 0
      %s384 = scalar_select %p383, %s382, 0
      %s385 = smul.u32 2, %s384
      %p386 = scmp.lt.s32.totalorder %s21, 1
      %s387 = scalar_select %p386, %s21, 1
      %p388 = scmp.lt.s32.totalorder %s385, 15
      %s389 = scalar_select %p388, %s385, 15
      %s390 = smul.addr %s389, 2
      %s391 = smul.addr %s387, 32
      %s392 = sadd.s32 %s390, %s391
      %s393 = smul.addr %s392, 8
      %s394 = scalar_lea.vmem %s1, %s393
      %s395 = smul.u32 %s22, 4
      %s396 = ssub.s32 %s395, 1
      %p397 = scmp.gt.s32.totalorder %s396, 0
      %s398 = scalar_select %p397, %s396, 0
      %s399 = smul.u32 2, %s398
      %s400 = sadd.s32 %s22, 1
      %s401 = smul.u32 %s400, 4
      %p402 = scmp.lt.s32.totalorder %s401, 7
      %s403 = scalar_select %p402, %s401, 7
      %s404 = smul.u32 2, %s403
      %p405 = scmp.lt.s32.totalorder %s21, 1
      %s406 = scalar_select %p405, %s21, 1
      %p407 = scmp.lt.s32.totalorder %s404, 15
      %s408 = scalar_select %p407, %s404, 15
      %s409 = smul.addr %s408, 2
      %s410 = smul.addr %s406, 32
      %s411 = sadd.s32 %s409, %s410
      %s412 = smul.addr %s411, 8
      %s413 = scalar_lea.vmem %s2, %s412
      %s414 = sadd.s32 %s22, 1
      %s415 = smul.u32 %s414, 4
      %p416 = scmp.lt.s32.totalorder %s415, 7
      %s417 = scalar_select %p416, %s415, 7
      %s418 = smul.u32 2, %s417
      %s419 = smul.u32 8, %s22
      %p420 = scmp.lt.s32.totalorder %s21, 1
      %s421 = scalar_select %p420, %s21, 1
      %p422 = scmp.lt.s32.totalorder %s419, 15
      %s423 = scalar_select %p422, %s419, 15
      %s424 = smul.addr %s423, 2
      %s425 = smul.addr %s421, 32
      %s426 = sadd.s32 %s424, %s425
      %s427 = smul.addr %s426, 8
      %s428 = scalar_lea.vmem %s6, %s427
      %s429 = smul.u32 8, %s22
      %vm431 = vcmask 24576
      %vm432 = vsmask.f32 256
      %vm433 = vmand %vm431, %vm432
      %v434 = vld [vmem:[#allocation2] sm:$0x1]
      %v435 = vsel %vm433, 0, %v434
      %436 = vst [vmem:[#allocation2] sm:$0x1] %v435
      %v437 = vld [vmem:[#allocation2 + $0xc] sm:$0x1]
      %v438 = vsel %vm433, 0, %v437
      %439 = vst [vmem:[#allocation2 + $0xc] sm:$0x1] %v438
      %v440 = vld [vmem:[#allocation2 + $0x18] sm:$0x1]
      %v441 = vsel %vm433, 0, %v440
      %442 = vst [vmem:[#allocation2 + $0x18] sm:$0x1] %v441
      %v443 = vld [vmem:[#allocation2 + $0x24] sm:$0x1]
      %v444 = vsel %vm433, 0, %v443
      %445 = vst [vmem:[#allocation2 + $0x24] sm:$0x1] %v444
      %v446 = vld [vmem:[#allocation2 + $0x30] sm:$0x1]
      %v447 = vsel %vm433, 0, %v446
      %448 = vst [vmem:[#allocation2 + $0x30] sm:$0x1] %v447
      %v449 = vld [vmem:[#allocation2 + $0x3c] sm:$0x1]
      %v450 = vsel %vm433, 0, %v449
      %451 = vst [vmem:[#allocation2 + $0x3c] sm:$0x1] %v450
      %v452 = vld [vmem:[#allocation2 + $0x48] sm:$0x1]
      %v453 = vsel %vm433, 0, %v452
      %454 = vst [vmem:[#allocation2 + $0x48] sm:$0x1] %v453
      %v455 = vld [vmem:[#allocation2 + $0x54] sm:$0x1]
      %v456 = vsel %vm433, 0, %v455
      %457 = vst [vmem:[#allocation2 + $0x54] sm:$0x1] %v456
      %v458 = vld [vmem:[#allocation2 + $0x60] sm:$0x1]
      %v459 = vsel %vm433, 0, %v458
      %460 = vst [vmem:[#allocation2 + $0x60] sm:$0x1] %v459
      %v461 = vld [vmem:[#allocation2 + $0x6c] sm:$0x1]
      %v462 = vsel %vm433, 0, %v461
      %463 = vst [vmem:[#allocation2 + $0x6c] sm:$0x1] %v462
      %v464 = vld [vmem:[#allocation2 + $0x78] sm:$0x1]
      %v465 = vsel %vm433, 0, %v464
      %466 = vst [vmem:[#allocation2 + $0x78] sm:$0x1] %v465
      %v467 = vld [vmem:[#allocation2 + $0x84] sm:$0x1]
      %v468 = vsel %vm433, 0, %v467
      %469 = vst [vmem:[#allocation2 + $0x84] sm:$0x1] %v468
      %vm470 = vsmask.f32 7938
      %vm471 = vmand %vm431, %vm470
      %v472 = vld [vmem:[#allocation2 + $0x8] sm:$0x1]
      %v473 = vsel %vm471, 0, %v472
      %474 = vst [vmem:[#allocation2 + $0x8] sm:$0x1] %v473
      %v475 = vld [vmem:[#allocation2 + $0x14] sm:$0x1]
      %v476 = vsel %vm471, 0, %v475
      %477 = vst [vmem:[#allocation2 + $0x14] sm:$0x1] %v476
      %v478 = vld [vmem:[#allocation2 + $0x20] sm:$0x1]
      %v479 = vsel %vm471, 0, %v478
      %480 = vst [vmem:[#allocation2 + $0x20] sm:$0x1] %v479
      %v481 = vld [vmem:[#allocation2 + $0x2c] sm:$0x1]
      %v482 = vsel %vm471, 0, %v481
      %483 = vst [vmem:[#allocation2 + $0x2c] sm:$0x1] %v482
      %v484 = vld [vmem:[#allocation2 + $0x38] sm:$0x1]
      %v485 = vsel %vm471, 0, %v484
      %486 = vst [vmem:[#allocation2 + $0x38] sm:$0x1] %v485
      %v487 = vld [vmem:[#allocation2 + $0x44] sm:$0x1]
      %v488 = vsel %vm471, 0, %v487
      %489 = vst [vmem:[#allocation2 + $0x44] sm:$0x1] %v488
      %v490 = vld [vmem:[#allocation2 + $0x50] sm:$0x1]
      %v491 = vsel %vm471, 0, %v490
      %492 = vst [vmem:[#allocation2 + $0x50] sm:$0x1] %v491
      %v493 = vld [vmem:[#allocation2 + $0x5c] sm:$0x1]
      %v494 = vsel %vm471, 0, %v493
      %495 = vst [vmem:[#allocation2 + $0x5c] sm:$0x1] %v494
      %v496 = vld [vmem:[#allocation2 + $0x68] sm:$0x1]
      %v497 = vsel %vm471, 0, %v496
      %498 = vst [vmem:[#allocation2 + $0x68] sm:$0x1] %v497
      %v499 = vld [vmem:[#allocation2 + $0x74] sm:$0x1]
      %v500 = vsel %vm471, 0, %v499
      %501 = vst [vmem:[#allocation2 + $0x74] sm:$0x1] %v500
      %v502 = vld [vmem:[#allocation2 + $0x80] sm:$0x1]
      %v503 = vsel %vm471, 0, %v502
      %504 = vst [vmem:[#allocation2 + $0x80] sm:$0x1] %v503
      %v505 = vld [vmem:[#allocation2 + $0x8c] sm:$0x1]
      %v506 = vsel %vm471, 0, %v505
      %507 = vst [vmem:[#allocation2 + $0x8c] sm:$0x1] %v506
      %v508 = vld [vmem:[#allocation3] sm:$0x1]
      %v509 = vsel %vm433, 0, %v508
      %510 = vst [vmem:[#allocation3] sm:$0x1] %v509
      %v511 = vld [vmem:[#allocation3 + $0xc] sm:$0x1]
      %v512 = vsel %vm433, 0, %v511
      %513 = vst [vmem:[#allocation3 + $0xc] sm:$0x1] %v512
      %v514 = vld [vmem:[#allocation3 + $0x18] sm:$0x1]
      %v515 = vsel %vm433, 0, %v514
      %516 = vst [vmem:[#allocation3 + $0x18] sm:$0x1] %v515
      %v517 = vld [vmem:[#allocation3 + $0x24] sm:$0x1]
      %v518 = vsel %vm433, 0, %v517
      %519 = vst [vmem:[#allocation3 + $0x24] sm:$0x1] %v518
      %v520 = vld [vmem:[#allocation3 + $0x30] sm:$0x1]
      %v521 = vsel %vm433, 0, %v520
      %522 = vst [vmem:[#allocation3 + $0x30] sm:$0x1] %v521
      %v523 = vld [vmem:[#allocation3 + $0x3c] sm:$0x1]
      %v524 = vsel %vm433, 0, %v523
      %525 = vst [vmem:[#allocation3 + $0x3c] sm:$0x1] %v524
      %v526 = vld [vmem:[#allocation3 + $0x48] sm:$0x1]
      %v527 = vsel %vm433, 0, %v526
      %528 = vst [vmem:[#allocation3 + $0x48] sm:$0x1] %v527
      %v529 = vld [vmem:[#allocation3 + $0x54] sm:$0x1]
      %v530 = vsel %vm433, 0, %v529
      %531 = vst [vmem:[#allocation3 + $0x54] sm:$0x1] %v530
      %v532 = vld [vmem:[#allocation3 + $0x60] sm:$0x1]
      %v533 = vsel %vm433, 0, %v532
      %534 = vst [vmem:[#allocation3 + $0x60] sm:$0x1] %v533
      %v535 = vld [vmem:[#allocation3 + $0x6c] sm:$0x1]
      %v536 = vsel %vm433, 0, %v535
      %537 = vst [vmem:[#allocation3 + $0x6c] sm:$0x1] %v536
      %v538 = vld [vmem:[#allocation3 + $0x8] sm:$0x1]
      %v539 = vsel %vm471, 0, %v538
      %540 = vst [vmem:[#allocation3 + $0x8] sm:$0x1] %v539
      %v541 = vld [vmem:[#allocation3 + $0x14] sm:$0x1]
      %v542 = vsel %vm471, 0, %v541
      %543 = vst [vmem:[#allocation3 + $0x14] sm:$0x1] %v542
      %v544 = vld [vmem:[#allocation3 + $0x20] sm:$0x1]
      %v545 = vsel %vm471, 0, %v544
      %546 = vst [vmem:[#allocation3 + $0x20] sm:$0x1] %v545
      %v547 = vld [vmem:[#allocation3 + $0x2c] sm:$0x1]
      %v548 = vsel %vm471, 0, %v547
      %549 = vst [vmem:[#allocation3 + $0x2c] sm:$0x1] %v548
      %v550 = vld [vmem:[#allocation3 + $0x38] sm:$0x1]
      %v551 = vsel %vm471, 0, %v550
      %552 = vst [vmem:[#allocation3 + $0x38] sm:$0x1] %v551
      %v553 = vld [vmem:[#allocation3 + $0x44] sm:$0x1]
      %v554 = vsel %vm471, 0, %v553
      %555 = vst [vmem:[#allocation3 + $0x44] sm:$0x1] %v554
      %v556 = vld [vmem:[#allocation3 + $0x50] sm:$0x1]
      %v557 = vsel %vm471, 0, %v556
      %558 = vst [vmem:[#allocation3 + $0x50] sm:$0x1] %v557
      %v559 = vld [vmem:[#allocation3 + $0x5c] sm:$0x1]
      %v560 = vsel %vm471, 0, %v559
      %561 = vst [vmem:[#allocation3 + $0x5c] sm:$0x1] %v560
      %v562 = vld [vmem:[#allocation3 + $0x68] sm:$0x1]
      %v563 = vsel %vm471, 0, %v562
      %564 = vst [vmem:[#allocation3 + $0x68] sm:$0x1] %v563
      %v565 = vld [vmem:[#allocation3 + $0x74] sm:$0x1]
      %v566 = vsel %vm471, 0, %v565
      %567 = vst [vmem:[#allocation3 + $0x74] sm:$0x1] %v566
      %v568 = vld [vmem:[%s394] sm:$0xff]
      %v569 = vld [vmem:[%s394 + $0x8] sm:$0xff]
      %v570 = vld [vmem:[%s394 + $0x10] sm:$0xff]
      %v571 = vld [vmem:[%s394 + $0x18] sm:$0xff]
      %v572 = vpack.c.bf16 %v569, %v568
      %v573 = vpack.c.bf16 %v571, %v570
      %v576 = vunpack.c.l.b16 %v572
      %v577 = vunpack.c.h.b16 %v572
      %v578 = vunpack.c.l.b16 %v573
      %v579 = vunpack.c.h.b16 %v573
      %v580 = vpack.c.b16 %v576, %v576
      %v581 = vpack.c.b16 %v577, %v577
      %v582 = vpack.c.b16 %v578, %v578
      %v583 = vpack.c.b16 %v579, %v579
      %vm584 = vsmask.f32 4368
      %vm585 = vmor %vm432, %vm584
      %v587 = vshrl.u32 %v580, 16
      %v589 = vrot.slane %v587, 7
      %v590 = vshll.u32 %v580, 16
      %v592 = vor.u32 %v589, %v590
      %v593 = vrot.slane %v589, 4
      %v595 = vshrl.u32 %v581, 16
      %v597 = vrot.slane %v595, 7
      %v598 = vshll.u32 %v581, 16
      %v600 = vor.u32 %v597, %v598
      %v601 = vsel %vm585, %v593, %v600
      %v602 = vrot.slane %v597, 4
      %v604 = vshrl.u32 %v582, 16
      %v606 = vrot.slane %v604, 7
      %v607 = vshll.u32 %v582, 16
      %v609 = vor.u32 %v606, %v607
      %v610 = vrot.slane %v606, 4
      %v612 = vshrl.u32 %v583, 16
      %v614 = vrot.slane %v612, 7
      %v615 = vshll.u32 %v583, 16
      %v617 = vor.u32 %v614, %v615
      %v618 = vsel %vm585, %v610, %v617
      %v619 = vrot.slane %v614, 4
      %vm626 = vcmask 27648
      %vm627 = vmand %vm626, %vm470
      %v628 = vld [vmem:[#allocation2] sm:$0xf]
      %v629 = vsel %vm627, %v592, %v628
      %630 = vst [vmem:[#allocation2] sm:$0xf] %v629
      %vm631 = vcmask 27648
      %632 = vst.msk [vmem:[#allocation2 + $0x4] sm:$0xf] %vm631, %v601
      %v633 = vld [vmem:[#allocation2 + $0x8] sm:$0x1]
      %v634 = vsel %vm433, %v602, %v633
      %635 = vst [vmem:[#allocation2 + $0x8] sm:$0x1] %v634
      %v636 = vld [vmem:[#allocation2 + $0xc] sm:$0xf]
      %v637 = vsel %vm627, %v609, %v636
      %638 = vst [vmem:[#allocation2 + $0xc] sm:$0xf] %v637
      %639 = vst.msk [vmem:[#allocation2 + $0x10] sm:$0xf] %vm631, %v618
      %v640 = vld [vmem:[#allocation2 + $0x14] sm:$0x1]
      %v641 = vsel %vm433, %v619, %v640
      %642 = vst [vmem:[#allocation2 + $0x14] sm:$0x1] %v641
      %v643 = vld [vmem:[%s379] sm:$0xff]
      %v644 = vld [vmem:[%s379 + $0x8] sm:$0xff]
      %v645 = vld [vmem:[%s379 + $0x10] sm:$0xff]
      %v646 = vld [vmem:[%s379 + $0x18] sm:$0xff]
      %v647 = vld [vmem:[%s379 + $0x20] sm:$0xff]
      %v648 = vld [vmem:[%s379 + $0x28] sm:$0xff]
      %v649 = vld [vmem:[%s379 + $0x30] sm:$0xff]
      %v650 = vld [vmem:[%s379 + $0x38] sm:$0xff]
      %v651 = vld [vmem:[%s379 + $0x40] sm:$0xff]
      %v652 = vld [vmem:[%s379 + $0x48] sm:$0xff]
      %v653 = vld [vmem:[%s379 + $0x50] sm:$0xff]
      %v654 = vld [vmem:[%s379 + $0x58] sm:$0xff]
      %v655 = vld [vmem:[%s379 + $0x60] sm:$0xff]
      %v656 = vld [vmem:[%s379 + $0x68] sm:$0xff]
      %v657 = vld [vmem:[%s379 + $0x70] sm:$0xff]
      %v658 = vld [vmem:[%s379 + $0x78] sm:$0xff]
      %v659 = vpack.c.bf16 %v644, %v643
      %v660 = vpack.c.bf16 %v646, %v645
      %v661 = vpack.c.bf16 %v648, %v647
      %v662 = vpack.c.bf16 %v650, %v649
      %v663 = vpack.c.bf16 %v652, %v651
      %v664 = vpack.c.bf16 %v654, %v653
      %v665 = vpack.c.bf16 %v656, %v655
      %v666 = vpack.c.bf16 %v658, %v657
      %v675 = vunpack.c.l.b16 %v659
      %v676 = vunpack.c.h.b16 %v659
      %v677 = vunpack.c.l.b16 %v660
      %v678 = vunpack.c.h.b16 %v660
      %v679 = vunpack.c.l.b16 %v661
      %v680 = vunpack.c.h.b16 %v661
      %v681 = vunpack.c.l.b16 %v662
      %v682 = vunpack.c.h.b16 %v662
      %v683 = vunpack.c.l.b16 %v663
      %v684 = vunpack.c.h.b16 %v663
      %v685 = vunpack.c.l.b16 %v664
      %v686 = vunpack.c.h.b16 %v664
      %v687 = vunpack.c.l.b16 %v665
      %v688 = vunpack.c.h.b16 %v665
      %v689 = vunpack.c.l.b16 %v666
      %v690 = vunpack.c.h.b16 %v666
      %v691 = vpack.c.b16 %v675, %v675
      %v692 = vpack.c.b16 %v676, %v676
      %v693 = vpack.c.b16 %v677, %v677
      %v694 = vpack.c.b16 %v678, %v678
      %v695 = vpack.c.b16 %v679, %v679
      %v696 = vpack.c.b16 %v680, %v680
      %v697 = vpack.c.b16 %v681, %v681
      %v698 = vpack.c.b16 %v682, %v682
      %v699 = vpack.c.b16 %v683, %v683
      %v700 = vpack.c.b16 %v684, %v684
      %v701 = vpack.c.b16 %v685, %v685
      %v702 = vpack.c.b16 %v686, %v686
      %v703 = vpack.c.b16 %v687, %v687
      %v704 = vpack.c.b16 %v688, %v688
      %v705 = vpack.c.b16 %v689, %v689
      %v706 = vpack.c.b16 %v690, %v690
      %v708 = vshrl.u32 %v691, 16
      %v710 = vrot.slane %v708, 7
      %v711 = vshll.u32 %v691, 16
      %v713 = vor.u32 %v710, %v711
      %v714 = vrot.slane %v710, 4
      %v716 = vshrl.u32 %v692, 16
      %v718 = vrot.slane %v716, 7
      %v719 = vshll.u32 %v692, 16
      %v721 = vor.u32 %v718, %v719
      %v722 = vsel %vm585, %v714, %v721
      %v723 = vrot.slane %v718, 4
      %v725 = vshrl.u32 %v693, 16
      %v727 = vrot.slane %v725, 7
      %v728 = vshll.u32 %v693, 16
      %v730 = vor.u32 %v727, %v728
      %v731 = vrot.slane %v727, 4
      %v733 = vshrl.u32 %v694, 16
      %v735 = vrot.slane %v733, 7
      %v736 = vshll.u32 %v694, 16
      %v738 = vor.u32 %v735, %v736
      %v739 = vsel %vm585, %v731, %v738
      %v740 = vrot.slane %v735, 4
      %v742 = vshrl.u32 %v695, 16
      %v744 = vrot.slane %v742, 7
      %v745 = vshll.u32 %v695, 16
      %v747 = vor.u32 %v744, %v745
      %v748 = vrot.slane %v744, 4
      %v750 = vshrl.u32 %v696, 16
      %v752 = vrot.slane %v750, 7
      %v753 = vshll.u32 %v696, 16
      %v755 = vor.u32 %v752, %v753
      %v756 = vsel %vm585, %v748, %v755
      %v757 = vrot.slane %v752, 4
      %v759 = vshrl.u32 %v697, 16
      %v761 = vrot.slane %v759, 7
      %v762 = vshll.u32 %v697, 16
      %v764 = vor.u32 %v761, %v762
      %v765 = vrot.slane %v761, 4
      %v767 = vshrl.u32 %v698, 16
      %v769 = vrot.slane %v767, 7
      %v770 = vshll.u32 %v698, 16
      %v772 = vor.u32 %v769, %v770
      %v773 = vsel %vm585, %v765, %v772
      %v774 = vrot.slane %v769, 4
      %v776 = vshrl.u32 %v699, 16
      %v778 = vrot.slane %v776, 7
      %v779 = vshll.u32 %v699, 16
      %v781 = vor.u32 %v778, %v779
      %v782 = vrot.slane %v778, 4
      %v784 = vshrl.u32 %v700, 16
      %v786 = vrot.slane %v784, 7
      %v787 = vshll.u32 %v700, 16
      %v789 = vor.u32 %v786, %v787
      %v790 = vsel %vm585, %v782, %v789
      %v791 = vrot.slane %v786, 4
      %v793 = vshrl.u32 %v701, 16
      %v795 = vrot.slane %v793, 7
      %v796 = vshll.u32 %v701, 16
      %v798 = vor.u32 %v795, %v796
      %v799 = vrot.slane %v795, 4
      %v801 = vshrl.u32 %v702, 16
      %v803 = vrot.slane %v801, 7
      %v804 = vshll.u32 %v702, 16
      %v806 = vor.u32 %v803, %v804
      %v807 = vsel %vm585, %v799, %v806
      %v808 = vrot.slane %v803, 4
      %v810 = vshrl.u32 %v703, 16
      %v812 = vrot.slane %v810, 7
      %v813 = vshll.u32 %v703, 16
      %v815 = vor.u32 %v812, %v813
      %v816 = vrot.slane %v812, 4
      %v818 = vshrl.u32 %v704, 16
      %v820 = vrot.slane %v818, 7
      %v821 = vshll.u32 %v704, 16
      %v823 = vor.u32 %v820, %v821
      %v824 = vsel %vm585, %v816, %v823
      %v825 = vrot.slane %v820, 4
      %v827 = vshrl.u32 %v705, 16
      %v829 = vrot.slane %v827, 7
      %v830 = vshll.u32 %v705, 16
      %v832 = vor.u32 %v829, %v830
      %v833 = vrot.slane %v829, 4
      %v835 = vshrl.u32 %v706, 16
      %v837 = vrot.slane %v835, 7
      %v838 = vshll.u32 %v706, 16
      %v840 = vor.u32 %v837, %v838
      %v841 = vsel %vm585, %v833, %v840
      %v842 = vrot.slane %v837, 4
      %s867 = scalar_lea.vmem [#allocation2], 24
      %v868 = vld [vmem:[%s867] sm:$0xf]
      %v869 = vsel %vm627, %v713, %v868
      %870 = vst [vmem:[%s867] sm:$0xf] %v869
      %871 = vst.msk [vmem:[%s867 + $0x4] sm:$0xf] %vm631, %v722
      %v872 = vld [vmem:[%s867 + $0x8] sm:$0x1]
      %v873 = vsel %vm433, %v723, %v872
      %874 = vst [vmem:[%s867 + $0x8] sm:$0x1] %v873
      %v875 = vld [vmem:[%s867 + $0xc] sm:$0xf]
      %v876 = vsel %vm627, %v730, %v875
      %877 = vst [vmem:[%s867 + $0xc] sm:$0xf] %v876
      %878 = vst.msk [vmem:[%s867 + $0x10] sm:$0xf] %vm631, %v739
      %v879 = vld [vmem:[%s867 + $0x14] sm:$0x1]
      %v880 = vsel %vm433, %v740, %v879
      %881 = vst [vmem:[%s867 + $0x14] sm:$0x1] %v880
      %v882 = vld [vmem:[%s867 + $0x18] sm:$0xf]
      %v883 = vsel %vm627, %v747, %v882
      %884 = vst [vmem:[%s867 + $0x18] sm:$0xf] %v883
      %885 = vst.msk [vmem:[%s867 + $0x1c] sm:$0xf] %vm631, %v756
      %v886 = vld [vmem:[%s867 + $0x20] sm:$0x1]
      %v887 = vsel %vm433, %v757, %v886
      %888 = vst [vmem:[%s867 + $0x20] sm:$0x1] %v887
      %v889 = vld [vmem:[%s867 + $0x24] sm:$0xf]
      %v890 = vsel %vm627, %v764, %v889
      %891 = vst [vmem:[%s867 + $0x24] sm:$0xf] %v890
      %892 = vst.msk [vmem:[%s867 + $0x28] sm:$0xf] %vm631, %v773
      %v893 = vld [vmem:[%s867 + $0x2c] sm:$0x1]
      %v894 = vsel %vm433, %v774, %v893
      %895 = vst [vmem:[%s867 + $0x2c] sm:$0x1] %v894
      %v896 = vld [vmem:[%s867 + $0x30] sm:$0xf]
      %v897 = vsel %vm627, %v781, %v896
      %898 = vst [vmem:[%s867 + $0x30] sm:$0xf] %v897
      %899 = vst.msk [vmem:[%s867 + $0x34] sm:$0xf] %vm631, %v790
      %v900 = vld [vmem:[%s867 + $0x38] sm:$0x1]
      %v901 = vsel %vm433, %v791, %v900
      %902 = vst [vmem:[%s867 + $0x38] sm:$0x1] %v901
      %v903 = vld [vmem:[%s867 + $0x3c] sm:$0xf]
      %v904 = vsel %vm627, %v798, %v903
      %905 = vst [vmem:[%s867 + $0x3c] sm:$0xf] %v904
      %906 = vst.msk [vmem:[%s867 + $0x40] sm:$0xf] %vm631, %v807
      %v907 = vld [vmem:[%s867 + $0x44] sm:$0x1]
      %v908 = vsel %vm433, %v808, %v907
      %909 = vst [vmem:[%s867 + $0x44] sm:$0x1] %v908
      %v910 = vld [vmem:[%s867 + $0x48] sm:$0xf]
      %v911 = vsel %vm627, %v815, %v910
      %912 = vst [vmem:[%s867 + $0x48] sm:$0xf] %v911
      %913 = vst.msk [vmem:[%s867 + $0x4c] sm:$0xf] %vm631, %v824
      %v914 = vld [vmem:[%s867 + $0x50] sm:$0x1]
      %v915 = vsel %vm433, %v825, %v914
      %916 = vst [vmem:[%s867 + $0x50] sm:$0x1] %v915
      %v917 = vld [vmem:[%s867 + $0x54] sm:$0xf]
      %v918 = vsel %vm627, %v832, %v917
      %919 = vst [vmem:[%s867 + $0x54] sm:$0xf] %v918
      %920 = vst.msk [vmem:[%s867 + $0x58] sm:$0xf] %vm631, %v841
      %v921 = vld [vmem:[%s867 + $0x5c] sm:$0x1]
      %v922 = vsel %vm433, %v842, %v921
      %923 = vst [vmem:[%s867 + $0x5c] sm:$0x1] %v922
      %v924 = vld [vmem:[%s413] sm:$0xff]
      %v925 = vld [vmem:[%s413 + $0x8] sm:$0xff]
      %v926 = vld [vmem:[%s413 + $0x10] sm:$0xff]
      %v927 = vld [vmem:[%s413 + $0x18] sm:$0xff]
      %v928 = vpack.c.bf16 %v925, %v924
      %v929 = vpack.c.bf16 %v927, %v926
      %v932 = vunpack.c.l.b16 %v928
      %v933 = vunpack.c.h.b16 %v928
      %v934 = vunpack.c.l.b16 %v929
      %v935 = vunpack.c.h.b16 %v929
      %v936 = vpack.c.b16 %v932, %v932
      %v937 = vpack.c.b16 %v933, %v933
      %v938 = vpack.c.b16 %v934, %v934
      %v939 = vpack.c.b16 %v935, %v935
      %v941 = vshrl.u32 %v936, 16
      %v943 = vrot.slane %v941, 7
      %v944 = vshll.u32 %v936, 16
      %v946 = vor.u32 %v943, %v944
      %v947 = vrot.slane %v943, 4
      %v949 = vshrl.u32 %v937, 16
      %v951 = vrot.slane %v949, 7
      %v952 = vshll.u32 %v937, 16
      %v954 = vor.u32 %v951, %v952
      %v955 = vsel %vm585, %v947, %v954
      %v956 = vrot.slane %v951, 4
      %v958 = vshrl.u32 %v938, 16
      %v960 = vrot.slane %v958, 7
      %v961 = vshll.u32 %v938, 16
      %v963 = vor.u32 %v960, %v961
      %v964 = vrot.slane %v960, 4
      %v966 = vshrl.u32 %v939, 16
      %v968 = vrot.slane %v966, 7
      %v969 = vshll.u32 %v939, 16
      %v971 = vor.u32 %v968, %v969
      %v972 = vsel %vm585, %v964, %v971
      %v973 = vrot.slane %v968, 4
      %s980 = scalar_lea.vmem [#allocation2], 120
      %v981 = vld [vmem:[%s980] sm:$0xf]
      %v982 = vsel %vm627, %v946, %v981
      %983 = vst [vmem:[%s980] sm:$0xf] %v982
      %984 = vst.msk [vmem:[%s980 + $0x4] sm:$0xf] %vm631, %v955
      %v985 = vld [vmem:[%s980 + $0x8] sm:$0x1]
      %v986 = vsel %vm433, %v956, %v985
      %987 = vst [vmem:[%s980 + $0x8] sm:$0x1] %v986
      %v988 = vld [vmem:[%s980 + $0xc] sm:$0xf]
      %v989 = vsel %vm627, %v963, %v988
      %990 = vst [vmem:[%s980 + $0xc] sm:$0xf] %v989
      %991 = vst.msk [vmem:[%s980 + $0x10] sm:$0xf] %vm631, %v972
      %v992 = vld [vmem:[%s980 + $0x14] sm:$0x1]
      %v993 = vsel %vm433, %v973, %v992
      %994 = vst [vmem:[%s980 + $0x14] sm:$0x1] %v993
      %p995 = scmp.eq.s32.totalorder %s22, 0
      // Predicated region
      $region45: #{tpu_custom_call.1} parent=43 // pred_check
        %p996 = pneg %p995
      $region46: #{tpu_custom_call.1} parent=43 // pred_check_branch
        %998 = sbr.rel (%p996) target = $region48
      $region47: #{tpu_custom_call.1} parent=43 // pred_region
        %999 = vst.msk [vmem:[#allocation2] sm:$0xf] %vm631, 0
        %1000 = vst.msk [vmem:[#allocation2 + $0x4] sm:$0xf] %vm631, 0
        %vm1001 = vcmask 24576
        %1002 = vst.msk [vmem:[#allocation2 + $0x8] sm:$0x1] %vm1001, 0
        %1003 = vst.msk [vmem:[#allocation2 + $0xc] sm:$0xf] %vm631, 0
        %1004 = vst.msk [vmem:[#allocation2 + $0x10] sm:$0xf] %vm631, 0
        %1005 = vst.msk [vmem:[#allocation2 + $0x14] sm:$0x1] %vm1001, 0
      $region48: #{tpu_custom_call.1} parent=43 // pred_fallthru
        _
      %p1006 = scmp.eq.s32.totalorder %s22, 1
      // Predicated region
      $region49: #{tpu_custom_call.1} parent=43 // pred_check
        %p1007 = pneg %p1006
      $region50: #{tpu_custom_call.1} parent=43 // pred_check_branch
        %1009 = sbr.rel (%p1007) target = $region52
      $region51: #{tpu_custom_call.1} parent=43 // pred_region
        %1010 = vst.msk [vmem:[%s980] sm:$0xf] %vm631, 0
        %1011 = vst.msk [vmem:[%s980 + $0x4] sm:$0xf] %vm631, 0
        %vm1012 = vcmask 24576
        %1013 = vst.msk [vmem:[%s980 + $0x8] sm:$0x1] %vm1012, 0
        %1014 = vst.msk [vmem:[%s980 + $0xc] sm:$0xf] %vm631, 0
        %1015 = vst.msk [vmem:[%s980 + $0x10] sm:$0xf] %vm631, 0
        %1016 = vst.msk [vmem:[%s980 + $0x14] sm:$0x1] %vm1012, 0
      $region52: #{tpu_custom_call.1} parent=43 // pred_fallthru
        _
      %v1017 = vld [vmem:[#allocation2] sm:$0xf]
      %v1018 = vld [vmem:[#allocation2 + $0x4] sm:$0xf]
      %v1019 = vld [vmem:[#allocation2 + $0xc] sm:$0xf]
      %v1020 = vld [vmem:[#allocation2 + $0x10] sm:$0xf]
      %v1021 = vld [vmem:[#allocation2 + $0x18] sm:$0xf]
      %v1022 = vld [vmem:[#allocation2 + $0x1c] sm:$0xf]
      %v1023 = vld [vmem:[#allocation2 + $0x24] sm:$0xf]
      %v1024 = vld [vmem:[#allocation2 + $0x28] sm:$0xf]
      %v1025 = vld [vmem:[#allocation2 + $0x30] sm:$0xf]
      %v1026 = vld [vmem:[#allocation2 + $0x34] sm:$0xf]
      %v1027 = vld [vmem:[#allocation2 + $0x3c] sm:$0xf]
      %v1028 = vld [vmem:[#allocation2 + $0x40] sm:$0xf]
      %v1029 = vld [vmem:[#allocation2 + $0x48] sm:$0xf]
      %v1030 = vld [vmem:[#allocation2 + $0x4c] sm:$0xf]
      %v1031 = vld [vmem:[#allocation2 + $0x54] sm:$0xf]
      %v1032 = vld [vmem:[#allocation2 + $0x58] sm:$0xf]
      %v1033 = vld [vmem:[#allocation2 + $0x60] sm:$0xf]
      %v1034 = vld [vmem:[#allocation2 + $0x64] sm:$0xf]
      %v1035 = vld [vmem:[#allocation2 + $0x6c] sm:$0xf]
      %v1036 = vld [vmem:[#allocation2 + $0x70] sm:$0xf]
      %v1037 = vld [vmem:[#allocation2 + $0x78] sm:$0xf]
      %v1038 = vld [vmem:[#allocation2 + $0x7c] sm:$0xf]
      %v1039 = vld [vmem:[#allocation2 + $0x84] sm:$0xf]
      %v1040 = vld [vmem:[#allocation2 + $0x88] sm:$0xf]
      %v1041 = vld [vmem:[#allocation2 + $0x8] sm:$0x1]
      %v1042 = vld [vmem:[#allocation2 + $0x14] sm:$0x1]
      %v1043 = vld [vmem:[#allocation2 + $0x20] sm:$0x1]
      %v1044 = vld [vmem:[#allocation2 + $0x2c] sm:$0x1]
      %v1045 = vld [vmem:[#allocation2 + $0x38] sm:$0x1]
      %v1046 = vld [vmem:[#allocation2 + $0x44] sm:$0x1]
      %v1047 = vld [vmem:[#allocation2 + $0x50] sm:$0x1]
      %v1048 = vld [vmem:[#allocation2 + $0x5c] sm:$0x1]
      %v1049 = vld [vmem:[#allocation2 + $0x68] sm:$0x1]
      %v1050 = vld [vmem:[#allocation2 + $0x74] sm:$0x1]
      %v1051 = vld [vmem:[#allocation2 + $0x80] sm:$0x1]
      %v1052 = vld [vmem:[#allocation2 + $0x8c] sm:$0x1]
      %v1053 = vld [vmem:[#allocation2] sm:$0xe]
      %v1054 = vld [vmem:[#allocation2 + $0xc] sm:$0xe]
      %v1055 = vld [vmem:[#allocation2 + $0x18] sm:$0xe]
      %v1056 = vld [vmem:[#allocation2 + $0x24] sm:$0xe]
      %v1057 = vld [vmem:[#allocation2 + $0x30] sm:$0xe]
      %v1058 = vld [vmem:[#allocation2 + $0x3c] sm:$0xe]
      %v1059 = vld [vmem:[#allocation2 + $0x48] sm:$0xe]
      %v1060 = vld [vmem:[#allocation2 + $0x54] sm:$0xe]
      %v1061 = vld [vmem:[#allocation2 + $0x60] sm:$0xe]
      %v1062 = vld [vmem:[#allocation2 + $0x6c] sm:$0xe]
      %v1063 = vld [vmem:[#allocation2 + $0x78] sm:$0xe]
      %v1064 = vld [vmem:[#allocation2 + $0x84] sm:$0xe]
      %v1089 = vunpack.c.l.b16 %v1017
      %v1090 = vunpack.c.l.b16 %v1018
      %v1091 = vunpack.c.l.b16 %v1019
      %v1092 = vunpack.c.l.b16 %v1020
      %v1093 = vunpack.c.l.b16 %v1021
      %v1094 = vunpack.c.l.b16 %v1022
      %v1095 = vunpack.c.l.b16 %v1023
      %v1096 = vunpack.c.l.b16 %v1024
      %v1097 = vunpack.c.l.b16 %v1025
      %v1098 = vunpack.c.l.b16 %v1026
      %v1099 = vunpack.c.l.b16 %v1027
      %v1100 = vunpack.c.l.b16 %v1028
      %v1101 = vunpack.c.l.b16 %v1029
      %v1102 = vunpack.c.l.b16 %v1030
      %v1103 = vunpack.c.l.b16 %v1031
      %v1104 = vunpack.c.l.b16 %v1032
      %v1105 = vunpack.c.l.b16 %v1033
      %v1106 = vunpack.c.l.b16 %v1034
      %v1107 = vunpack.c.l.b16 %v1035
      %v1108 = vunpack.c.l.b16 %v1036
      %v1109 = vunpack.c.l.b16 %v1037
      %v1110 = vunpack.c.l.b16 %v1038
      %v1111 = vunpack.c.l.b16 %v1039
      %v1112 = vunpack.c.l.b16 %v1040
      %v1113 = vpack.c.b16 %v1090, %v1089
      %v1114 = vpack.c.b16 %v1092, %v1091
      %v1115 = vpack.c.b16 %v1094, %v1093
      %v1116 = vpack.c.b16 %v1096, %v1095
      %v1117 = vpack.c.b16 %v1098, %v1097
      %v1118 = vpack.c.b16 %v1100, %v1099
      %v1119 = vpack.c.b16 %v1102, %v1101
      %v1120 = vpack.c.b16 %v1104, %v1103
      %v1121 = vpack.c.b16 %v1106, %v1105
      %v1122 = vpack.c.b16 %v1108, %v1107
      %v1123 = vpack.c.b16 %v1110, %v1109
      %v1124 = vpack.c.b16 %v1112, %v1111
      %v1137 = vunpack.c.l.b16 %v1041
      %v1138 = vunpack.c.l.b16 %v1042
      %v1139 = vunpack.c.l.b16 %v1043
      %v1140 = vunpack.c.l.b16 %v1044
      %v1141 = vunpack.c.l.b16 %v1045
      %v1142 = vunpack.c.l.b16 %v1046
      %v1143 = vunpack.c.l.b16 %v1047
      %v1144 = vunpack.c.l.b16 %v1048
      %v1145 = vunpack.c.l.b16 %v1049
      %v1146 = vunpack.c.l.b16 %v1050
      %v1147 = vunpack.c.l.b16 %v1051
      %v1148 = vunpack.c.l.b16 %v1052
      %v1149 = vpack.c.b16 %v1137, %v1137
      %v1150 = vpack.c.b16 %v1138, %v1138
      %v1151 = vpack.c.b16 %v1139, %v1139
      %v1152 = vpack.c.b16 %v1140, %v1140
      %v1153 = vpack.c.b16 %v1141, %v1141
      %v1154 = vpack.c.b16 %v1142, %v1142
      %v1155 = vpack.c.b16 %v1143, %v1143
      %v1156 = vpack.c.b16 %v1144, %v1144
      %v1157 = vpack.c.b16 %v1145, %v1145
      %v1158 = vpack.c.b16 %v1146, %v1146
      %v1159 = vpack.c.b16 %v1147, %v1147
      %v1160 = vpack.c.b16 %v1148, %v1148
      %vm1161 = vsmask.f32 7424
      %v1163 = vshrl.u32 %v1113, 16
      %v1165 = vshll.u32 %v1113, 16
      %v1167 = vrot.slane %v1165, 1
      %v1168 = vor.u32 %v1163, %v1167
      %v1170 = vshll.u32 %v1149, 16
      %v1172 = vrot.slane %v1170, 1
      %v1173 = vsel %vm1161, %v1168, %v1172
      %v1175 = vshrl.u32 %v1114, 16
      %v1177 = vshll.u32 %v1114, 16
      %v1179 = vrot.slane %v1177, 1
      %v1180 = vor.u32 %v1175, %v1179
      %v1182 = vshll.u32 %v1150, 16
      %v1184 = vrot.slane %v1182, 1
      %v1185 = vsel %vm1161, %v1180, %v1184
      %v1187 = vshrl.u32 %v1115, 16
      %v1189 = vshll.u32 %v1115, 16
      %v1191 = vrot.slane %v1189, 1
      %v1192 = vor.u32 %v1187, %v1191
      %v1194 = vshll.u32 %v1151, 16
      %v1196 = vrot.slane %v1194, 1
      %v1197 = vsel %vm1161, %v1192, %v1196
      %v1199 = vshrl.u32 %v1116, 16
      %v1201 = vshll.u32 %v1116, 16
      %v1203 = vrot.slane %v1201, 1
      %v1204 = vor.u32 %v1199, %v1203
      %v1206 = vshll.u32 %v1152, 16
      %v1208 = vrot.slane %v1206, 1
      %v1209 = vsel %vm1161, %v1204, %v1208
      %v1211 = vshrl.u32 %v1117, 16
      %v1213 = vshll.u32 %v1117, 16
      %v1215 = vrot.slane %v1213, 1
      %v1216 = vor.u32 %v1211, %v1215
      %v1218 = vshll.u32 %v1153, 16
      %v1220 = vrot.slane %v1218, 1
      %v1221 = vsel %vm1161, %v1216, %v1220
      %v1223 = vshrl.u32 %v1118, 16
      %v1225 = vshll.u32 %v1118, 16
      %v1227 = vrot.slane %v1225, 1
      %v1228 = vor.u32 %v1223, %v1227
      %v1230 = vshll.u32 %v1154, 16
      %v1232 = vrot.slane %v1230, 1
      %v1233 = vsel %vm1161, %v1228, %v1232
      %v1235 = vshrl.u32 %v1119, 16
      %v1237 = vshll.u32 %v1119, 16
      %v1239 = vrot.slane %v1237, 1
      %v1240 = vor.u32 %v1235, %v1239
      %v1242 = vshll.u32 %v1155, 16
      %v1244 = vrot.slane %v1242, 1
      %v1245 = vsel %vm1161, %v1240, %v1244
      %v1247 = vshrl.u32 %v1120, 16
      %v1249 = vshll.u32 %v1120, 16
      %v1251 = vrot.slane %v1249, 1
      %v1252 = vor.u32 %v1247, %v1251
      %v1254 = vshll.u32 %v1156, 16
      %v1256 = vrot.slane %v1254, 1
      %v1257 = vsel %vm1161, %v1252, %v1256
      %v1259 = vshrl.u32 %v1121, 16
      %v1261 = vshll.u32 %v1121, 16
      %v1263 = vrot.slane %v1261, 1
      %v1264 = vor.u32 %v1259, %v1263
      %v1266 = vshll.u32 %v1157, 16
      %v1268 = vrot.slane %v1266, 1
      %v1269 = vsel %vm1161, %v1264, %v1268
      %v1271 = vshrl.u32 %v1122, 16
      %v1273 = vshll.u32 %v1122, 16
      %v1275 = vrot.slane %v1273, 1
      %v1276 = vor.u32 %v1271, %v1275
      %v1278 = vshll.u32 %v1158, 16
      %v1280 = vrot.slane %v1278, 1
      %v1281 = vsel %vm1161, %v1276, %v1280
      %v1283 = vshrl.u32 %v1123, 16
      %v1285 = vshll.u32 %v1123, 16
      %v1287 = vrot.slane %v1285, 1
      %v1288 = vor.u32 %v1283, %v1287
      %v1290 = vshll.u32 %v1159, 16
      %v1292 = vrot.slane %v1290, 1
      %v1293 = vsel %vm1161, %v1288, %v1292
      %v1295 = vshrl.u32 %v1124, 16
      %v1297 = vshll.u32 %v1124, 16
      %v1299 = vrot.slane %v1297, 1
      %v1300 = vor.u32 %v1295, %v1299
      %v1302 = vshll.u32 %v1160, 16
      %v1304 = vrot.slane %v1302, 1
      %v1305 = vsel %vm1161, %v1300, %v1304
      %1306 = vrot.lane.b32.xlu0 %v1173, 4
      %v1307 = vpop.permute.xlu0 %1306
      %1308 = vrot.lane.b32.xlu0 %v1185, 4
      %v1309 = vpop.permute.xlu0 %1308
      %1310 = vrot.lane.b32.xlu0 %v1197, 4
      %v1311 = vpop.permute.xlu0 %1310
      %1312 = vrot.lane.b32.xlu0 %v1209, 4
      %v1313 = vpop.permute.xlu0 %1312
      %1314 = vrot.lane.b32.xlu0 %v1221, 4
      %v1315 = vpop.permute.xlu0 %1314
      %1316 = vrot.lane.b32.xlu0 %v1233, 4
      %v1317 = vpop.permute.xlu0 %1316
      %1318 = vrot.lane.b32.xlu0 %v1245, 4
      %v1319 = vpop.permute.xlu0 %1318
      %1320 = vrot.lane.b32.xlu0 %v1257, 4
      %v1321 = vpop.permute.xlu0 %1320
      %1322 = vrot.lane.b32.xlu0 %v1269, 4
      %v1323 = vpop.permute.xlu0 %1322
      %1324 = vrot.lane.b32.xlu0 %v1281, 4
      %v1325 = vpop.permute.xlu0 %1324
      %1326 = vrot.lane.b32.xlu0 %v1293, 4
      %v1327 = vpop.permute.xlu0 %1326
      %1328 = vrot.lane.b32.xlu0 %v1305, 4
      %v1329 = vpop.permute.xlu0 %1328
      %v1342 = vunpack.c.l.b16 %v1053
      %v1343 = vunpack.c.l.b16 %v1054
      %v1344 = vunpack.c.l.b16 %v1055
      %v1345 = vunpack.c.l.b16 %v1056
      %v1346 = vunpack.c.l.b16 %v1057
      %v1347 = vunpack.c.l.b16 %v1058
      %v1348 = vunpack.c.l.b16 %v1059
      %v1349 = vunpack.c.l.b16 %v1060
      %v1350 = vunpack.c.l.b16 %v1061
      %v1351 = vunpack.c.l.b16 %v1062
      %v1352 = vunpack.c.l.b16 %v1063
      %v1353 = vunpack.c.l.b16 %v1064
      %v1354 = vpack.c.b16 %v1090, %v1342
      %v1355 = vpack.c.b16 %v1092, %v1343
      %v1356 = vpack.c.b16 %v1094, %v1344
      %v1357 = vpack.c.b16 %v1096, %v1345
      %v1358 = vpack.c.b16 %v1098, %v1346
      %v1359 = vpack.c.b16 %v1100, %v1347
      %v1360 = vpack.c.b16 %v1102, %v1348
      %v1361 = vpack.c.b16 %v1104, %v1349
      %v1362 = vpack.c.b16 %v1106, %v1350
      %v1363 = vpack.c.b16 %v1108, %v1351
      %v1364 = vpack.c.b16 %v1110, %v1352
      %v1365 = vpack.c.b16 %v1112, %v1353
      %vm1366 = vcmask 1046528
      %v1367 = vrot.slane %v1354, 1
      %v1368 = vrot.slane %v1149, 1
      %v1369 = vsel %vm1366, %v1367, %v1368
      %v1370 = vrot.slane %v1355, 1
      %v1371 = vrot.slane %v1150, 1
      %v1372 = vsel %vm1366, %v1370, %v1371
      %v1373 = vrot.slane %v1356, 1
      %v1374 = vrot.slane %v1151, 1
      %v1375 = vsel %vm1366, %v1373, %v1374
      %v1376 = vrot.slane %v1357, 1
      %v1377 = vrot.slane %v1152, 1
      %v1378 = vsel %vm1366, %v1376, %v1377
      %v1379 = vrot.slane %v1358, 1
      %v1380 = vrot.slane %v1153, 1
      %v1381 = vsel %vm1366, %v1379, %v1380
      %v1382 = vrot.slane %v1359, 1
      %v1383 = vrot.slane %v1154, 1
      %v1384 = vsel %vm1366, %v1382, %v1383
      %v1385 = vrot.slane %v1360, 1
      %v1386 = vrot.slane %v1155, 1
      %v1387 = vsel %vm1366, %v1385, %v1386
      %v1388 = vrot.slane %v1361, 1
      %v1389 = vrot.slane %v1156, 1
      %v1390 = vsel %vm1366, %v1388, %v1389
      %v1391 = vrot.slane %v1362, 1
      %v1392 = vrot.slane %v1157, 1
      %v1393 = vsel %vm1366, %v1391, %v1392
      %v1394 = vrot.slane %v1363, 1
      %v1395 = vrot.slane %v1158, 1
      %v1396 = vsel %vm1366, %v1394, %v1395
      %v1397 = vrot.slane %v1364, 1
      %v1398 = vrot.slane %v1159, 1
      %v1399 = vsel %vm1366, %v1397, %v1398
      %v1400 = vrot.slane %v1365, 1
      %v1401 = vrot.slane %v1160, 1
      %v1402 = vsel %vm1366, %v1400, %v1401
      %1403 = vrot.lane.b32.xlu0 %v1369, 8
      %v1404 = vpop.permute.xlu0 %1403
      %1405 = vrot.lane.b32.xlu0 %v1372, 8
      %v1406 = vpop.permute.xlu0 %1405
      %1407 = vrot.lane.b32.xlu0 %v1375, 8
      %v1408 = vpop.permute.xlu0 %1407
      %1409 = vrot.lane.b32.xlu0 %v1378, 8
      %v1410 = vpop.permute.xlu0 %1409
      %1411 = vrot.lane.b32.xlu0 %v1381, 8
      %v1412 = vpop.permute.xlu0 %1411
      %1413 = vrot.lane.b32.xlu0 %v1384, 8
      %v1414 = vpop.permute.xlu0 %1413
      %1415 = vrot.lane.b32.xlu0 %v1387, 8
      %v1416 = vpop.permute.xlu0 %1415
      %1417 = vrot.lane.b32.xlu0 %v1390, 8
      %v1418 = vpop.permute.xlu0 %1417
      %1419 = vrot.lane.b32.xlu0 %v1393, 8
      %v1420 = vpop.permute.xlu0 %1419
      %1421 = vrot.lane.b32.xlu0 %v1396, 8
      %v1422 = vpop.permute.xlu0 %1421
      %1423 = vrot.lane.b32.xlu0 %v1399, 8
      %v1424 = vpop.permute.xlu0 %1423
      %1425 = vrot.lane.b32.xlu0 %v1402, 8
      %v1426 = vpop.permute.xlu0 %1425
      %vm1427 = vcmask 31744
      %v1429 = vsel %vm1427, %v1113, %v1307
      %v1431 = vsel %vm1427, %v1114, %v1309
      %v1433 = vsel %vm1427, %v1115, %v1311
      %v1435 = vsel %vm1427, %v1116, %v1313
      %v1437 = vsel %vm1427, %v1117, %v1315
      %v1439 = vsel %vm1427, %v1118, %v1317
      %v1441 = vsel %vm1427, %v1119, %v1319
      %v1443 = vsel %vm1427, %v1120, %v1321
      %v1445 = vsel %vm1427, %v1121, %v1323
      %v1447 = vsel %vm1427, %v1122, %v1325
      %v1449 = vsel %vm1427, %v1123, %v1327
      %v1451 = vsel %vm1427, %v1124, %v1329
      %vm1452 = vcmask 64512
      %v1454 = vsel %vm1452, %v1429, %v1404
      %v1456 = vsel %vm1452, %v1431, %v1406
      %v1458 = vsel %vm1452, %v1433, %v1408
      %v1460 = vsel %vm1452, %v1435, %v1410
      %v1462 = vsel %vm1452, %v1437, %v1412
      %v1464 = vsel %vm1452, %v1439, %v1414
      %v1466 = vsel %vm1452, %v1441, %v1416
      %v1468 = vsel %vm1452, %v1443, %v1418
      %v1470 = vsel %vm1452, %v1445, %v1420
      %v1472 = vsel %vm1452, %v1447, %v1422
      %v1474 = vsel %vm1452, %v1449, %v1424
      %v1476 = vsel %vm1452, %v1451, %v1426
      %v1477 = vld [vmem:[%s3] sm:$0xf]
      %v1478 = vld [vmem:[%s3 + $0x4] sm:$0x3]
      %v1479 = vld [vmem:[%s3 + $0x4] sm:$0xc]
      %v1480 = vld [vmem:[%s3 + $0x8] sm:$0xf]
      %v1483 = vunpack.c.l.b16 %v1479
      %v1484 = vunpack.c.l.b16 %v1480
      %v1485 = vpack.c.b16 %v1484, %v1483
      %v1486 = vrot.slane %v1485, 2
      %vm1487 = vcmask 97280
      %v1488 = vsel %vm1487, %v1456, 0
      %v1490 = vsel %vm1487, %v1458, 0
      %v1492 = vsel %vm1487, %v1460, 0
      %v1494 = vsel %vm1487, %v1462, 0
      %v1496 = vsel %vm1487, %v1464, 0
      %v1498 = vsel %vm1487, %v1466, 0
      %v1500 = vsel %vm1487, %v1468, 0
      %v1502 = vsel %vm1487, %v1470, 0
      %v1504 = vsel %vm1487, %v1472, 0
      %v1506 = vsel %vm1487, %v1474, 0
      %vm1508 = vcmask 1045504
      %v1510 = vsel %vm1508, %v1486, 0
      %1512 = vmatprep.subr.bf16.mxu0 0
      %1513 = vmatpush1.bf16.msra.mxu0 %v1510
      %1514 = vmatprep.subr.bf16.mxu0 0
      %1515 = vmatpush1.bf16.msra.mxu0 0
      %1516 = vmatprep.subr.bf16.mxu0 0
      %1517 = vmatpush1.bf16.msra.mxu0 0
      %1518 = vmatprep.subr.bf16.mxu0 0
      %1519 = vmatpush1.bf16.msra.mxu0 0
      %1520 = vmatprep.subr.bf16.mxu0 0
      %1521 = vmatpush1.bf16.msra.mxu0 0
      %1522 = vmatprep.subr.bf16.mxu0 0
      %1523 = vmatpush1.bf16.msra.mxu0 0
      %1524 = vmatprep.subr.bf16.mxu0 0
      %1525 = vmatpush1.bf16.msra.mxu0 0
      %1526 = vmatprep.subr.bf16.mxu0 0
      %1527 = vmatpush1.bf16.msra.mxu0 0
      %1528 = vmatprep.subr.bf16.mxu0 0
      %1529 = vmatpush1.bf16.msra.mxu0 0
      %1530 = vmatprep.subr.bf16.mxu0 0
      %1531 = vmatpush1.bf16.msra.mxu0 0
      %1532 = vmatprep.subr.bf16.mxu0 0
      %1533 = vmatpush1.bf16.msra.mxu0 0
      %1534 = vmatprep.subr.bf16.mxu0 0
      %1535 = vmatpush1.bf16.msra.mxu0 0
      %1536 = vmatprep.subr.bf16.mxu0 0
      %1537 = vmatpush1.bf16.msra.mxu0 0
      %1538 = vmatprep.subr.bf16.mxu0 0
      %1539 = vmatpush1.bf16.msra.mxu0 0
      %1540 = vmatprep.subr.bf16.mxu0 0
      %1541 = vmatpush1.bf16.msra.mxu0 0
      %1542 = vmatprep.subr.bf16.mxu0 0
      %1543 = vmatpush1.bf16.msra.mxu0 0
      %1544 = vmatprep.mubr.bf16.mxu0 0
      %1545 = vmatmul.mubr.bf16.gmra.mrb[0].mxu0 %v1488
      %v1546 = vpop.f32.mrb[0].mxu0
      %v1547 = vadd.f32 0.0, %v1546
      %v1548 = vpop.f32.mrb[0].mxu0
      %v1549 = vpop.f32.mrb[0].mxu0
      %v1550 = vadd.f32 0.0, %v1549
      %v1551 = vpop.f32.mrb[0].mxu0
      %1552 = vmatprep.mubr.bf16.mxu0 0
      %1553 = vmatmul.mubr.bf16.gmra.mrb[0].mxu0 %v1490
      %v1554 = vpop.f32.mrb[0].mxu0
      %v1555 = vadd.f32 0.0, %v1554
      %v1556 = vpop.f32.mrb[0].mxu0
      %v1557 = vpop.f32.mrb[0].mxu0
      %v1558 = vadd.f32 0.0, %v1557
      %v1559 = vpop.f32.mrb[0].mxu0
      %1560 = vmatprep.mubr.bf16.mxu0 0
      %1561 = vmatmul.mubr.bf16.gmra.mrb[0].mxu0 %v1492
      %v1562 = vpop.f32.mrb[0].mxu0
      %v1563 = vadd.f32 0.0, %v1562
      %v1564 = vpop.f32.mrb[0].mxu0
      %v1565 = vpop.f32.mrb[0].mxu0
      %v1566 = vadd.f32 0.0, %v1565
      %v1567 = vpop.f32.mrb[0].mxu0
      %1568 = vmatprep.mubr.bf16.mxu0 0
      %1569 = vmatmul.mubr.bf16.gmra.mrb[0].mxu0 %v1494
      %v1570 = vpop.f32.mrb[0].mxu0
      %v1571 = vadd.f32 0.0, %v1570
      %v1572 = vpop.f32.mrb[0].mxu0
      %v1573 = vpop.f32.mrb[0].mxu0
      %v1574 = vadd.f32 0.0, %v1573
      %v1575 = vpop.f32.mrb[0].mxu0
      %1576 = vmatprep.mubr.bf16.mxu0 0
      %1577 = vmatmul.mubr.bf16.gmra.mrb[0].mxu0 %v1496
      %v1578 = vpop.f32.mrb[0].mxu0
      %v1579 = vadd.f32 0.0, %v1578
      %v1580 = vpop.f32.mrb[0].mxu0
      %v1581 = vpop.f32.mrb[0].mxu0
      %v1582 = vadd.f32 0.0, %v1581
      %v1583 = vpop.f32.mrb[0].mxu0
      %1584 = vmatprep.mubr.bf16.mxu0 0
      %1585 = vmatmul.mubr.bf16.gmra.mrb[0].mxu0 %v1498
      %v1586 = vpop.f32.mrb[0].mxu0
      %v1587 = vadd.f32 0.0, %v1586
      %v1588 = vpop.f32.mrb[0].mxu0
      %v1589 = vpop.f32.mrb[0].mxu0
      %v1590 = vadd.f32 0.0, %v1589
      %v1591 = vpop.f32.mrb[0].mxu0
      %1592 = vmatprep.mubr.bf16.mxu0 0
      %1593 = vmatmul.mubr.bf16.gmra.mrb[0].mxu0 %v1500
      %v1594 = vpop.f32.mrb[0].mxu0
      %v1595 = vadd.f32 0.0, %v1594
      %v1596 = vpop.f32.mrb[0].mxu0
      %v1597 = vpop.f32.mrb[0].mxu0
      %v1598 = vadd.f32 0.0, %v1597
      %v1599 = vpop.f32.mrb[0].mxu0
      %1600 = vmatprep.mubr.bf16.mxu0 0
      %1601 = vmatmul.mubr.bf16.gmra.mrb[0].mxu0 %v1502
      %v1602 = vpop.f32.mrb[0].mxu0
      %v1603 = vadd.f32 0.0, %v1602
      %v1604 = vpop.f32.mrb[0].mxu0
      %v1605 = vpop.f32.mrb[0].mxu0
      %v1606 = vadd.f32 0.0, %v1605
      %v1607 = vpop.f32.mrb[0].mxu0
      %1608 = vmatprep.mubr.bf16.mxu0 0
      %1609 = vmatmul.mubr.bf16.gmra.mrb[0].mxu0 %v1504
      %v1610 = vpop.f32.mrb[0].mxu0
      %v1611 = vadd.f32 0.0, %v1610
      %v1612 = vpop.f32.mrb[0].mxu0
      %v1613 = vpop.f32.mrb[0].mxu0
      %v1614 = vadd.f32 0.0, %v1613
      %v1615 = vpop.f32.mrb[0].mxu0
      %1616 = vmatprep.mubr.bf16.mxu0 0
      %1617 = vmatmul.mubr.bf16.gmra.mrb[0].mxu0 %v1506
      %v1618 = vpop.f32.mrb[0].mxu0
      %v1619 = vadd.f32 0.0, %v1618
      %v1620 = vpop.f32.mrb[0].mxu0
      %v1621 = vpop.f32.mrb[0].mxu0
      %v1622 = vadd.f32 0.0, %v1621
      %v1623 = vpop.f32.mrb[0].mxu0
      %1624 = vdwg.mxu0
      %v1627 = vunpack.c.l.b16 %v1477
      %v1628 = vunpack.c.l.b16 %v1478
      %v1629 = vpack.c.b16 %v1628, %v1627
      %v1630 = vsel %vm1487, %v1454, 0
      %v1633 = vsel %vm1508, %v1629, 0
      %1635 = vmatprep.subr.bf16.mxu0 0
      %1636 = vmatpush1.bf16.msra.mxu0 %v1633
      %1637 = vmatprep.subr.bf16.mxu0 0
      %1638 = vmatpush1.bf16.msra.mxu0 0
      %1639 = vmatprep.subr.bf16.mxu0 0
      %1640 = vmatpush1.bf16.msra.mxu0 0
      %1641 = vmatprep.subr.bf16.mxu0 0
      %1642 = vmatpush1.bf16.msra.mxu0 0
      %1643 = vmatprep.subr.bf16.mxu0 0
      %1644 = vmatpush1.bf16.msra.mxu0 0
      %1645 = vmatprep.subr.bf16.mxu0 0
      %1646 = vmatpush1.bf16.msra.mxu0 0
      %1647 = vmatprep.subr.bf16.mxu0 0
      %1648 = vmatpush1.bf16.msra.mxu0 0
      %1649 = vmatprep.subr.bf16.mxu0 0
      %1650 = vmatpush1.bf16.msra.mxu0 0
      %1651 = vmatprep.subr.bf16.mxu0 0
      %1652 = vmatpush1.bf16.msra.mxu0 0
      %1653 = vmatprep.subr.bf16.mxu0 0
      %1654 = vmatpush1.bf16.msra.mxu0 0
      %1655 = vmatprep.subr.bf16.mxu0 0
      %1656 = vmatpush1.bf16.msra.mxu0 0
      %1657 = vmatprep.subr.bf16.mxu0 0
      %1658 = vmatpush1.bf16.msra.mxu0 0
      %1659 = vmatprep.subr.bf16.mxu0 0
      %1660 = vmatpush1.bf16.msra.mxu0 0
      %1661 = vmatprep.subr.bf16.mxu0 0
      %1662 = vmatpush1.bf16.msra.mxu0 0
      %1663 = vmatprep.subr.bf16.mxu0 0
      %1664 = vmatpush1.bf16.msra.mxu0 0
      %1665 = vmatprep.subr.bf16.mxu0 0
      %1666 = vmatpush1.bf16.msra.mxu0 0
      %1667 = vmatprep.mubr.bf16.mxu0 0
      %1668 = vmatmul.mubr.bf16.gmra.mrb[0].mxu0 %v1630
      %v1669 = vpop.f32.mrb[0].mxu0
      %v1670 = vadd.f32 %v1547, %v1669
      %v1671 = vpop.f32.mrb[0].mxu0
      %v1672 = vpop.f32.mrb[0].mxu0
      %v1673 = vadd.f32 %v1550, %v1672
      %v1674 = vpop.f32.mrb[0].mxu0
      %1675 = vmatprep.mubr.bf16.mxu0 0
      %1676 = vmatmul.mubr.bf16.gmra.mrb[0].mxu0 %v1488
      %v1677 = vpop.f32.mrb[0].mxu0
      %v1678 = vadd.f32 %v1555, %v1677
      %v1679 = vpop.f32.mrb[0].mxu0
      %v1680 = vpop.f32.mrb[0].mxu0
      %v1681 = vadd.f32 %v1558, %v1680
      %v1682 = vpop.f32.mrb[0].mxu0
      %1683 = vmatprep.mubr.bf16.mxu0 0
      %1684 = vmatmul.mubr.bf16.gmra.mrb[0].mxu0 %v1490
      %v1685 = vpop.f32.mrb[0].mxu0
      %v1686 = vadd.f32 %v1563, %v1685
      %v1687 = vpop.f32.mrb[0].mxu0
      %v1688 = vpop.f32.mrb[0].mxu0
      %v1689 = vadd.f32 %v1566, %v1688
      %v1690 = vpop.f32.mrb[0].mxu0
      %1691 = vmatprep.mubr.bf16.mxu0 0
      %1692 = vmatmul.mubr.bf16.gmra.mrb[0].mxu0 %v1492
      %v1693 = vpop.f32.mrb[0].mxu0
      %v1694 = vadd.f32 %v1571, %v1693
      %v1695 = vpop.f32.mrb[0].mxu0
      %v1696 = vpop.f32.mrb[0].mxu0
      %v1697 = vadd.f32 %v1574, %v1696
      %v1698 = vpop.f32.mrb[0].mxu0
      %1699 = vmatprep.mubr.bf16.mxu0 0
      %1700 = vmatmul.mubr.bf16.gmra.mrb[0].mxu0 %v1494
      %v1701 = vpop.f32.mrb[0].mxu0
      %v1702 = vadd.f32 %v1579, %v1701
      %v1703 = vpop.f32.mrb[0].mxu0
      %v1704 = vpop.f32.mrb[0].mxu0
      %v1705 = vadd.f32 %v1582, %v1704
      %v1706 = vpop.f32.mrb[0].mxu0
      %1707 = vmatprep.mubr.bf16.mxu0 0
      %1708 = vmatmul.mubr.bf16.gmra.mrb[0].mxu0 %v1496
      %v1709 = vpop.f32.mrb[0].mxu0
      %v1710 = vadd.f32 %v1587, %v1709
      %v1711 = vpop.f32.mrb[0].mxu0
      %v1712 = vpop.f32.mrb[0].mxu0
      %v1713 = vadd.f32 %v1590, %v1712
      %v1714 = vpop.f32.mrb[0].mxu0
      %1715 = vmatprep.mubr.bf16.mxu0 0
      %1716 = vmatmul.mubr.bf16.gmra.mrb[0].mxu0 %v1498
      %v1717 = vpop.f32.mrb[0].mxu0
      %v1718 = vadd.f32 %v1595, %v1717
      %v1719 = vpop.f32.mrb[0].mxu0
      %v1720 = vpop.f32.mrb[0].mxu0
      %v1721 = vadd.f32 %v1598, %v1720
      %v1722 = vpop.f32.mrb[0].mxu0
      %1723 = vmatprep.mubr.bf16.mxu0 0
      %1724 = vmatmul.mubr.bf16.gmra.mrb[0].mxu0 %v1500
      %v1725 = vpop.f32.mrb[0].mxu0
      %v1726 = vadd.f32 %v1603, %v1725
      %v1727 = vpop.f32.mrb[0].mxu0
      %v1728 = vpop.f32.mrb[0].mxu0
      %v1729 = vadd.f32 %v1606, %v1728
      %v1730 = vpop.f32.mrb[0].mxu0
      %1731 = vmatprep.mubr.bf16.mxu0 0
      %1732 = vmatmul.mubr.bf16.gmra.mrb[0].mxu0 %v1502
      %v1733 = vpop.f32.mrb[0].mxu0
      %v1734 = vadd.f32 %v1611, %v1733
      %v1735 = vpop.f32.mrb[0].mxu0
      %v1736 = vpop.f32.mrb[0].mxu0
      %v1737 = vadd.f32 %v1614, %v1736
      %v1738 = vpop.f32.mrb[0].mxu0
      %1739 = vmatprep.mubr.bf16.mxu0 0
      %1740 = vmatmul.mubr.bf16.gmra.mrb[0].mxu0 %v1504
      %v1741 = vpop.f32.mrb[0].mxu0
      %v1742 = vadd.f32 %v1619, %v1741
      %v1743 = vpop.f32.mrb[0].mxu0
      %v1744 = vpop.f32.mrb[0].mxu0
      %v1745 = vadd.f32 %v1622, %v1744
      %v1746 = vpop.f32.mrb[0].mxu0
      %1747 = vdwg.mxu0
      %v1748 = vld [vmem:[%s3 + $0xc] sm:$0xf]
      %v1749 = vld [vmem:[%s3 + $0x10] sm:$0x3]
      %v1752 = vunpack.c.l.b16 %v1748
      %v1753 = vunpack.c.l.b16 %v1749
      %v1754 = vpack.c.b16 %v1753, %v1752
      %v1755 = vsel %vm1487, %v1476, 0
      %v1758 = vsel %vm1508, %v1754, 0
      %1760 = vmatprep.subr.bf16.mxu0 0
      %1761 = vmatpush1.bf16.msra.mxu0 %v1758
      %1762 = vmatprep.subr.bf16.mxu0 0
      %1763 = vmatpush1.bf16.msra.mxu0 0
      %1764 = vmatprep.subr.bf16.mxu0 0
      %1765 = vmatpush1.bf16.msra.mxu0 0
      %1766 = vmatprep.subr.bf16.mxu0 0
      %1767 = vmatpush1.bf16.msra.mxu0 0
      %1768 = vmatprep.subr.bf16.mxu0 0
      %1769 = vmatpush1.bf16.msra.mxu0 0
      %1770 = vmatprep.subr.bf16.mxu0 0
      %1771 = vmatpush1.bf16.msra.mxu0 0
      %1772 = vmatprep.subr.bf16.mxu0 0
      %1773 = vmatpush1.bf16.msra.mxu0 0
      %1774 = vmatprep.subr.bf16.mxu0 0
      %1775 = vmatpush1.bf16.msra.mxu0 0
      %1776 = vmatprep.subr.bf16.mxu0 0
      %1777 = vmatpush1.bf16.msra.mxu0 0
      %1778 = vmatprep.subr.bf16.mxu0 0
      %1779 = vmatpush1.bf16.msra.mxu0 0
      %1780 = vmatprep.subr.bf16.mxu0 0
      %1781 = vmatpush1.bf16.msra.mxu0 0
      %1782 = vmatprep.subr.bf16.mxu0 0
      %1783 = vmatpush1.bf16.msra.mxu0 0
      %1784 = vmatprep.subr.bf16.mxu0 0
      %1785 = vmatpush1.bf16.msra.mxu0 0
      %1786 = vmatprep.subr.bf16.mxu0 0
      %1787 = vmatpush1.bf16.msra.mxu0 0
      %1788 = vmatprep.subr.bf16.mxu0 0
      %1789 = vmatpush1.bf16.msra.mxu0 0
      %1790 = vmatprep.subr.bf16.mxu0 0
      %1791 = vmatpush1.bf16.msra.mxu0 0
      %1792 = vmatprep.mubr.bf16.mxu0 0
      %1793 = vmatmul.mubr.bf16.gmra.mrb[0].mxu0 %v1490
      %v1794 = vpop.f32.mrb[0].mxu0
      %v1795 = vadd.f32 0.0, %v1794
      %v1796 = vpop.f32.mrb[0].mxu0
      %v1797 = vpop.f32.mrb[0].mxu0
      %v1798 = vadd.f32 0.0, %v1797
      %v1799 = vpop.f32.mrb[0].mxu0
      %1800 = vmatprep.mubr.bf16.mxu0 0
      %1801 = vmatmul.mubr.bf16.gmra.mrb[0].mxu0 %v1492
      %v1802 = vpop.f32.mrb[0].mxu0
      %v1803 = vadd.f32 0.0, %v1802
      %v1804 = vpop.f32.mrb[0].mxu0
      %v1805 = vpop.f32.mrb[0].mxu0
      %v1806 = vadd.f32 0.0, %v1805
      %v1807 = vpop.f32.mrb[0].mxu0
      %1808 = vmatprep.mubr.bf16.mxu0 0
      %1809 = vmatmul.mubr.bf16.gmra.mrb[0].mxu0 %v1494
      %v1810 = vpop.f32.mrb[0].mxu0
      %v1811 = vadd.f32 0.0, %v1810
      %v1812 = vpop.f32.mrb[0].mxu0
      %v1813 = vpop.f32.mrb[0].mxu0
      %v1814 = vadd.f32 0.0, %v1813
      %v1815 = vpop.f32.mrb[0].mxu0
      %1816 = vmatprep.mubr.bf16.mxu0 0
      %1817 = vmatmul.mubr.bf16.gmra.mrb[0].mxu0 %v1496
      %v1818 = vpop.f32.mrb[0].mxu0
      %v1819 = vadd.f32 0.0, %v1818
      %v1820 = vpop.f32.mrb[0].mxu0
      %v1821 = vpop.f32.mrb[0].mxu0
      %v1822 = vadd.f32 0.0, %v1821
      %v1823 = vpop.f32.mrb[0].mxu0
      %1824 = vmatprep.mubr.bf16.mxu0 0
      %1825 = vmatmul.mubr.bf16.gmra.mrb[0].mxu0 %v1498
      %v1826 = vpop.f32.mrb[0].mxu0
      %v1827 = vadd.f32 0.0, %v1826
      %v1828 = vpop.f32.mrb[0].mxu0
      %v1829 = vpop.f32.mrb[0].mxu0
      %v1830 = vadd.f32 0.0, %v1829
      %v1831 = vpop.f32.mrb[0].mxu0
      %1832 = vmatprep.mubr.bf16.mxu0 0
      %1833 = vmatmul.mubr.bf16.gmra.mrb[0].mxu0 %v1500
      %v1834 = vpop.f32.mrb[0].mxu0
      %v1835 = vadd.f32 0.0, %v1834
      %v1836 = vpop.f32.mrb[0].mxu0
      %v1837 = vpop.f32.mrb[0].mxu0
      %v1838 = vadd.f32 0.0, %v1837
      %v1839 = vpop.f32.mrb[0].mxu0
      %1840 = vmatprep.mubr.bf16.mxu0 0
      %1841 = vmatmul.mubr.bf16.gmra.mrb[0].mxu0 %v1502
      %v1842 = vpop.f32.mrb[0].mxu0
      %v1843 = vadd.f32 0.0, %v1842
      %v1844 = vpop.f32.mrb[0].mxu0
      %v1845 = vpop.f32.mrb[0].mxu0
      %v1846 = vadd.f32 0.0, %v1845
      %v1847 = vpop.f32.mrb[0].mxu0
      %1848 = vmatprep.mubr.bf16.mxu0 0
      %1849 = vmatmul.mubr.bf16.gmra.mrb[0].mxu0 %v1504
      %v1850 = vpop.f32.mrb[0].mxu0
      %v1851 = vadd.f32 0.0, %v1850
      %v1852 = vpop.f32.mrb[0].mxu0
      %v1853 = vpop.f32.mrb[0].mxu0
      %v1854 = vadd.f32 0.0, %v1853
      %v1855 = vpop.f32.mrb[0].mxu0
      %1856 = vmatprep.mubr.bf16.mxu0 0
      %1857 = vmatmul.mubr.bf16.gmra.mrb[0].mxu0 %v1506
      %v1858 = vpop.f32.mrb[0].mxu0
      %v1859 = vadd.f32 0.0, %v1858
      %v1860 = vpop.f32.mrb[0].mxu0
      %v1861 = vpop.f32.mrb[0].mxu0
      %v1862 = vadd.f32 0.0, %v1861
      %v1863 = vpop.f32.mrb[0].mxu0
      %1864 = vmatprep.mubr.bf16.mxu0 0
      %1865 = vmatmul.mubr.bf16.gmra.mrb[0].mxu0 %v1755
      %v1866 = vpop.f32.mrb[0].mxu0
      %v1867 = vadd.f32 0.0, %v1866
      %v1868 = vpop.f32.mrb[0].mxu0
      %v1869 = vpop.f32.mrb[0].mxu0
      %v1870 = vadd.f32 0.0, %v1869
      %v1871 = vpop.f32.mrb[0].mxu0
      %1872 = vdwg.mxu0
      %v1873 = vadd.f32 %v1670, %v1795
      %v1874 = vadd.f32 %v1673, %v1798
      %v1875 = vadd.f32 %v1678, %v1803
      %v1876 = vadd.f32 %v1681, %v1806
      %v1877 = vadd.f32 %v1686, %v1811
      %v1878 = vadd.f32 %v1689, %v1814
      %v1879 = vadd.f32 %v1694, %v1819
      %v1880 = vadd.f32 %v1697, %v1822
      %v1881 = vadd.f32 %v1702, %v1827
      %v1882 = vadd.f32 %v1705, %v1830
      %v1883 = vadd.f32 %v1710, %v1835
      %v1884 = vadd.f32 %v1713, %v1838
      %v1885 = vadd.f32 %v1718, %v1843
      %v1886 = vadd.f32 %v1721, %v1846
      %v1887 = vadd.f32 %v1726, %v1851
      %v1888 = vadd.f32 %v1729, %v1854
      %v1889 = vadd.f32 %v1734, %v1859
      %v1890 = vadd.f32 %v1737, %v1862
      %v1891 = vadd.f32 %v1742, %v1867
      %v1892 = vadd.f32 %v1745, %v1870
      %v1893 = vld [vmem:[%s5] sm:$0x1]
      %v1894 = vlaneseq
      %v1895 = vshrl.u32 %v1894, 7
      %v1896 = vsub.s32 0, %v1895
      %v1897 = vrot.slane %v1893, %v1896
      %v1898 = vmul.f32 %v1873, %v1897
      %v1899 = vmul.f32 %v1874, %v1897
      %v1900 = vmul.f32 %v1875, %v1897
      %v1901 = vmul.f32 %v1876, %v1897
      %v1902 = vmul.f32 %v1877, %v1897
      %v1903 = vmul.f32 %v1878, %v1897
      %v1904 = vmul.f32 %v1879, %v1897
      %v1905 = vmul.f32 %v1880, %v1897
      %v1906 = vmul.f32 %v1881, %v1897
      %v1907 = vmul.f32 %v1882, %v1897
      %v1908 = vmul.f32 %v1883, %v1897
      %v1909 = vmul.f32 %v1884, %v1897
      %v1910 = vmul.f32 %v1885, %v1897
      %v1911 = vmul.f32 %v1886, %v1897
      %v1912 = vmul.f32 %v1887, %v1897
      %v1913 = vmul.f32 %v1888, %v1897
      %v1914 = vmul.f32 %v1889, %v1897
      %v1915 = vmul.f32 %v1890, %v1897
      %v1916 = vmul.f32 %v1891, %v1897
      %v1917 = vmul.f32 %v1892, %v1897
      %v1918 = vld [vmem:[%s5 + $0x1] sm:$0x1]
      %v1919 = vlaneseq
      %v1920 = vshrl.u32 %v1919, 7
      %v1921 = vsub.s32 0, %v1920
      %v1922 = vrot.slane %v1918, %v1921
      %v1923 = vadd.f32 %v1898, %v1922
      %v1924 = vadd.f32 %v1899, %v1922
      %v1925 = vadd.f32 %v1900, %v1922
      %v1926 = vadd.f32 %v1901, %v1922
      %v1927 = vadd.f32 %v1902, %v1922
      %v1928 = vadd.f32 %v1903, %v1922
      %v1929 = vadd.f32 %v1904, %v1922
      %v1930 = vadd.f32 %v1905, %v1922
      %v1931 = vadd.f32 %v1906, %v1922
      %v1932 = vadd.f32 %v1907, %v1922
      %v1933 = vadd.f32 %v1908, %v1922
      %v1934 = vadd.f32 %v1909, %v1922
      %v1935 = vadd.f32 %v1910, %v1922
      %v1936 = vadd.f32 %v1911, %v1922
      %v1937 = vadd.f32 %v1912, %v1922
      %v1938 = vadd.f32 %v1913, %v1922
      %v1939 = vadd.f32 %v1914, %v1922
      %v1940 = vadd.f32 %v1915, %v1922
      %v1941 = vadd.f32 %v1916, %v1922
      %v1942 = vadd.f32 %v1917, %v1922
      %v1943 = vmax.f32 %v1923, 0.0
      %v1944 = vmax.f32 %v1924, 0.0
      %v1945 = vmax.f32 %v1925, 0.0
      %v1946 = vmax.f32 %v1926, 0.0
      %v1947 = vmax.f32 %v1927, 0.0
      %v1948 = vmax.f32 %v1928, 0.0
      %v1949 = vmax.f32 %v1929, 0.0
      %v1950 = vmax.f32 %v1930, 0.0
      %v1951 = vmax.f32 %v1931, 0.0
      %v1952 = vmax.f32 %v1932, 0.0
      %v1953 = vmax.f32 %v1933, 0.0
      %v1954 = vmax.f32 %v1934, 0.0
      %v1955 = vmax.f32 %v1935, 0.0
      %v1956 = vmax.f32 %v1936, 0.0
      %v1957 = vmax.f32 %v1937, 0.0
      %v1958 = vmax.f32 %v1938, 0.0
      %v1959 = vmax.f32 %v1939, 0.0
      %v1960 = vmax.f32 %v1940, 0.0
      %v1961 = vmax.f32 %v1941, 0.0
      %v1962 = vmax.f32 %v1942, 0.0
      %v1963 = vpack.c.bf16 %v1944, %v1943
      %v1964 = vpack.c.bf16 %v1946, %v1945
      %v1965 = vpack.c.bf16 %v1948, %v1947
      %v1966 = vpack.c.bf16 %v1950, %v1949
      %v1967 = vpack.c.bf16 %v1952, %v1951
      %v1968 = vpack.c.bf16 %v1954, %v1953
      %v1969 = vpack.c.bf16 %v1956, %v1955
      %v1970 = vpack.c.bf16 %v1958, %v1957
      %v1971 = vpack.c.bf16 %v1960, %v1959
      %v1972 = vpack.c.bf16 %v1962, %v1961
      %v1983 = vunpack.c.l.b16 %v1963
      %v1984 = vunpack.c.h.b16 %v1963
      %v1985 = vunpack.c.l.b16 %v1964
      %v1986 = vunpack.c.h.b16 %v1964
      %v1987 = vunpack.c.l.b16 %v1965
      %v1988 = vunpack.c.h.b16 %v1965
      %v1989 = vunpack.c.l.b16 %v1966
      %v1990 = vunpack.c.h.b16 %v1966
      %v1991 = vunpack.c.l.b16 %v1967
      %v1992 = vunpack.c.h.b16 %v1967
      %v1993 = vunpack.c.l.b16 %v1968
      %v1994 = vunpack.c.h.b16 %v1968
      %v1995 = vunpack.c.l.b16 %v1969
      %v1996 = vunpack.c.h.b16 %v1969
      %v1997 = vunpack.c.l.b16 %v1970
      %v1998 = vunpack.c.h.b16 %v1970
      %v1999 = vunpack.c.l.b16 %v1971
      %v2000 = vunpack.c.h.b16 %v1971
      %v2001 = vunpack.c.l.b16 %v1972
      %v2002 = vunpack.c.h.b16 %v1972
      %v2003 = vpack.c.b16 %v1983, %v1983
      %v2004 = vpack.c.b16 %v1984, %v1984
      %v2005 = vpack.c.b16 %v1985, %v1985
      %v2006 = vpack.c.b16 %v1986, %v1986
      %v2007 = vpack.c.b16 %v1987, %v1987
      %v2008 = vpack.c.b16 %v1988, %v1988
      %v2009 = vpack.c.b16 %v1989, %v1989
      %v2010 = vpack.c.b16 %v1990, %v1990
      %v2011 = vpack.c.b16 %v1991, %v1991
      %v2012 = vpack.c.b16 %v1992, %v1992
      %v2013 = vpack.c.b16 %v1993, %v1993
      %v2014 = vpack.c.b16 %v1994, %v1994
      %v2015 = vpack.c.b16 %v1995, %v1995
      %v2016 = vpack.c.b16 %v1996, %v1996
      %v2017 = vpack.c.b16 %v1997, %v1997
      %v2018 = vpack.c.b16 %v1998, %v1998
      %v2019 = vpack.c.b16 %v1999, %v1999
      %v2020 = vpack.c.b16 %v2000, %v2000
      %v2021 = vpack.c.b16 %v2001, %v2001
      %v2022 = vpack.c.b16 %v2002, %v2002
      %v2024 = vshrl.u32 %v2003, 16
      %v2026 = vrot.slane %v2024, 7
      %v2027 = vshll.u32 %v2003, 16
      %v2029 = vor.u32 %v2026, %v2027
      %v2030 = vrot.slane %v2026, 4
      %v2032 = vshrl.u32 %v2004, 16
      %v2034 = vrot.slane %v2032, 7
      %v2035 = vshll.u32 %v2004, 16
      %v2037 = vor.u32 %v2034, %v2035
      %v2038 = vsel %vm585, %v2030, %v2037
      %v2039 = vrot.slane %v2034, 4
      %v2041 = vshrl.u32 %v2005, 16
      %v2043 = vrot.slane %v2041, 7
      %v2044 = vshll.u32 %v2005, 16
      %v2046 = vor.u32 %v2043, %v2044
      %v2047 = vrot.slane %v2043, 4
      %v2049 = vshrl.u32 %v2006, 16
      %v2051 = vrot.slane %v2049, 7
      %v2052 = vshll.u32 %v2006, 16
      %v2054 = vor.u32 %v2051, %v2052
      %v2055 = vsel %vm585, %v2047, %v2054
      %v2056 = vrot.slane %v2051, 4
      %v2058 = vshrl.u32 %v2007, 16
      %v2060 = vrot.slane %v2058, 7
      %v2061 = vshll.u32 %v2007, 16
      %v2063 = vor.u32 %v2060, %v2061
      %v2064 = vrot.slane %v2060, 4
      %v2066 = vshrl.u32 %v2008, 16
      %v2068 = vrot.slane %v2066, 7
      %v2069 = vshll.u32 %v2008, 16
      %v2071 = vor.u32 %v2068, %v2069
      %v2072 = vsel %vm585, %v2064, %v2071
      %v2073 = vrot.slane %v2068, 4
      %v2075 = vshrl.u32 %v2009, 16
      %v2077 = vrot.slane %v2075, 7
      %v2078 = vshll.u32 %v2009, 16
      %v2080 = vor.u32 %v2077, %v2078
      %v2081 = vrot.slane %v2077, 4
      %v2083 = vshrl.u32 %v2010, 16
      %v2085 = vrot.slane %v2083, 7
      %v2086 = vshll.u32 %v2010, 16
      %v2088 = vor.u32 %v2085, %v2086
      %v2089 = vsel %vm585, %v2081, %v2088
      %v2090 = vrot.slane %v2085, 4
      %v2092 = vshrl.u32 %v2011, 16
      %v2094 = vrot.slane %v2092, 7
      %v2095 = vshll.u32 %v2011, 16
      %v2097 = vor.u32 %v2094, %v2095
      %v2098 = vrot.slane %v2094, 4
      %v2100 = vshrl.u32 %v2012, 16
      %v2102 = vrot.slane %v2100, 7
      %v2103 = vshll.u32 %v2012, 16
      %v2105 = vor.u32 %v2102, %v2103
      %v2106 = vsel %vm585, %v2098, %v2105
      %v2107 = vrot.slane %v2102, 4
      %v2109 = vshrl.u32 %v2013, 16
      %v2111 = vrot.slane %v2109, 7
      %v2112 = vshll.u32 %v2013, 16
      %v2114 = vor.u32 %v2111, %v2112
      %v2115 = vrot.slane %v2111, 4
      %v2117 = vshrl.u32 %v2014, 16
      %v2119 = vrot.slane %v2117, 7
      %v2120 = vshll.u32 %v2014, 16
      %v2122 = vor.u32 %v2119, %v2120
      %v2123 = vsel %vm585, %v2115, %v2122
      %v2124 = vrot.slane %v2119, 4
      %v2126 = vshrl.u32 %v2015, 16
      %v2128 = vrot.slane %v2126, 7
      %v2129 = vshll.u32 %v2015, 16
      %v2131 = vor.u32 %v2128, %v2129
      %v2132 = vrot.slane %v2128, 4
      %v2134 = vshrl.u32 %v2016, 16
      %v2136 = vrot.slane %v2134, 7
      %v2137 = vshll.u32 %v2016, 16
      %v2139 = vor.u32 %v2136, %v2137
      %v2140 = vsel %vm585, %v2132, %v2139
      %v2141 = vrot.slane %v2136, 4
      %v2143 = vshrl.u32 %v2017, 16
      %v2145 = vrot.slane %v2143, 7
      %v2146 = vshll.u32 %v2017, 16
      %v2148 = vor.u32 %v2145, %v2146
      %v2149 = vrot.slane %v2145, 4
      %v2151 = vshrl.u32 %v2018, 16
      %v2153 = vrot.slane %v2151, 7
      %v2154 = vshll.u32 %v2018, 16
      %v2156 = vor.u32 %v2153, %v2154
      %v2157 = vsel %vm585, %v2149, %v2156
      %v2158 = vrot.slane %v2153, 4
      %v2160 = vshrl.u32 %v2019, 16
      %v2162 = vrot.slane %v2160, 7
      %v2163 = vshll.u32 %v2019, 16
      %v2165 = vor.u32 %v2162, %v2163
      %v2166 = vrot.slane %v2162, 4
      %v2168 = vshrl.u32 %v2020, 16
      %v2170 = vrot.slane %v2168, 7
      %v2171 = vshll.u32 %v2020, 16
      %v2173 = vor.u32 %v2170, %v2171
      %v2174 = vsel %vm585, %v2166, %v2173
      %v2175 = vrot.slane %v2170, 4
      %v2177 = vshrl.u32 %v2021, 16
      %v2179 = vrot.slane %v2177, 7
      %v2180 = vshll.u32 %v2021, 16
      %v2182 = vor.u32 %v2179, %v2180
      %v2183 = vrot.slane %v2179, 4
      %v2185 = vshrl.u32 %v2022, 16
      %v2187 = vrot.slane %v2185, 7
      %v2188 = vshll.u32 %v2022, 16
      %v2190 = vor.u32 %v2187, %v2188
      %v2191 = vsel %vm585, %v2183, %v2190
      %v2192 = vrot.slane %v2187, 4
      %v2223 = vld [vmem:[#allocation3] sm:$0xf]
      %v2224 = vsel %vm627, %v2029, %v2223
      %2225 = vst [vmem:[#allocation3] sm:$0xf] %v2224
      %2226 = vst.msk [vmem:[#allocation3 + $0x4] sm:$0xf] %vm631, %v2038
      %v2227 = vld [vmem:[#allocation3 + $0x8] sm:$0x1]
      %v2228 = vsel %vm433, %v2039, %v2227
      %2229 = vst [vmem:[#allocation3 + $0x8] sm:$0x1] %v2228
      %v2230 = vld [vmem:[#allocation3 + $0xc] sm:$0xf]
      %v2231 = vsel %vm627, %v2046, %v2230
      %2232 = vst [vmem:[#allocation3 + $0xc] sm:$0xf] %v2231
      %2233 = vst.msk [vmem:[#allocation3 + $0x10] sm:$0xf] %vm631, %v2055
      %v2234 = vld [vmem:[#allocation3 + $0x14] sm:$0x1]
      %v2235 = vsel %vm433, %v2056, %v2234
      %2236 = vst [vmem:[#allocation3 + $0x14] sm:$0x1] %v2235
      %v2237 = vld [vmem:[#allocation3 + $0x18] sm:$0xf]
      %v2238 = vsel %vm627, %v2063, %v2237
      %2239 = vst [vmem:[#allocation3 + $0x18] sm:$0xf] %v2238
      %2240 = vst.msk [vmem:[#allocation3 + $0x1c] sm:$0xf] %vm631, %v2072
      %v2241 = vld [vmem:[#allocation3 + $0x20] sm:$0x1]
      %v2242 = vsel %vm433, %v2073, %v2241
      %2243 = vst [vmem:[#allocation3 + $0x20] sm:$0x1] %v2242
      %v2244 = vld [vmem:[#allocation3 + $0x24] sm:$0xf]
      %v2245 = vsel %vm627, %v2080, %v2244
      %2246 = vst [vmem:[#allocation3 + $0x24] sm:$0xf] %v2245
      %2247 = vst.msk [vmem:[#allocation3 + $0x28] sm:$0xf] %vm631, %v2089
      %v2248 = vld [vmem:[#allocation3 + $0x2c] sm:$0x1]
      %v2249 = vsel %vm433, %v2090, %v2248
      %2250 = vst [vmem:[#allocation3 + $0x2c] sm:$0x1] %v2249
      %v2251 = vld [vmem:[#allocation3 + $0x30] sm:$0xf]
      %v2252 = vsel %vm627, %v2097, %v2251
      %2253 = vst [vmem:[#allocation3 + $0x30] sm:$0xf] %v2252
      %2254 = vst.msk [vmem:[#allocation3 + $0x34] sm:$0xf] %vm631, %v2106
      %v2255 = vld [vmem:[#allocation3 + $0x38] sm:$0x1]
      %v2256 = vsel %vm433, %v2107, %v2255
      %2257 = vst [vmem:[#allocation3 + $0x38] sm:$0x1] %v2256
      %v2258 = vld [vmem:[#allocation3 + $0x3c] sm:$0xf]
      %v2259 = vsel %vm627, %v2114, %v2258
      %2260 = vst [vmem:[#allocation3 + $0x3c] sm:$0xf] %v2259
      %2261 = vst.msk [vmem:[#allocation3 + $0x40] sm:$0xf] %vm631, %v2123
      %v2262 = vld [vmem:[#allocation3 + $0x44] sm:$0x1]
      %v2263 = vsel %vm433, %v2124, %v2262
      %2264 = vst [vmem:[#allocation3 + $0x44] sm:$0x1] %v2263
      %v2265 = vld [vmem:[#allocation3 + $0x48] sm:$0xf]
      %v2266 = vsel %vm627, %v2131, %v2265
      %2267 = vst [vmem:[#allocation3 + $0x48] sm:$0xf] %v2266
      %2268 = vst.msk [vmem:[#allocation3 + $0x4c] sm:$0xf] %vm631, %v2140
      %v2269 = vld [vmem:[#allocation3 + $0x50] sm:$0x1]
      %v2270 = vsel %vm433, %v2141, %v2269
      %2271 = vst [vmem:[#allocation3 + $0x50] sm:$0x1] %v2270
      %v2272 = vld [vmem:[#allocation3 + $0x54] sm:$0xf]
      %v2273 = vsel %vm627, %v2148, %v2272
      %2274 = vst [vmem:[#allocation3 + $0x54] sm:$0xf] %v2273
      %2275 = vst.msk [vmem:[#allocation3 + $0x58] sm:$0xf] %vm631, %v2157
      %v2276 = vld [vmem:[#allocation3 + $0x5c] sm:$0x1]
      %v2277 = vsel %vm433, %v2158, %v2276
      %2278 = vst [vmem:[#allocation3 + $0x5c] sm:$0x1] %v2277
      %v2279 = vld [vmem:[#allocation3 + $0x60] sm:$0xf]
      %v2280 = vsel %vm627, %v2165, %v2279
      %2281 = vst [vmem:[#allocation3 + $0x60] sm:$0xf] %v2280
      %2282 = vst.msk [vmem:[#allocation3 + $0x64] sm:$0xf] %vm631, %v2174
      %v2283 = vld [vmem:[#allocation3 + $0x68] sm:$0x1]
      %v2284 = vsel %vm433, %v2175, %v2283
      %2285 = vst [vmem:[#allocation3 + $0x68] sm:$0x1] %v2284
      %v2286 = vld [vmem:[#allocation3 + $0x6c] sm:$0xf]
      %v2287 = vsel %vm627, %v2182, %v2286
      %2288 = vst [vmem:[#allocation3 + $0x6c] sm:$0xf] %v2287
      %2289 = vst.msk [vmem:[#allocation3 + $0x70] sm:$0xf] %vm631, %v2191
      %v2290 = vld [vmem:[#allocation3 + $0x74] sm:$0x1]
      %v2291 = vsel %vm433, %v2192, %v2290
      %2292 = vst [vmem:[#allocation3 + $0x74] sm:$0x1] %v2291
      // Predicated region
      $region53: #{tpu_custom_call.1} parent=43 // pred_check
        %p2293 = pneg %p995
      $region54: #{tpu_custom_call.1} parent=43 // pred_check_branch
        %2295 = sbr.rel (%p2293) target = $region56
      $region55: #{tpu_custom_call.1} parent=43 // pred_region
        %2296 = vst.msk [vmem:[#allocation3] sm:$0xf] %vm631, 0
        %2297 = vst.msk [vmem:[#allocation3 + $0x4] sm:$0xf] %vm631, 0
        %vm2298 = vcmask 24576
        %2299 = vst.msk [vmem:[#allocation3 + $0x8] sm:$0x1] %vm2298, 0
      $region56: #{tpu_custom_call.1} parent=43 // pred_fallthru
        _
      // Predicated region
      $region57: #{tpu_custom_call.1} parent=43 // pred_check
        %p2300 = pneg %p1006
      $region58: #{tpu_custom_call.1} parent=43 // pred_check_branch
        %2302 = sbr.rel (%p2300) target = $region60
      $region59: #{tpu_custom_call.1} parent=43 // pred_region
        %s2303 = scalar_lea.vmem [#allocation3], 108
        %2304 = vst.msk [vmem:[%s2303] sm:$0xf] %vm631, 0
        %2305 = vst.msk [vmem:[%s2303 + $0x4] sm:$0xf] %vm631, 0
        %vm2306 = vcmask 24576
        %2307 = vst.msk [vmem:[%s2303 + $0x8] sm:$0x1] %vm2306, 0
      $region60: #{tpu_custom_call.1} parent=43 // pred_fallthru
        _
      %v2308 = vld [vmem:[#allocation3] sm:$0xf]
      %v2309 = vld [vmem:[#allocation3 + $0x4] sm:$0xf]
      %v2310 = vld [vmem:[#allocation3 + $0xc] sm:$0xf]
      %v2311 = vld [vmem:[#allocation3 + $0x10] sm:$0xf]
      %v2312 = vld [vmem:[#allocation3 + $0x18] sm:$0xf]
      %v2313 = vld [vmem:[#allocation3 + $0x1c] sm:$0xf]
      %v2314 = vld [vmem:[#allocation3 + $0x24] sm:$0xf]
      %v2315 = vld [vmem:[#allocation3 + $0x28] sm:$0xf]
      %v2316 = vld [vmem:[#allocation3 + $0x30] sm:$0xf]
      %v2317 = vld [vmem:[#allocation3 + $0x34] sm:$0xf]
      %v2318 = vld [vmem:[#allocation3 + $0x3c] sm:$0xf]
      %v2319 = vld [vmem:[#allocation3 + $0x40] sm:$0xf]
      %v2320 = vld [vmem:[#allocation3 + $0x48] sm:$0xf]
      %v2321 = vld [vmem:[#allocation3 + $0x4c] sm:$0xf]
      %v2322 = vld [vmem:[#allocation3 + $0x54] sm:$0xf]
      %v2323 = vld [vmem:[#allocation3 + $0x58] sm:$0xf]
      %v2324 = vld [vmem:[#allocation3 + $0x60] sm:$0xf]
      %v2325 = vld [vmem:[#allocation3 + $0x64] sm:$0xf]
      %v2326 = vld [vmem:[#allocation3 + $0x6c] sm:$0xf]
      %v2327 = vld [vmem:[#allocation3 + $0x70] sm:$0xf]
      %v2328 = vld [vmem:[#allocation3 + $0x8] sm:$0x1]
      %v2329 = vld [vmem:[#allocation3 + $0x14] sm:$0x1]
      %v2330 = vld [vmem:[#allocation3 + $0x20] sm:$0x1]
      %v2331 = vld [vmem:[#allocation3 + $0x2c] sm:$0x1]
      %v2332 = vld [vmem:[#allocation3 + $0x38] sm:$0x1]
      %v2333 = vld [vmem:[#allocation3 + $0x44] sm:$0x1]
      %v2334 = vld [vmem:[#allocation3 + $0x50] sm:$0x1]
      %v2335 = vld [vmem:[#allocation3 + $0x5c] sm:$0x1]
      %v2336 = vld [vmem:[#allocation3 + $0x68] sm:$0x1]
      %v2337 = vld [vmem:[#allocation3 + $0x74] sm:$0x1]
      %v2338 = vld [vmem:[#allocation3] sm:$0xe]
      %v2339 = vld [vmem:[#allocation3 + $0xc] sm:$0xe]
      %v2340 = vld [vmem:[#allocation3 + $0x18] sm:$0xe]
      %v2341 = vld [vmem:[#allocation3 + $0x24] sm:$0xe]
      %v2342 = vld [vmem:[#allocation3 + $0x30] sm:$0xe]
      %v2343 = vld [vmem:[#allocation3 + $0x3c] sm:$0xe]
      %v2344 = vld [vmem:[#allocation3 + $0x48] sm:$0xe]
      %v2345 = vld [vmem:[#allocation3 + $0x54] sm:$0xe]
      %v2346 = vld [vmem:[#allocation3 + $0x60] sm:$0xe]
      %v2347 = vld [vmem:[#allocation3 + $0x6c] sm:$0xe]
      %v2368 = vunpack.c.l.b16 %v2308
      %v2369 = vunpack.c.l.b16 %v2309
      %v2370 = vunpack.c.l.b16 %v2310
      %v2371 = vunpack.c.l.b16 %v2311
      %v2372 = vunpack.c.l.b16 %v2312
      %v2373 = vunpack.c.l.b16 %v2313
      %v2374 = vunpack.c.l.b16 %v2314
      %v2375 = vunpack.c.l.b16 %v2315
      %v2376 = vunpack.c.l.b16 %v2316
      %v2377 = vunpack.c.l.b16 %v2317
      %v2378 = vunpack.c.l.b16 %v2318
      %v2379 = vunpack.c.l.b16 %v2319
      %v2380 = vunpack.c.l.b16 %v2320
      %v2381 = vunpack.c.l.b16 %v2321
      %v2382 = vunpack.c.l.b16 %v2322
      %v2383 = vunpack.c.l.b16 %v2323
      %v2384 = vunpack.c.l.b16 %v2324
      %v2385 = vunpack.c.l.b16 %v2325
      %v2386 = vunpack.c.l.b16 %v2326
      %v2387 = vunpack.c.l.b16 %v2327
      %v2388 = vpack.c.b16 %v2369, %v2368
      %v2389 = vpack.c.b16 %v2371, %v2370
      %v2390 = vpack.c.b16 %v2373, %v2372
      %v2391 = vpack.c.b16 %v2375, %v2374
      %v2392 = vpack.c.b16 %v2377, %v2376
      %v2393 = vpack.c.b16 %v2379, %v2378
      %v2394 = vpack.c.b16 %v2381, %v2380
      %v2395 = vpack.c.b16 %v2383, %v2382
      %v2396 = vpack.c.b16 %v2385, %v2384
      %v2397 = vpack.c.b16 %v2387, %v2386
      %v2408 = vunpack.c.l.b16 %v2328
      %v2409 = vunpack.c.l.b16 %v2329
      %v2410 = vunpack.c.l.b16 %v2330
      %v2411 = vunpack.c.l.b16 %v2331
      %v2412 = vunpack.c.l.b16 %v2332
      %v2413 = vunpack.c.l.b16 %v2333
      %v2414 = vunpack.c.l.b16 %v2334
      %v2415 = vunpack.c.l.b16 %v2335
      %v2416 = vunpack.c.l.b16 %v2336
      %v2417 = vunpack.c.l.b16 %v2337
      %v2418 = vpack.c.b16 %v2408, %v2408
      %v2419 = vpack.c.b16 %v2409, %v2409
      %v2420 = vpack.c.b16 %v2410, %v2410
      %v2421 = vpack.c.b16 %v2411, %v2411
      %v2422 = vpack.c.b16 %v2412, %v2412
      %v2423 = vpack.c.b16 %v2413, %v2413
      %v2424 = vpack.c.b16 %v2414, %v2414
      %v2425 = vpack.c.b16 %v2415, %v2415
      %v2426 = vpack.c.b16 %v2416, %v2416
      %v2427 = vpack.c.b16 %v2417, %v2417
      %v2429 = vshrl.u32 %v2388, 16
      %v2431 = vshll.u32 %v2388, 16
      %v2433 = vrot.slane %v2431, 1
      %v2434 = vor.u32 %v2429, %v2433
      %v2436 = vshll.u32 %v2418, 16
      %v2438 = vrot.slane %v2436, 1
      %v2439 = vsel %vm1161, %v2434, %v2438
      %v2441 = vshrl.u32 %v2389, 16
      %v2443 = vshll.u32 %v2389, 16
      %v2445 = vrot.slane %v2443, 1
      %v2446 = vor.u32 %v2441, %v2445
      %v2448 = vshll.u32 %v2419, 16
      %v2450 = vrot.slane %v2448, 1
      %v2451 = vsel %vm1161, %v2446, %v2450
      %v2453 = vshrl.u32 %v2390, 16
      %v2455 = vshll.u32 %v2390, 16
      %v2457 = vrot.slane %v2455, 1
      %v2458 = vor.u32 %v2453, %v2457
      %v2460 = vshll.u32 %v2420, 16
      %v2462 = vrot.slane %v2460, 1
      %v2463 = vsel %vm1161, %v2458, %v2462
      %v2465 = vshrl.u32 %v2391, 16
      %v2467 = vshll.u32 %v2391, 16
      %v2469 = vrot.slane %v2467, 1
      %v2470 = vor.u32 %v2465, %v2469
      %v2472 = vshll.u32 %v2421, 16
      %v2474 = vrot.slane %v2472, 1
      %v2475 = vsel %vm1161, %v2470, %v2474
      %v2477 = vshrl.u32 %v2392, 16
      %v2479 = vshll.u32 %v2392, 16
      %v2481 = vrot.slane %v2479, 1
      %v2482 = vor.u32 %v2477, %v2481
      %v2484 = vshll.u32 %v2422, 16
      %v2486 = vrot.slane %v2484, 1
      %v2487 = vsel %vm1161, %v2482, %v2486
      %v2489 = vshrl.u32 %v2393, 16
      %v2491 = vshll.u32 %v2393, 16
      %v2493 = vrot.slane %v2491, 1
      %v2494 = vor.u32 %v2489, %v2493
      %v2496 = vshll.u32 %v2423, 16
      %v2498 = vrot.slane %v2496, 1
      %v2499 = vsel %vm1161, %v2494, %v2498
      %v2501 = vshrl.u32 %v2394, 16
      %v2503 = vshll.u32 %v2394, 16
      %v2505 = vrot.slane %v2503, 1
      %v2506 = vor.u32 %v2501, %v2505
      %v2508 = vshll.u32 %v2424, 16
      %v2510 = vrot.slane %v2508, 1
      %v2511 = vsel %vm1161, %v2506, %v2510
      %v2513 = vshrl.u32 %v2395, 16
      %v2515 = vshll.u32 %v2395, 16
      %v2517 = vrot.slane %v2515, 1
      %v2518 = vor.u32 %v2513, %v2517
      %v2520 = vshll.u32 %v2425, 16
      %v2522 = vrot.slane %v2520, 1
      %v2523 = vsel %vm1161, %v2518, %v2522
      %v2525 = vshrl.u32 %v2396, 16
      %v2527 = vshll.u32 %v2396, 16
      %v2529 = vrot.slane %v2527, 1
      %v2530 = vor.u32 %v2525, %v2529
      %v2532 = vshll.u32 %v2426, 16
      %v2534 = vrot.slane %v2532, 1
      %v2535 = vsel %vm1161, %v2530, %v2534
      %v2537 = vshrl.u32 %v2397, 16
      %v2539 = vshll.u32 %v2397, 16
      %v2541 = vrot.slane %v2539, 1
      %v2542 = vor.u32 %v2537, %v2541
      %v2544 = vshll.u32 %v2427, 16
      %v2546 = vrot.slane %v2544, 1
      %v2547 = vsel %vm1161, %v2542, %v2546
      %2548 = vrot.lane.b32.xlu0 %v2439, 4
      %v2549 = vpop.permute.xlu0 %2548
      %2550 = vrot.lane.b32.xlu0 %v2451, 4
      %v2551 = vpop.permute.xlu0 %2550
      %2552 = vrot.lane.b32.xlu0 %v2463, 4
      %v2553 = vpop.permute.xlu0 %2552
      %2554 = vrot.lane.b32.xlu0 %v2475, 4
      %v2555 = vpop.permute.xlu0 %2554
      %2556 = vrot.lane.b32.xlu0 %v2487, 4
      %v2557 = vpop.permute.xlu0 %2556
      %2558 = vrot.lane.b32.xlu0 %v2499, 4
      %v2559 = vpop.permute.xlu0 %2558
      %2560 = vrot.lane.b32.xlu0 %v2511, 4
      %v2561 = vpop.permute.xlu0 %2560
      %2562 = vrot.lane.b32.xlu0 %v2523, 4
      %v2563 = vpop.permute.xlu0 %2562
      %2564 = vrot.lane.b32.xlu0 %v2535, 4
      %v2565 = vpop.permute.xlu0 %2564
      %2566 = vrot.lane.b32.xlu0 %v2547, 4
      %v2567 = vpop.permute.xlu0 %2566
      %v2578 = vunpack.c.l.b16 %v2338
      %v2579 = vunpack.c.l.b16 %v2339
      %v2580 = vunpack.c.l.b16 %v2340
      %v2581 = vunpack.c.l.b16 %v2341
      %v2582 = vunpack.c.l.b16 %v2342
      %v2583 = vunpack.c.l.b16 %v2343
      %v2584 = vunpack.c.l.b16 %v2344
      %v2585 = vunpack.c.l.b16 %v2345
      %v2586 = vunpack.c.l.b16 %v2346
      %v2587 = vunpack.c.l.b16 %v2347
      %v2588 = vpack.c.b16 %v2369, %v2578
      %v2589 = vpack.c.b16 %v2371, %v2579
      %v2590 = vpack.c.b16 %v2373, %v2580
      %v2591 = vpack.c.b16 %v2375, %v2581
      %v2592 = vpack.c.b16 %v2377, %v2582
      %v2593 = vpack.c.b16 %v2379, %v2583
      %v2594 = vpack.c.b16 %v2381, %v2584
      %v2595 = vpack.c.b16 %v2383, %v2585
      %v2596 = vpack.c.b16 %v2385, %v2586
      %v2597 = vpack.c.b16 %v2387, %v2587
      %v2598 = vrot.slane %v2588, 1
      %v2599 = vrot.slane %v2418, 1
      %v2600 = vsel %vm1366, %v2598, %v2599
      %v2601 = vrot.slane %v2589, 1
      %v2602 = vrot.slane %v2419, 1
      %v2603 = vsel %vm1366, %v2601, %v2602
      %v2604 = vrot.slane %v2590, 1
      %v2605 = vrot.slane %v2420, 1
      %v2606 = vsel %vm1366, %v2604, %v2605
      %v2607 = vrot.slane %v2591, 1
      %v2608 = vrot.slane %v2421, 1
      %v2609 = vsel %vm1366, %v2607, %v2608
      %v2610 = vrot.slane %v2592, 1
      %v2611 = vrot.slane %v2422, 1
      %v2612 = vsel %vm1366, %v2610, %v2611
      %v2613 = vrot.slane %v2593, 1
      %v2614 = vrot.slane %v2423, 1
      %v2615 = vsel %vm1366, %v2613, %v2614
      %v2616 = vrot.slane %v2594, 1
      %v2617 = vrot.slane %v2424, 1
      %v2618 = vsel %vm1366, %v2616, %v2617
      %v2619 = vrot.slane %v2595, 1
      %v2620 = vrot.slane %v2425, 1
      %v2621 = vsel %vm1366, %v2619, %v2620
      %v2622 = vrot.slane %v2596, 1
      %v2623 = vrot.slane %v2426, 1
      %v2624 = vsel %vm1366, %v2622, %v2623
      %v2625 = vrot.slane %v2597, 1
      %v2626 = vrot.slane %v2427, 1
      %v2627 = vsel %vm1366, %v2625, %v2626
      %2628 = vrot.lane.b32.xlu0 %v2600, 8
      %v2629 = vpop.permute.xlu0 %2628
      %2630 = vrot.lane.b32.xlu0 %v2603, 8
      %v2631 = vpop.permute.xlu0 %2630
      %2632 = vrot.lane.b32.xlu0 %v2606, 8
      %v2633 = vpop.permute.xlu0 %2632
      %2634 = vrot.lane.b32.xlu0 %v2609, 8
      %v2635 = vpop.permute.xlu0 %2634
      %2636 = vrot.lane.b32.xlu0 %v2612, 8
      %v2637 = vpop.permute.xlu0 %2636
      %2638 = vrot.lane.b32.xlu0 %v2615, 8
      %v2639 = vpop.permute.xlu0 %2638
      %2640 = vrot.lane.b32.xlu0 %v2618, 8
      %v2641 = vpop.permute.xlu0 %2640
      %2642 = vrot.lane.b32.xlu0 %v2621, 8
      %v2643 = vpop.permute.xlu0 %2642
      %2644 = vrot.lane.b32.xlu0 %v2624, 8
      %v2645 = vpop.permute.xlu0 %2644
      %2646 = vrot.lane.b32.xlu0 %v2627, 8
      %v2647 = vpop.permute.xlu0 %2646
      %v2649 = vsel %vm1427, %v2388, %v2549
      %v2651 = vsel %vm1427, %v2389, %v2551
      %v2653 = vsel %vm1427, %v2390, %v2553
      %v2655 = vsel %vm1427, %v2391, %v2555
      %v2657 = vsel %vm1427, %v2392, %v2557
      %v2659 = vsel %vm1427, %v2393, %v2559
      %v2661 = vsel %vm1427, %v2394, %v2561
      %v2663 = vsel %vm1427, %v2395, %v2563
      %v2665 = vsel %vm1427, %v2396, %v2565
      %v2667 = vsel %vm1427, %v2397, %v2567
      %v2669 = vsel %vm1452, %v2649, %v2629
      %v2671 = vsel %vm1452, %v2651, %v2631
      %v2673 = vsel %vm1452, %v2653, %v2633
      %v2675 = vsel %vm1452, %v2655, %v2635
      %v2677 = vsel %vm1452, %v2657, %v2637
      %v2679 = vsel %vm1452, %v2659, %v2639
      %v2681 = vsel %vm1452, %v2661, %v2641
      %v2683 = vsel %vm1452, %v2663, %v2643
      %v2685 = vsel %vm1452, %v2665, %v2645
      %v2687 = vsel %vm1452, %v2667, %v2647
      %v2688 = vld [vmem:[%s4] sm:$0xf]
      %v2689 = vld [vmem:[%s4 + $0x4] sm:$0x3]
      %v2690 = vld [vmem:[%s4 + $0x4] sm:$0xc]
      %v2691 = vld [vmem:[%s4 + $0x8] sm:$0xf]
      %v2694 = vunpack.c.l.b16 %v2690
      %v2695 = vunpack.c.l.b16 %v2691
      %v2696 = vpack.c.b16 %v2695, %v2694
      %v2697 = vrot.slane %v2696, 2
      %v2698 = vsel %vm1487, %v2671, 0
      %v2700 = vsel %vm1487, %v2673, 0
      %v2702 = vsel %vm1487, %v2675, 0
      %v2704 = vsel %vm1487, %v2677, 0
      %v2706 = vsel %vm1487, %v2679, 0
      %v2708 = vsel %vm1487, %v2681, 0
      %v2710 = vsel %vm1487, %v2683, 0
      %v2712 = vsel %vm1487, %v2685, 0
      %v2715 = vsel %vm1508, %v2697, 0
      %2717 = vmatprep.subr.bf16.mxu0 0
      %2718 = vmatpush1.bf16.msra.mxu0 %v2715
      %2719 = vmatprep.subr.bf16.mxu0 0
      %2720 = vmatpush1.bf16.msra.mxu0 0
      %2721 = vmatprep.subr.bf16.mxu0 0
      %2722 = vmatpush1.bf16.msra.mxu0 0
      %2723 = vmatprep.subr.bf16.mxu0 0
      %2724 = vmatpush1.bf16.msra.mxu0 0
      %2725 = vmatprep.subr.bf16.mxu0 0
      %2726 = vmatpush1.bf16.msra.mxu0 0
      %2727 = vmatprep.subr.bf16.mxu0 0
      %2728 = vmatpush1.bf16.msra.mxu0 0
      %2729 = vmatprep.subr.bf16.mxu0 0
      %2730 = vmatpush1.bf16.msra.mxu0 0
      %2731 = vmatprep.subr.bf16.mxu0 0
      %2732 = vmatpush1.bf16.msra.mxu0 0
      %2733 = vmatprep.subr.bf16.mxu0 0
      %2734 = vmatpush1.bf16.msra.mxu0 0
      %2735 = vmatprep.subr.bf16.mxu0 0
      %2736 = vmatpush1.bf16.msra.mxu0 0
      %2737 = vmatprep.subr.bf16.mxu0 0
      %2738 = vmatpush1.bf16.msra.mxu0 0
      %2739 = vmatprep.subr.bf16.mxu0 0
      %2740 = vmatpush1.bf16.msra.mxu0 0
      %2741 = vmatprep.subr.bf16.mxu0 0
      %2742 = vmatpush1.bf16.msra.mxu0 0
      %2743 = vmatprep.subr.bf16.mxu0 0
      %2744 = vmatpush1.bf16.msra.mxu0 0
      %2745 = vmatprep.subr.bf16.mxu0 0
      %2746 = vmatpush1.bf16.msra.mxu0 0
      %2747 = vmatprep.subr.bf16.mxu0 0
      %2748 = vmatpush1.bf16.msra.mxu0 0
      %2749 = vmatprep.mubr.bf16.mxu0 0
      %2750 = vmatmul.mubr.bf16.gmra.mrb[0].mxu0 %v2698
      %v2751 = vpop.f32.mrb[0].mxu0
      %v2752 = vadd.f32 0.0, %v2751
      %v2753 = vpop.f32.mrb[0].mxu0
      %v2754 = vpop.f32.mrb[0].mxu0
      %v2755 = vadd.f32 0.0, %v2754
      %v2756 = vpop.f32.mrb[0].mxu0
      %2757 = vmatprep.mubr.bf16.mxu0 0
      %2758 = vmatmul.mubr.bf16.gmra.mrb[0].mxu0 %v2700
      %v2759 = vpop.f32.mrb[0].mxu0
      %v2760 = vadd.f32 0.0, %v2759
      %v2761 = vpop.f32.mrb[0].mxu0
      %v2762 = vpop.f32.mrb[0].mxu0
      %v2763 = vadd.f32 0.0, %v2762
      %v2764 = vpop.f32.mrb[0].mxu0
      %2765 = vmatprep.mubr.bf16.mxu0 0
      %2766 = vmatmul.mubr.bf16.gmra.mrb[0].mxu0 %v2702
      %v2767 = vpop.f32.mrb[0].mxu0
      %v2768 = vadd.f32 0.0, %v2767
      %v2769 = vpop.f32.mrb[0].mxu0
      %v2770 = vpop.f32.mrb[0].mxu0
      %v2771 = vadd.f32 0.0, %v2770
      %v2772 = vpop.f32.mrb[0].mxu0
      %2773 = vmatprep.mubr.bf16.mxu0 0
      %2774 = vmatmul.mubr.bf16.gmra.mrb[0].mxu0 %v2704
      %v2775 = vpop.f32.mrb[0].mxu0
      %v2776 = vadd.f32 0.0, %v2775
      %v2777 = vpop.f32.mrb[0].mxu0
      %v2778 = vpop.f32.mrb[0].mxu0
      %v2779 = vadd.f32 0.0, %v2778
      %v2780 = vpop.f32.mrb[0].mxu0
      %2781 = vmatprep.mubr.bf16.mxu0 0
      %2782 = vmatmul.mubr.bf16.gmra.mrb[0].mxu0 %v2706
      %v2783 = vpop.f32.mrb[0].mxu0
      %v2784 = vadd.f32 0.0, %v2783
      %v2785 = vpop.f32.mrb[0].mxu0
      %v2786 = vpop.f32.mrb[0].mxu0
      %v2787 = vadd.f32 0.0, %v2786
      %v2788 = vpop.f32.mrb[0].mxu0
      %2789 = vmatprep.mubr.bf16.mxu0 0
      %2790 = vmatmul.mubr.bf16.gmra.mrb[0].mxu0 %v2708
      %v2791 = vpop.f32.mrb[0].mxu0
      %v2792 = vadd.f32 0.0, %v2791
      %v2793 = vpop.f32.mrb[0].mxu0
      %v2794 = vpop.f32.mrb[0].mxu0
      %v2795 = vadd.f32 0.0, %v2794
      %v2796 = vpop.f32.mrb[0].mxu0
      %2797 = vmatprep.mubr.bf16.mxu0 0
      %2798 = vmatmul.mubr.bf16.gmra.mrb[0].mxu0 %v2710
      %v2799 = vpop.f32.mrb[0].mxu0
      %v2800 = vadd.f32 0.0, %v2799
      %v2801 = vpop.f32.mrb[0].mxu0
      %v2802 = vpop.f32.mrb[0].mxu0
      %v2803 = vadd.f32 0.0, %v2802
      %v2804 = vpop.f32.mrb[0].mxu0
      %2805 = vmatprep.mubr.bf16.mxu0 0
      %2806 = vmatmul.mubr.bf16.gmra.mrb[0].mxu0 %v2712
      %v2807 = vpop.f32.mrb[0].mxu0
      %v2808 = vadd.f32 0.0, %v2807
      %v2809 = vpop.f32.mrb[0].mxu0
      %v2810 = vpop.f32.mrb[0].mxu0
      %v2811 = vadd.f32 0.0, %v2810
      %v2812 = vpop.f32.mrb[0].mxu0
      %2813 = vdwg.mxu0
      %v2816 = vunpack.c.l.b16 %v2688
      %v2817 = vunpack.c.l.b16 %v2689
      %v2818 = vpack.c.b16 %v2817, %v2816
      %v2819 = vsel %vm1487, %v2669, 0
      %v2822 = vsel %vm1508, %v2818, 0
      %2824 = vmatprep.subr.bf16.mxu0 0
      %2825 = vmatpush1.bf16.msra.mxu0 %v2822
      %2826 = vmatprep.subr.bf16.mxu0 0
      %2827 = vmatpush1.bf16.msra.mxu0 0
      %2828 = vmatprep.subr.bf16.mxu0 0
      %2829 = vmatpush1.bf16.msra.mxu0 0
      %2830 = vmatprep.subr.bf16.mxu0 0
      %2831 = vmatpush1.bf16.msra.mxu0 0
      %2832 = vmatprep.subr.bf16.mxu0 0
      %2833 = vmatpush1.bf16.msra.mxu0 0
      %2834 = vmatprep.subr.bf16.mxu0 0
      %2835 = vmatpush1.bf16.msra.mxu0 0
      %2836 = vmatprep.subr.bf16.mxu0 0
      %2837 = vmatpush1.bf16.msra.mxu0 0
      %2838 = vmatprep.subr.bf16.mxu0 0
      %2839 = vmatpush1.bf16.msra.mxu0 0
      %2840 = vmatprep.subr.bf16.mxu0 0
      %2841 = vmatpush1.bf16.msra.mxu0 0
      %2842 = vmatprep.subr.bf16.mxu0 0
      %2843 = vmatpush1.bf16.msra.mxu0 0
      %2844 = vmatprep.subr.bf16.mxu0 0
      %2845 = vmatpush1.bf16.msra.mxu0 0
      %2846 = vmatprep.subr.bf16.mxu0 0
      %2847 = vmatpush1.bf16.msra.mxu0 0
      %2848 = vmatprep.subr.bf16.mxu0 0
      %2849 = vmatpush1.bf16.msra.mxu0 0
      %2850 = vmatprep.subr.bf16.mxu0 0
      %2851 = vmatpush1.bf16.msra.mxu0 0
      %2852 = vmatprep.subr.bf16.mxu0 0
      %2853 = vmatpush1.bf16.msra.mxu0 0
      %2854 = vmatprep.subr.bf16.mxu0 0
      %2855 = vmatpush1.bf16.msra.mxu0 0
      %2856 = vmatprep.mubr.bf16.mxu0 0
      %2857 = vmatmul.mubr.bf16.gmra.mrb[0].mxu0 %v2819
      %v2858 = vpop.f32.mrb[0].mxu0
      %v2859 = vadd.f32 %v2752, %v2858
      %v2860 = vpop.f32.mrb[0].mxu0
      %v2861 = vpop.f32.mrb[0].mxu0
      %v2862 = vadd.f32 %v2755, %v2861
      %v2863 = vpop.f32.mrb[0].mxu0
      %2864 = vmatprep.mubr.bf16.mxu0 0
      %2865 = vmatmul.mubr.bf16.gmra.mrb[0].mxu0 %v2698
      %v2866 = vpop.f32.mrb[0].mxu0
      %v2867 = vadd.f32 %v2760, %v2866
      %v2868 = vpop.f32.mrb[0].mxu0
      %v2869 = vpop.f32.mrb[0].mxu0
      %v2870 = vadd.f32 %v2763, %v2869
      %v2871 = vpop.f32.mrb[0].mxu0
      %2872 = vmatprep.mubr.bf16.mxu0 0
      %2873 = vmatmul.mubr.bf16.gmra.mrb[0].mxu0 %v2700
      %v2874 = vpop.f32.mrb[0].mxu0
      %v2875 = vadd.f32 %v2768, %v2874
      %v2876 = vpop.f32.mrb[0].mxu0
      %v2877 = vpop.f32.mrb[0].mxu0
      %v2878 = vadd.f32 %v2771, %v2877
      %v2879 = vpop.f32.mrb[0].mxu0
      %2880 = vmatprep.mubr.bf16.mxu0 0
      %2881 = vmatmul.mubr.bf16.gmra.mrb[0].mxu0 %v2702
      %v2882 = vpop.f32.mrb[0].mxu0
      %v2883 = vadd.f32 %v2776, %v2882
      %v2884 = vpop.f32.mrb[0].mxu0
      %v2885 = vpop.f32.mrb[0].mxu0
      %v2886 = vadd.f32 %v2779, %v2885
      %v2887 = vpop.f32.mrb[0].mxu0
      %2888 = vmatprep.mubr.bf16.mxu0 0
      %2889 = vmatmul.mubr.bf16.gmra.mrb[0].mxu0 %v2704
      %v2890 = vpop.f32.mrb[0].mxu0
      %v2891 = vadd.f32 %v2784, %v2890
      %v2892 = vpop.f32.mrb[0].mxu0
      %v2893 = vpop.f32.mrb[0].mxu0
      %v2894 = vadd.f32 %v2787, %v2893
      %v2895 = vpop.f32.mrb[0].mxu0
      %2896 = vmatprep.mubr.bf16.mxu0 0
      %2897 = vmatmul.mubr.bf16.gmra.mrb[0].mxu0 %v2706
      %v2898 = vpop.f32.mrb[0].mxu0
      %v2899 = vadd.f32 %v2792, %v2898
      %v2900 = vpop.f32.mrb[0].mxu0
      %v2901 = vpop.f32.mrb[0].mxu0
      %v2902 = vadd.f32 %v2795, %v2901
      %v2903 = vpop.f32.mrb[0].mxu0
      %2904 = vmatprep.mubr.bf16.mxu0 0
      %2905 = vmatmul.mubr.bf16.gmra.mrb[0].mxu0 %v2708
      %v2906 = vpop.f32.mrb[0].mxu0
      %v2907 = vadd.f32 %v2800, %v2906
      %v2908 = vpop.f32.mrb[0].mxu0
      %v2909 = vpop.f32.mrb[0].mxu0
      %v2910 = vadd.f32 %v2803, %v2909
      %v2911 = vpop.f32.mrb[0].mxu0
      %2912 = vmatprep.mubr.bf16.mxu0 0
      %2913 = vmatmul.mubr.bf16.gmra.mrb[0].mxu0 %v2710
      %v2914 = vpop.f32.mrb[0].mxu0
      %v2915 = vadd.f32 %v2808, %v2914
      %v2916 = vpop.f32.mrb[0].mxu0
      %v2917 = vpop.f32.mrb[0].mxu0
      %v2918 = vadd.f32 %v2811, %v2917
      %v2919 = vpop.f32.mrb[0].mxu0
      %2920 = vdwg.mxu0
      %v2921 = vld [vmem:[%s4 + $0xc] sm:$0xf]
      %v2922 = vld [vmem:[%s4 + $0x10] sm:$0x3]
      %v2925 = vunpack.c.l.b16 %v2921
      %v2926 = vunpack.c.l.b16 %v2922
      %v2927 = vpack.c.b16 %v2926, %v2925
      %v2928 = vsel %vm1487, %v2687, 0
      %v2931 = vsel %vm1508, %v2927, 0
      %2933 = vmatprep.subr.bf16.mxu0 0
      %2934 = vmatpush1.bf16.msra.mxu0 %v2931
      %2935 = vmatprep.subr.bf16.mxu0 0
      %2936 = vmatpush1.bf16.msra.mxu0 0
      %2937 = vmatprep.subr.bf16.mxu0 0
      %2938 = vmatpush1.bf16.msra.mxu0 0
      %2939 = vmatprep.subr.bf16.mxu0 0
      %2940 = vmatpush1.bf16.msra.mxu0 0
      %2941 = vmatprep.subr.bf16.mxu0 0
      %2942 = vmatpush1.bf16.msra.mxu0 0
      %2943 = vmatprep.subr.bf16.mxu0 0
      %2944 = vmatpush1.bf16.msra.mxu0 0
      %2945 = vmatprep.subr.bf16.mxu0 0
      %2946 = vmatpush1.bf16.msra.mxu0 0
      %2947 = vmatprep.subr.bf16.mxu0 0
      %2948 = vmatpush1.bf16.msra.mxu0 0
      %2949 = vmatprep.subr.bf16.mxu0 0
      %2950 = vmatpush1.bf16.msra.mxu0 0
      %2951 = vmatprep.subr.bf16.mxu0 0
      %2952 = vmatpush1.bf16.msra.mxu0 0
      %2953 = vmatprep.subr.bf16.mxu0 0
      %2954 = vmatpush1.bf16.msra.mxu0 0
      %2955 = vmatprep.subr.bf16.mxu0 0
      %2956 = vmatpush1.bf16.msra.mxu0 0
      %2957 = vmatprep.subr.bf16.mxu0 0
      %2958 = vmatpush1.bf16.msra.mxu0 0
      %2959 = vmatprep.subr.bf16.mxu0 0
      %2960 = vmatpush1.bf16.msra.mxu0 0
      %2961 = vmatprep.subr.bf16.mxu0 0
      %2962 = vmatpush1.bf16.msra.mxu0 0
      %2963 = vmatprep.subr.bf16.mxu0 0
      %2964 = vmatpush1.bf16.msra.mxu0 0
      %2965 = vmatprep.mubr.bf16.mxu0 0
      %2966 = vmatmul.mubr.bf16.gmra.mrb[0].mxu0 %v2700
      %v2967 = vpop.f32.mrb[0].mxu0
      %v2968 = vadd.f32 0.0, %v2967
      %v2969 = vpop.f32.mrb[0].mxu0
      %v2970 = vpop.f32.mrb[0].mxu0
      %v2971 = vadd.f32 0.0, %v2970
      %v2972 = vpop.f32.mrb[0].mxu0
      %2973 = vmatprep.mubr.bf16.mxu0 0
      %2974 = vmatmul.mubr.bf16.gmra.mrb[0].mxu0 %v2702
      %v2975 = vpop.f32.mrb[0].mxu0
      %v2976 = vadd.f32 0.0, %v2975
      %v2977 = vpop.f32.mrb[0].mxu0
      %v2978 = vpop.f32.mrb[0].mxu0
      %v2979 = vadd.f32 0.0, %v2978
      %v2980 = vpop.f32.mrb[0].mxu0
      %2981 = vmatprep.mubr.bf16.mxu0 0
      %2982 = vmatmul.mubr.bf16.gmra.mrb[0].mxu0 %v2704
      %v2983 = vpop.f32.mrb[0].mxu0
      %v2984 = vadd.f32 0.0, %v2983
      %v2985 = vpop.f32.mrb[0].mxu0
      %v2986 = vpop.f32.mrb[0].mxu0
      %v2987 = vadd.f32 0.0, %v2986
      %v2988 = vpop.f32.mrb[0].mxu0
      %2989 = vmatprep.mubr.bf16.mxu0 0
      %2990 = vmatmul.mubr.bf16.gmra.mrb[0].mxu0 %v2706
      %v2991 = vpop.f32.mrb[0].mxu0
      %v2992 = vadd.f32 0.0, %v2991
      %v2993 = vpop.f32.mrb[0].mxu0
      %v2994 = vpop.f32.mrb[0].mxu0
      %v2995 = vadd.f32 0.0, %v2994
      %v2996 = vpop.f32.mrb[0].mxu0
      %2997 = vmatprep.mubr.bf16.mxu0 0
      %2998 = vmatmul.mubr.bf16.gmra.mrb[0].mxu0 %v2708
      %v2999 = vpop.f32.mrb[0].mxu0
      %v3000 = vadd.f32 0.0, %v2999
      %v3001 = vpop.f32.mrb[0].mxu0
      %v3002 = vpop.f32.mrb[0].mxu0
      %v3003 = vadd.f32 0.0, %v3002
      %v3004 = vpop.f32.mrb[0].mxu0
      %3005 = vmatprep.mubr.bf16.mxu0 0
      %3006 = vmatmul.mubr.bf16.gmra.mrb[0].mxu0 %v2710
      %v3007 = vpop.f32.mrb[0].mxu0
      %v3008 = vadd.f32 0.0, %v3007
      %v3009 = vpop.f32.mrb[0].mxu0
      %v3010 = vpop.f32.mrb[0].mxu0
      %v3011 = vadd.f32 0.0, %v3010
      %v3012 = vpop.f32.mrb[0].mxu0
      %3013 = vmatprep.mubr.bf16.mxu0 0
      %3014 = vmatmul.mubr.bf16.gmra.mrb[0].mxu0 %v2712
      %v3015 = vpop.f32.mrb[0].mxu0
      %v3016 = vadd.f32 0.0, %v3015
      %v3017 = vpop.f32.mrb[0].mxu0
      %v3018 = vpop.f32.mrb[0].mxu0
      %v3019 = vadd.f32 0.0, %v3018
      %v3020 = vpop.f32.mrb[0].mxu0
      %3021 = vmatprep.mubr.bf16.mxu0 0
      %3022 = vmatmul.mubr.bf16.gmra.mrb[0].mxu0 %v2928
      %v3023 = vpop.f32.mrb[0].mxu0
      %v3024 = vadd.f32 0.0, %v3023
      %v3025 = vpop.f32.mrb[0].mxu0
      %v3026 = vpop.f32.mrb[0].mxu0
      %v3027 = vadd.f32 0.0, %v3026
      %v3028 = vpop.f32.mrb[0].mxu0
      %3029 = vdwg.mxu0
      %v3030 = vadd.f32 %v2859, %v2968
      %v3031 = vadd.f32 %v2862, %v2971
      %v3032 = vadd.f32 %v2867, %v2976
      %v3033 = vadd.f32 %v2870, %v2979
      %v3034 = vadd.f32 %v2875, %v2984
      %v3035 = vadd.f32 %v2878, %v2987
      %v3036 = vadd.f32 %v2883, %v2992
      %v3037 = vadd.f32 %v2886, %v2995
      %v3038 = vadd.f32 %v2891, %v3000
      %v3039 = vadd.f32 %v2894, %v3003
      %v3040 = vadd.f32 %v2899, %v3008
      %v3041 = vadd.f32 %v2902, %v3011
      %v3042 = vadd.f32 %v2907, %v3016
      %v3043 = vadd.f32 %v2910, %v3019
      %v3044 = vadd.f32 %v2915, %v3024
      %v3045 = vadd.f32 %v2918, %v3027
      %v3046 = vld [vmem:[%s5 + $0x2] sm:$0x1]
      %v3047 = vlaneseq
      %v3048 = vshrl.u32 %v3047, 7
      %v3049 = vsub.s32 0, %v3048
      %v3050 = vrot.slane %v3046, %v3049
      %v3051 = vmul.f32 %v3030, %v3050
      %v3052 = vmul.f32 %v3031, %v3050
      %v3053 = vmul.f32 %v3032, %v3050
      %v3054 = vmul.f32 %v3033, %v3050
      %v3055 = vmul.f32 %v3034, %v3050
      %v3056 = vmul.f32 %v3035, %v3050
      %v3057 = vmul.f32 %v3036, %v3050
      %v3058 = vmul.f32 %v3037, %v3050
      %v3059 = vmul.f32 %v3038, %v3050
      %v3060 = vmul.f32 %v3039, %v3050
      %v3061 = vmul.f32 %v3040, %v3050
      %v3062 = vmul.f32 %v3041, %v3050
      %v3063 = vmul.f32 %v3042, %v3050
      %v3064 = vmul.f32 %v3043, %v3050
      %v3065 = vmul.f32 %v3044, %v3050
      %v3066 = vmul.f32 %v3045, %v3050
      %v3067 = vld [vmem:[%s5 + $0x3] sm:$0x1]
      %v3068 = vlaneseq
      %v3069 = vshrl.u32 %v3068, 7
      %v3070 = vsub.s32 0, %v3069
      %v3071 = vrot.slane %v3067, %v3070
      %v3072 = vadd.f32 %v3051, %v3071
      %v3073 = vadd.f32 %v3052, %v3071
      %v3074 = vadd.f32 %v3053, %v3071
      %v3075 = vadd.f32 %v3054, %v3071
      %v3076 = vadd.f32 %v3055, %v3071
      %v3077 = vadd.f32 %v3056, %v3071
      %v3078 = vadd.f32 %v3057, %v3071
      %v3079 = vadd.f32 %v3058, %v3071
      %v3080 = vadd.f32 %v3059, %v3071
      %v3081 = vadd.f32 %v3060, %v3071
      %v3082 = vadd.f32 %v3061, %v3071
      %v3083 = vadd.f32 %v3062, %v3071
      %v3084 = vadd.f32 %v3063, %v3071
      %v3085 = vadd.f32 %v3064, %v3071
      %v3086 = vadd.f32 %v3065, %v3071
      %v3087 = vadd.f32 %v3066, %v3071
      %v3088 = vld [vmem:[%s379] sm:$0xff]
      %v3089 = vld [vmem:[%s379 + $0x8] sm:$0xff]
      %v3090 = vld [vmem:[%s379 + $0x10] sm:$0xff]
      %v3091 = vld [vmem:[%s379 + $0x18] sm:$0xff]
      %v3092 = vld [vmem:[%s379 + $0x20] sm:$0xff]
      %v3093 = vld [vmem:[%s379 + $0x28] sm:$0xff]
      %v3094 = vld [vmem:[%s379 + $0x30] sm:$0xff]
      %v3095 = vld [vmem:[%s379 + $0x38] sm:$0xff]
      %v3096 = vld [vmem:[%s379 + $0x40] sm:$0xff]
      %v3097 = vld [vmem:[%s379 + $0x48] sm:$0xff]
      %v3098 = vld [vmem:[%s379 + $0x50] sm:$0xff]
      %v3099 = vld [vmem:[%s379 + $0x58] sm:$0xff]
      %v3100 = vld [vmem:[%s379 + $0x60] sm:$0xff]
      %v3101 = vld [vmem:[%s379 + $0x68] sm:$0xff]
      %v3102 = vld [vmem:[%s379 + $0x70] sm:$0xff]
      %v3103 = vld [vmem:[%s379 + $0x78] sm:$0xff]
      %v3104 = vadd.f32 %v3072, %v3088
      %v3105 = vadd.f32 %v3073, %v3089
      %v3106 = vadd.f32 %v3074, %v3090
      %v3107 = vadd.f32 %v3075, %v3091
      %v3108 = vadd.f32 %v3076, %v3092
      %v3109 = vadd.f32 %v3077, %v3093
      %v3110 = vadd.f32 %v3078, %v3094
      %v3111 = vadd.f32 %v3079, %v3095
      %v3112 = vadd.f32 %v3080, %v3096
      %v3113 = vadd.f32 %v3081, %v3097
      %v3114 = vadd.f32 %v3082, %v3098
      %v3115 = vadd.f32 %v3083, %v3099
      %v3116 = vadd.f32 %v3084, %v3100
      %v3117 = vadd.f32 %v3085, %v3101
      %v3118 = vadd.f32 %v3086, %v3102
      %v3119 = vadd.f32 %v3087, %v3103
      %v3120 = vmax.f32 %v3104, 0.0
      %v3121 = vmax.f32 %v3105, 0.0
      %v3122 = vmax.f32 %v3106, 0.0
      %v3123 = vmax.f32 %v3107, 0.0
      %v3124 = vmax.f32 %v3108, 0.0
      %v3125 = vmax.f32 %v3109, 0.0
      %v3126 = vmax.f32 %v3110, 0.0
      %v3127 = vmax.f32 %v3111, 0.0
      %v3128 = vmax.f32 %v3112, 0.0
      %v3129 = vmax.f32 %v3113, 0.0
      %v3130 = vmax.f32 %v3114, 0.0
      %v3131 = vmax.f32 %v3115, 0.0
      %v3132 = vmax.f32 %v3116, 0.0
      %v3133 = vmax.f32 %v3117, 0.0
      %v3134 = vmax.f32 %v3118, 0.0
      %v3135 = vmax.f32 %v3119, 0.0
      %3136 = vst.msk [vmem:[%s428] sm:$0xff] %vm1427, %v3120
      %3137 = vst.msk [vmem:[%s428 + $0x8] sm:$0xff] %vm1427, %v3121
      %3138 = vst.msk [vmem:[%s428 + $0x10] sm:$0xff] %vm1427, %v3122
      %3139 = vst.msk [vmem:[%s428 + $0x18] sm:$0xff] %vm1427, %v3123
      %3140 = vst.msk [vmem:[%s428 + $0x20] sm:$0xff] %vm1427, %v3124
      %3141 = vst.msk [vmem:[%s428 + $0x28] sm:$0xff] %vm1427, %v3125
      %3142 = vst.msk [vmem:[%s428 + $0x30] sm:$0xff] %vm1427, %v3126
      %3143 = vst.msk [vmem:[%s428 + $0x38] sm:$0xff] %vm1427, %v3127
      %3144 = vst.msk [vmem:[%s428 + $0x40] sm:$0xff] %vm1427, %v3128
      %3145 = vst.msk [vmem:[%s428 + $0x48] sm:$0xff] %vm1427, %v3129
      %3146 = vst.msk [vmem:[%s428 + $0x50] sm:$0xff] %vm1427, %v3130
      %3147 = vst.msk [vmem:[%s428 + $0x58] sm:$0xff] %vm1427, %v3131
      %3148 = vst.msk [vmem:[%s428 + $0x60] sm:$0xff] %vm1427, %v3132
      %3149 = vst.msk [vmem:[%s428 + $0x68] sm:$0xff] %vm1427, %v3133
      %3150 = vst.msk [vmem:[%s428 + $0x70] sm:$0xff] %vm1427, %v3134
      %3151 = vst.msk [vmem:[%s428 + $0x78] sm:$0xff] %vm1427, %v3135
      %s3152 = smul.u32 8, %s22
      %p3153 = scmp.lt.s32.totalorder %s21, 1
      %s3154 = scalar_select %p3153, %s21, 1
      %p3155 = scmp.lt.s32.totalorder %s3152, 15
      %s3156 = scalar_select %p3155, %s3152, 15
      %s3157 = smul.addr %s3156, 2
      %s3158 = smul.addr %s3154, 32
      %s3159 = sadd.s32 %s3157, %s3158
      %s3160 = smul.addr %s3159, 8
      %s3161 = scalar_lea.vmem %s6, %s3160
      // Predicated region
      $region61: #{tpu_custom_call.1} parent=43 // pred_check
        %p3162 = pneg %p212
      $region62: #{tpu_custom_call.1} parent=43 // pred_check_branch
        %3164 = sbr.rel (%p3162) target = $region64
      $region63: #{tpu_custom_call.1} parent=43 // pred_region
        %s3165 = smul.u32 8, %s22
      $region64: #{tpu_custom_call.1} parent=43 // pred_fallthru
        _
    $region44: #{tpu_custom_call.1} parent=5 // pred_fallthru
      _
    %p3166 = scmp.le.s32.totalorder 2, %s12
    // Predicated region
    $region65: #{tpu_custom_call.1} parent=5 // pred_check
      %p3167 = pneg %p3166
    $region66: #{tpu_custom_call.1} parent=5 // pred_check_branch
      %3169 = sbr.rel (%p3167) target = $region68
    $region67: #{tpu_custom_call.1} parent=5 // pred_region
      %s3170 = ssub.s32 %s12, 2
      // Predicated region
      $region69: #{tpu_custom_call.1} parent=67 // pred_check
        %p3171 = pneg %p218
      $region70: #{tpu_custom_call.1} parent=67 // pred_check_branch
        %3173 = sbr.rel (%p3171) target = $region72
      $region71: #{tpu_custom_call.1} parent=67 // pred_region
        %s3174 = smul.u32 8, %s24
        %p3175 = scmp.lt.s32.totalorder %s23, 1
        %s3176 = scalar_select %p3175, %s23, 1
        %p3177 = scmp.lt.s32.totalorder %s3174, 15
        %s3178 = scalar_select %p3177, %s3174, 15
        %s3179 = smul.addr %s3178, 2
        %s3180 = smul.addr %s3176, 32
        %s3181 = sadd.s32 %s3179, %s3180
        %s3182 = smul.addr %s3181, 8
        %s3183 = scalar_lea.vmem %s6, %s3182
      $region72: #{tpu_custom_call.1} parent=67 // pred_fallthru
        _
    $region68: #{tpu_custom_call.1} parent=5 // pred_fallthru
      _
  $region6: #{tpu_custom_call.1} parent=0 // loop_footer
    %s16 = sadd.s32 1, %s12
  $region7: #{tpu_custom_call.1} parent=0 // loop_footer_branch
    %11 = sbr.rel target = $region3
  $region8: #{tpu_custom_call.1} parent=0 // loop_exit
    _

</llo_original>
